<compile_context>
chip_gen: v5e
topology: v5e:2x2
jax: 0.10.0
libtpu: 0.0.40
codegen_flags: <defaults>
</compile_context>

<pallas_src>
import math

import numpy as np
import jax
import jax.numpy as jnp
from jax import lax
from jax.experimental import pallas as pl
from jax.experimental.pallas import tpu as pltpu

# ------------------------------------------------------------------ config ---
# ResNet(block=BasicBlock, num_blocks=[1,1], num_features=[8,8,16],
#        strides=[2,1,2], num_classes=10, input_shape=(16,16),
#        first_kernel_size=3, use_batchnorm=True, use_maxpool=True,
#        use_avgpool=True, feature_layer_dim=None, dropout=0.0)
NUM_BLOCKS = (1, 1)
NUM_FEATURES = (8, 8, 16)
STRIDES = (2, 1, 2)           # strides[0] -> conv1, strides[i+1] -> block group i
NUM_CLASSES = 10
INPUT_HW = (16, 16)
FIRST_K = 3
BN_EPS = 1e-5


# --------------------------------------------------------------- small helpers

def _out_hw(h, k, s):
    return (h + 2 * (k // 2) - k) // s + 1


def _np_gather_taps(n, hin, win, hout, wout, k, stride):
    """(k*k, N*Hin*Win, N*Hout*Wout) one-hot gather matrices G_t so that
    (x_t @ G_t)[:, m_out] == x_t[:, src_row(t, m_out)] (0 where the tap lands in
    the zero-pad).  Built in numpy at trace time; becomes a compiled constant."""
    pad = k // 2
    m_in, m_out = n * hin * win, n * hout * wout
    taps = np.zeros((k * k, m_in, m_out), np.float32)
    for ki in range(k):
        for kj in range(k):
            t = ki * k + kj
            for b in range(n):
                for ho in range(hout):
                    hi = ho * stride + ki - pad
                    if not (0 <= hi < hin):
                        continue
                    for wo in range(wout):
                        wi = wo * stride + kj - pad
                        if 0 <= wi < win:
                            taps[t, b * hin * win + hi * win + wi,
                                 b * hout * wout + ho * wout + wo] = 1.0
    return taps


def _fold_bn(p):
    """Eval-mode BN folded into the conv weights: scale*conv(x,w)+bias == conv(x,w*scale)+bias."""
    return p["w"] * p["scale"], p["bias"]


def _conv1_patches_t(x_nhwc, k, stride):
    """(k*k*Cin, N*Ho*Wo) patch matrix for the first conv only (tiny; fused XLA slicing)."""
    n, h, w, c = x_nhwc.shape
    pad = k // 2
    ho, wo = _out_hw(h, k, stride), _out_hw(w, k, stride)
    xp = jnp.pad(x_nhwc, ((0, 0), (pad, pad), (pad, pad), (0, 0)))
    cols = []
    for ki in range(k):
        for kj in range(k):
            cols.append(xp[:, ki:ki + stride * (ho - 1) + 1:stride,
                           kj:kj + stride * (wo - 1) + 1:stride, :].reshape(n * ho * wo, c))
    return jnp.concatenate(cols, axis=1).T, ho, wo     # rows ordered (ki, kj, ci)


# ----------------------------------------------------- fully fused Pallas forward

def resnet_forward_pallas(params, x_nchw):
    n = x_nchw.shape[0]
    cin0 = x_nchw.shape[1]
    x = jnp.transpose(x_nchw, (0, 2, 3, 1))            # NCHW -> NHWC
    h, w = x.shape[1], x.shape[2]

    args = []

    def add(a):
        args.append(a)
        return len(args) - 1

    # ---- conv1 (3x3, stride STRIDES[0]) : wrapper patch matrix, (C, M) output layout
    c0 = NUM_FEATURES[0]
    patches_t, h1, w1 = _conv1_patches_t(x, FIRST_K, STRIDES[0])
    i_patches = add(patches_t)
    w1f, b1 = _fold_bn(params["conv1"])
    i_w1 = add(w1f.reshape(FIRST_K * FIRST_K * cin0, c0).T)          # (c0, k*k*cin)
    i_b1 = add(b1.reshape(c0, 1))

    # ---- maxpool 3x3 / stride 2 / pad 1 : 9 in-kernel gathers + elementwise max
    h2, w2 = _out_hw(h1, 3, 2), _out_hw(w1, 3, 2)
    i_mp = add(jnp.asarray(_np_gather_taps(n, h1, w1, h2, w2, 3, 2)))

    # ---- residual blocks
    plan = []
    cin, hc, wc = c0, h2, w2
    for gi, nb in enumerate(NUM_BLOCKS):
        cout, s = NUM_FEATURES[gi + 1], STRIDES[gi + 1]
        for bi in range(nb):
            bs = s if bi == 0 else 1
            bp = params["blocks"][gi][bi]
            ho, wo = _out_hw(hc, 3, bs), _out_hw(wc, 3, bs)
            d = {}
            wf, bf = _fold_bn(bp["conv1"])
            d["t1"] = add(jnp.asarray(_np_gather_taps(n, hc, wc, ho, wo, 3, bs)))
            d["w1"] = add(wf.reshape(9, cin, cout).transpose(0, 2, 1))   # (9, cout, cin)
            d["b1"] = add(bf.reshape(cout, 1))
            wf, bf = _fold_bn(bp["conv2"])
            d["t2"] = add(jnp.asarray(_np_gather_taps(n, ho, wo, ho, wo, 3, 1)))
            d["w2"] = add(wf.reshape(9, cout, cout).transpose(0, 2, 1))
            d["b2"] = add(bf.reshape(cout, 1))
            if bp["shortcut"] is not None:               # 1x1 stride-bs projection
                wf, bf = _fold_bn(bp["shortcut"])
                d["tsc"] = add(jnp.asarray(_np_gather_taps(n, hc, wc, ho, wo, 1, bs)[0]))
                d["wsc"] = add(wf.reshape(cin, cout).T)
                d["bsc"] = add(bf.reshape(cout, 1))
            plan.append(d)
            cin, hc, wc = cout, ho, wo

    # ---- global avgpool + fc2, fused into the same kernel
    avg = np.zeros((n * hc * wc, n), np.float32)
    for b in range(n):
        avg[b * hc * wc:(b + 1) * hc * wc, b] = 1.0 / (hc * wc)
    i_avg = add(jnp.asarray(avg))
    i_wfc = add(params["fc2"]["w"].T)                    # (classes, c_last)
    i_bfc = add(params["fc2"]["b"].reshape(-1, 1))

    c_last = cin
    n_cls = params["fc2"]["w"].shape[1]
    n_in = len(args)

    def conv_taps(x_t, taps_ref, w_ref, b_ref):
        """x_t:(Cin,Min)  taps:(kk,Min,Mout)  w:(kk,Cout,Cin)  b:(Cout,1) -> (Cout,Mout)."""
        acc = None
        for t in range(taps_ref.shape[0]):
            g = jnp.dot(x_t, taps_ref[t], preferred_element_type=jnp.float32)    # gather
            y = jnp.dot(w_ref[t], g, preferred_element_type=jnp.float32)         # tap GEMM
            acc = y if acc is None else acc + y
        return acc + b_ref[...]

    def kernel(*refs):
        r = refs
        logits_ref, feats_ref = refs[n_in], refs[n_in + 1]

        # conv1 + folded BN + ReLU : (c0, k*k*cin) @ (k*k*cin, M1) -> (8, 128)
        act = jnp.dot(r[i_w1][...], r[i_patches][...], preferred_element_type=jnp.float32)
        act = jnp.maximum(act + r[i_b1][...], 0.0)

        # maxpool: max over 9 gathered taps (inputs >= 0, so 0-padding is neutral)
        pooled = jnp.dot(act, r[i_mp][0], preferred_element_type=jnp.float32)
        for t in range(1, r[i_mp].shape[0]):
            pooled = jnp.maximum(
                pooled, jnp.dot(act, r[i_mp][t], preferred_element_type=jnp.float32))
        act = pooled

        # residual blocks: conv+BN+ReLU, conv+BN, (+ projection shortcut), add, ReLU
        for d in plan:
            x_in = act
            y = jnp.maximum(conv_taps(x_in, r[d["t1"]], r[d["w1"]], r[d["b1"]]), 0.0)
            y = conv_taps(y, r[d["t2"]], r[d["w2"]], r[d["b2"]])
            if "tsc" in d:
                sc = jnp.dot(r[d["wsc"]][...],
                             jnp.dot(x_in, r[d["tsc"]][...],
                                     preferred_element_type=jnp.float32),
                             preferred_element_type=jnp.float32) + r[d["bsc"]][...]
            else:
                sc = x_in
            act = jnp.maximum(y + sc, 0.0)

        # global average pool + final FC (still lane-dense, transposed outputs)
        feats_t = jnp.dot(act, r[i_avg][...], preferred_element_type=jnp.float32)  # (C, N)
        feats_ref[...] = feats_t
        logits_ref[...] = jnp.dot(r[i_wfc][...], feats_t,
                                  preferred_element_type=jnp.float32) + r[i_bfc][...]

    vmem = pl.BlockSpec(memory_space=pltpu.MemorySpace.VMEM)
    logits_t, feats_t = pl.pallas_call(
        kernel,
        out_shape=(jax.ShapeDtypeStruct((n_cls, n), jnp.float32),
                   jax.ShapeDtypeStruct((c_last, n), jnp.float32)),
        in_specs=[vmem] * n_in,
        out_specs=(vmem, vmem),
    )(*args)

    # dropout(p=0.0) is the identity.
    # TODO(synk): the reference forward calls self.fc2(self.dropout(fc1)) where fc1 is
    # undefined (upstream bug, feature_layer_dim=None); interpreted as fc2(dropout(feats)).
    return logits_t.T, feats_t.T


# ------------------------------------------------------------- pure-JAX reference

def conv_bn_ref(x, p, stride, relu, residual=None):
    k = p["w"].shape[0]
    pad = k // 2
    y = lax.conv_general_dilated(x, p["w"], (stride, stride),
                                 ((pad, pad), (pad, pad)),
                                 dimension_numbers=("NHWC", "HWIO", "NHWC"))
    y = y * p["scale"] + p["bias"]
    if residual is not None:
        y = y + residual
    if relu:
        y = jnp.maximum(y, 0.0)
    return y


def resnet_forward_ref(params, x_nchw):
    x = jnp.transpose(x_nchw, (0, 2, 3, 1))
    x = conv_bn_ref(x, params["conv1"], STRIDES[0], relu=True)
    x = lax.reduce_window(x, -jnp.inf, lax.max, (1, 3, 3, 1), (1, 2, 2, 1),
                          padding=((0, 0), (1, 1), (1, 1), (0, 0)))
    for gi, group in enumerate(params["blocks"]):
        for bi, bp in enumerate(group):
            s = STRIDES[gi + 1] if bi == 0 else 1
            sc = x if bp["shortcut"] is None else conv_bn_ref(x, bp["shortcut"], s, relu=False)
            y = conv_bn_ref(x, bp["conv1"], s, relu=True)
            x = conv_bn_ref(y, bp["conv2"], 1, relu=True, residual=sc)
    feats = jnp.mean(x, axis=(1, 2))
    logits = feats @ params["fc2"]["w"] + params["fc2"]["b"]
    return logits, feats


# ------------------------------------------------------------------- parameters

def init_conv_bn(key, k, cin, cout):
    k1, k2, k3, k4 = jax.random.split(key, 4)
    w = jax.random.normal(k1, (k, k, cin, cout), jnp.float32) / math.sqrt(k * k * cin)
    gamma = 1.0 + 0.1 * jax.random.normal(k2, (cout,), jnp.float32)
    beta = 0.1 * jax.random.normal(k3, (cout,), jnp.float32)
    running_mean = 0.1 * jax.random.normal(k4, (cout,), jnp.float32)
    running_var = jnp.ones((cout,), jnp.float32)
    scale = gamma / jnp.sqrt(running_var + BN_EPS)       # eval-mode BN
    bias = beta - running_mean * scale
    return {"w": w, "scale": scale, "bias": bias}


def init_params(key):
    keys = iter(jax.random.split(key, 64))
    params = {"conv1": init_conv_bn(next(keys), FIRST_K, 3, NUM_FEATURES[0])}
    blocks = []
    for gi, nb in enumerate(NUM_BLOCKS):
        cin, cout, s = NUM_FEATURES[gi], NUM_FEATURES[gi + 1], STRIDES[gi + 1]
        group = []
        for bi in range(nb):
            b_cin = cin if bi == 0 else cout
            b_s = s if bi == 0 else 1
            bp = {"conv1": init_conv_bn(next(keys), 3, b_cin, cout),
                  "conv2": init_conv_bn(next(keys), 3, cout, cout),
                  "shortcut": None}
            if b_s != 1 or b_cin != cout:
                bp["shortcut"] = init_conv_bn(next(keys), 1, b_cin, cout)
            group.append(bp)
        blocks.append(group)
    params["blocks"] = blocks
    k1, k2 = jax.random.split(next(keys))
    params["fc2"] = {
        "w": jax.random.normal(k1, (NUM_FEATURES[-1], NUM_CLASSES), jnp.float32)
             / math.sqrt(NUM_FEATURES[-1]),
        "b": 0.1 * jax.random.normal(k2, (NUM_CLASSES,), jnp.float32),
    }
    return params


# ------------------------------------------------------------------------- main

if __name__ == "__main__":
    key = jax.random.PRNGKey(0)
    kx, kp = jax.random.split(key)
    x = jax.random.normal(kx, (2, 3, *INPUT_HW), jnp.float32)   # NCHW, like PyTorch
    params = init_params(kp)

    fwd = jax.jit(resnet_forward_pallas)
    logits, feats = fwd(params, x)
    jax.block_until_ready((logits, feats))
    assert logits.shape == (2, NUM_CLASSES) and feats.shape == (2, NUM_FEATURES[-1])

    logits_ref, feats_ref = resnet_forward_ref(params, x)
    assert jnp.allclose(logits, logits_ref, atol=2e-3, rtol=2e-3), "logits mismatch"
    assert jnp.allclose(feats, feats_ref, atol=2e-3, rtol=2e-3), "feats mismatch"

    print("KERNEL_OK")
</pallas_src>

<mosaic_0001>
module attributes {stable_mosaic.version = 11 : i64} {
  func.func @kernel(%arg0: memref<27x128xf32, #tpu.memory_space<vmem>>, %arg1: memref<8x27xf32, #tpu.memory_space<vmem>>, %arg2: memref<8x1xf32, #tpu.memory_space<vmem>>, %arg3: memref<9x128x32xf32, #tpu.memory_space<vmem>>, %arg4: memref<9x32x32xf32, #tpu.memory_space<vmem>>, %arg5: memref<9x8x8xf32, #tpu.memory_space<vmem>>, %arg6: memref<8x1xf32, #tpu.memory_space<vmem>>, %arg7: memref<9x32x32xf32, #tpu.memory_space<vmem>>, %arg8: memref<9x8x8xf32, #tpu.memory_space<vmem>>, %arg9: memref<8x1xf32, #tpu.memory_space<vmem>>, %arg10: memref<9x32x8xf32, #tpu.memory_space<vmem>>, %arg11: memref<9x16x8xf32, #tpu.memory_space<vmem>>, %arg12: memref<16x1xf32, #tpu.memory_space<vmem>>, %arg13: memref<9x8x8xf32, #tpu.memory_space<vmem>>, %arg14: memref<9x16x16xf32, #tpu.memory_space<vmem>>, %arg15: memref<16x1xf32, #tpu.memory_space<vmem>>, %arg16: memref<32x8xf32, #tpu.memory_space<vmem>>, %arg17: memref<16x8xf32, #tpu.memory_space<vmem>>, %arg18: memref<16x1xf32, #tpu.memory_space<vmem>>, %arg19: memref<8x2xf32, #tpu.memory_space<vmem>>, %arg20: memref<10x16xf32, #tpu.memory_space<vmem>>, %arg21: memref<10x1xf32, #tpu.memory_space<vmem>>, %arg22: memref<10x2xf32, #tpu.memory_space<vmem>>, %arg23: memref<16x2xf32, #tpu.memory_space<vmem>>) attributes {dimension_semantics = [], scalar_prefetch = 0 : i64, scratch_operands = 0 : i64, tpu.core_type = #tpu.core_type<tc>} {
    %c0 = arith.constant 0 : index
    %c0_0 = arith.constant 0 : index
    %0 = vector.load %arg1[%c0, %c0_0] : memref<8x27xf32, #tpu.memory_space<vmem>>, vector<8x27xf32>
    %c0_1 = arith.constant 0 : index
    %c0_2 = arith.constant 0 : index
    %1 = vector.load %arg0[%c0_1, %c0_2] : memref<27x128xf32, #tpu.memory_space<vmem>>, vector<27x128xf32>
    %cst = arith.constant dense<0.000000e+00> : vector<8x128xf32>
    %2 = tpu.matmul %0, %1, %cst {dimension_numbers = #tpu.dot_dimension_numbers<[1], [0], [0], [1], [0, 0, 1, 1], [], []>} : vector<8x27xf32>, vector<27x128xf32>, vector<8x128xf32> -> vector<8x128xf32>
    %c0_3 = arith.constant 0 : index
    %c0_4 = arith.constant 0 : index
    %3 = vector.load %arg2[%c0_3, %c0_4] : memref<8x1xf32, #tpu.memory_space<vmem>>, vector<8x1xf32>
    %4 = vector.broadcast %3 : vector<8x1xf32> to vector<8x128xf32>
    %5 = arith.addf %2, %4 : vector<8x128xf32>
    %cst_5 = arith.constant 0.000000e+00 : f32
    %6 = vector.broadcast %cst_5 : f32 to vector<8x128xf32>
    %7 = arith.maximumf %5, %6 : vector<8x128xf32>
    %c0_6 = arith.constant 0 : index
    %c0_7 = arith.constant 0 : index
    %c0_8 = arith.constant 0 : index
    %8 = vector.load %arg3[%c0_6, %c0_7, %c0_8] : memref<9x128x32xf32, #tpu.memory_space<vmem>>, vector<1x128x32xf32>
    %9 = vector.shape_cast %8 : vector<1x128x32xf32> to vector<128x32xf32>
    %cst_9 = arith.constant dense<0.000000e+00> : vector<8x32xf32>
    %10 = tpu.matmul %7, %9, %cst_9 {dimension_numbers = #tpu.dot_dimension_numbers<[1], [0], [0], [1], [0, 0, 1, 1], [], []>} : vector<8x128xf32>, vector<128x32xf32>, vector<8x32xf32> -> vector<8x32xf32>
    %c1 = arith.constant 1 : index
    %c0_10 = arith.constant 0 : index
    %c0_11 = arith.constant 0 : index
    %11 = vector.load %arg3[%c1, %c0_10, %c0_11] : memref<9x128x32xf32, #tpu.memory_space<vmem>>, vector<1x128x32xf32>
    %12 = vector.shape_cast %11 : vector<1x128x32xf32> to vector<128x32xf32>
    %cst_12 = arith.constant dense<0.000000e+00> : vector<8x32xf32>
    %13 = tpu.matmul %7, %12, %cst_12 {dimension_numbers = #tpu.dot_dimension_numbers<[1], [0], [0], [1], [0, 0, 1, 1], [], []>} : vector<8x128xf32>, vector<128x32xf32>, vector<8x32xf32> -> vector<8x32xf32>
    %14 = arith.maximumf %10, %13 : vector<8x32xf32>
    %c2 = arith.constant 2 : index
    %c0_13 = arith.constant 0 : index
    %c0_14 = arith.constant 0 : index
    %15 = vector.load %arg3[%c2, %c0_13, %c0_14] : memref<9x128x32xf32, #tpu.memory_space<vmem>>, vector<1x128x32xf32>
    %16 = vector.shape_cast %15 : vector<1x128x32xf32> to vector<128x32xf32>
    %cst_15 = arith.constant dense<0.000000e+00> : vector<8x32xf32>
    %17 = tpu.matmul %7, %16, %cst_15 {dimension_numbers = #tpu.dot_dimension_numbers<[1], [0], [0], [1], [0, 0, 1, 1], [], []>} : vector<8x128xf32>, vector<128x32xf32>, vector<8x32xf32> -> vector<8x32xf32>
    %18 = arith.maximumf %14, %17 : vector<8x32xf32>
    %c3 = arith.constant 3 : index
    %c0_16 = arith.constant 0 : index
    %c0_17 = arith.constant 0 : index
    %19 = vector.load %arg3[%c3, %c0_16, %c0_17] : memref<9x128x32xf32, #tpu.memory_space<vmem>>, vector<1x128x32xf32>
    %20 = vector.shape_cast %19 : vector<1x128x32xf32> to vector<128x32xf32>
    %cst_18 = arith.constant dense<0.000000e+00> : vector<8x32xf32>
    %21 = tpu.matmul %7, %20, %cst_18 {dimension_numbers = #tpu.dot_dimension_numbers<[1], [0], [0], [1], [0, 0, 1, 1], [], []>} : vector<8x128xf32>, vector<128x32xf32>, vector<8x32xf32> -> vector<8x32xf32>
    %22 = arith.maximumf %18, %21 : vector<8x32xf32>
    %c4 = arith.constant 4 : index
    %c0_19 = arith.constant 0 : index
    %c0_20 = arith.constant 0 : index
    %23 = vector.load %arg3[%c4, %c0_19, %c0_20] : memref<9x128x32xf32, #tpu.memory_space<vmem>>, vector<1x128x32xf32>
    %24 = vector.shape_cast %23 : vector<1x128x32xf32> to vector<128x32xf32>
    %cst_21 = arith.constant dense<0.000000e+00> : vector<8x32xf32>
    %25 = tpu.matmul %7, %24, %cst_21 {dimension_numbers = #tpu.dot_dimension_numbers<[1], [0], [0], [1], [0, 0, 1, 1], [], []>} : vector<8x128xf32>, vector<128x32xf32>, vector<8x32xf32> -> vector<8x32xf32>
    %26 = arith.maximumf %22, %25 : vector<8x32xf32>
    %c5 = arith.constant 5 : index
    %c0_22 = arith.constant 0 : index
    %c0_23 = arith.constant 0 : index
    %27 = vector.load %arg3[%c5, %c0_22, %c0_23] : memref<9x128x32xf32, #tpu.memory_space<vmem>>, vector<1x128x32xf32>
    %28 = vector.shape_cast %27 : vector<1x128x32xf32> to vector<128x32xf32>
    %cst_24 = arith.constant dense<0.000000e+00> : vector<8x32xf32>
    %29 = tpu.matmul %7, %28, %cst_24 {dimension_numbers = #tpu.dot_dimension_numbers<[1], [0], [0], [1], [0, 0, 1, 1], [], []>} : vector<8x128xf32>, vector<128x32xf32>, vector<8x32xf32> -> vector<8x32xf32>
    %30 = arith.maximumf %26, %29 : vector<8x32xf32>
    %c6 = arith.constant 6 : index
    %c0_25 = arith.constant 0 : index
    %c0_26 = arith.constant 0 : index
    %31 = vector.load %arg3[%c6, %c0_25, %c0_26] : memref<9x128x32xf32, #tpu.memory_space<vmem>>, vector<1x128x32xf32>
    %32 = vector.shape_cast %31 : vector<1x128x32xf32> to vector<128x32xf32>
    %cst_27 = arith.constant dense<0.000000e+00> : vector<8x32xf32>
    %33 = tpu.matmul %7, %32, %cst_27 {dimension_numbers = #tpu.dot_dimension_numbers<[1], [0], [0], [1], [0, 0, 1, 1], [], []>} : vector<8x128xf32>, vector<128x32xf32>, vector<8x32xf32> -> vector<8x32xf32>
    %34 = arith.maximumf %30, %33 : vector<8x32xf32>
    %c7 = arith.constant 7 : index
    %c0_28 = arith.constant 0 : index
    %c0_29 = arith.constant 0 : index
    %35 = vector.load %arg3[%c7, %c0_28, %c0_29] : memref<9x128x32xf32, #tpu.memory_space<vmem>>, vector<1x128x32xf32>
    %36 = vector.shape_cast %35 : vector<1x128x32xf32> to vector<128x32xf32>
    %cst_30 = arith.constant dense<0.000000e+00> : vector<8x32xf32>
    %37 = tpu.matmul %7, %36, %cst_30 {dimension_numbers = #tpu.dot_dimension_numbers<[1], [0], [0], [1], [0, 0, 1, 1], [], []>} : vector<8x128xf32>, vector<128x32xf32>, vector<8x32xf32> -> vector<8x32xf32>
    %38 = arith.maximumf %34, %37 : vector<8x32xf32>
    %c8 = arith.constant 8 : index
    %c0_31 = arith.constant 0 : index
    %c0_32 = arith.constant 0 : index
    %39 = vector.load %arg3[%c8, %c0_31, %c0_32] : memref<9x128x32xf32, #tpu.memory_space<vmem>>, vector<1x128x32xf32>
    %40 = vector.shape_cast %39 : vector<1x128x32xf32> to vector<128x32xf32>
    %cst_33 = arith.constant dense<0.000000e+00> : vector<8x32xf32>
    %41 = tpu.matmul %7, %40, %cst_33 {dimension_numbers = #tpu.dot_dimension_numbers<[1], [0], [0], [1], [0, 0, 1, 1], [], []>} : vector<8x128xf32>, vector<128x32xf32>, vector<8x32xf32> -> vector<8x32xf32>
    %42 = arith.maximumf %38, %41 : vector<8x32xf32>
    %c0_34 = arith.constant 0 : index
    %c0_35 = arith.constant 0 : index
    %c0_36 = arith.constant 0 : index
    %43 = vector.load %arg4[%c0_34, %c0_35, %c0_36] : memref<9x32x32xf32, #tpu.memory_space<vmem>>, vector<1x32x32xf32>
    %44 = vector.shape_cast %43 : vector<1x32x32xf32> to vector<32x32xf32>
    %cst_37 = arith.constant dense<0.000000e+00> : vector<8x32xf32>
    %45 = tpu.matmul %42, %44, %cst_37 {dimension_numbers = #tpu.dot_dimension_numbers<[1], [0], [0], [1], [0, 0, 1, 1], [], []>} : vector<8x32xf32>, vector<32x32xf32>, vector<8x32xf32> -> vector<8x32xf32>
    %c0_38 = arith.constant 0 : index
    %c0_39 = arith.constant 0 : index
    %c0_40 = arith.constant 0 : index
    %46 = vector.load %arg5[%c0_38, %c0_39, %c0_40] : memref<9x8x8xf32, #tpu.memory_space<vmem>>, vector<1x8x8xf32>
    %47 = vector.shape_cast %46 : vector<1x8x8xf32> to vector<8x8xf32>
    %cst_41 = arith.constant dense<0.000000e+00> : vector<8x32xf32>
    %48 = tpu.matmul %47, %45, %cst_41 {dimension_numbers = #tpu.dot_dimension_numbers<[1], [0], [0], [1], [0, 0, 1, 1], [], []>} : vector<8x8xf32>, vector<8x32xf32>, vector<8x32xf32> -> vector<8x32xf32>
    %c1_42 = arith.constant 1 : index
    %c0_43 = arith.constant 0 : index
    %c0_44 = arith.constant 0 : index
    %49 = vector.load %arg4[%c1_42, %c0_43, %c0_44] : memref<9x32x32xf32, #tpu.memory_space<vmem>>, vector<1x32x32xf32>
    %50 = vector.shape_cast %49 : vector<1x32x32xf32> to vector<32x32xf32>
    %cst_45 = arith.constant dense<0.000000e+00> : vector<8x32xf32>
    %51 = tpu.matmul %42, %50, %cst_45 {dimension_numbers = #tpu.dot_dimension_numbers<[1], [0], [0], [1], [0, 0, 1, 1], [], []>} : vector<8x32xf32>, vector<32x32xf32>, vector<8x32xf32> -> vector<8x32xf32>
    %c1_46 = arith.constant 1 : index
    %c0_47 = arith.constant 0 : index
    %c0_48 = arith.constant 0 : index
    %52 = vector.load %arg5[%c1_46, %c0_47, %c0_48] : memref<9x8x8xf32, #tpu.memory_space<vmem>>, vector<1x8x8xf32>
    %53 = vector.shape_cast %52 : vector<1x8x8xf32> to vector<8x8xf32>
    %cst_49 = arith.constant dense<0.000000e+00> : vector<8x32xf32>
    %54 = tpu.matmul %53, %51, %cst_49 {dimension_numbers = #tpu.dot_dimension_numbers<[1], [0], [0], [1], [0, 0, 1, 1], [], []>} : vector<8x8xf32>, vector<8x32xf32>, vector<8x32xf32> -> vector<8x32xf32>
    %55 = arith.addf %48, %54 : vector<8x32xf32>
    %c2_50 = arith.constant 2 : index
    %c0_51 = arith.constant 0 : index
    %c0_52 = arith.constant 0 : index
    %56 = vector.load %arg4[%c2_50, %c0_51, %c0_52] : memref<9x32x32xf32, #tpu.memory_space<vmem>>, vector<1x32x32xf32>
    %57 = vector.shape_cast %56 : vector<1x32x32xf32> to vector<32x32xf32>
    %cst_53 = arith.constant dense<0.000000e+00> : vector<8x32xf32>
    %58 = tpu.matmul %42, %57, %cst_53 {dimension_numbers = #tpu.dot_dimension_numbers<[1], [0], [0], [1], [0, 0, 1, 1], [], []>} : vector<8x32xf32>, vector<32x32xf32>, vector<8x32xf32> -> vector<8x32xf32>
    %c2_54 = arith.constant 2 : index
    %c0_55 = arith.constant 0 : index
    %c0_56 = arith.constant 0 : index
    %59 = vector.load %arg5[%c2_54, %c0_55, %c0_56] : memref<9x8x8xf32, #tpu.memory_space<vmem>>, vector<1x8x8xf32>
    %60 = vector.shape_cast %59 : vector<1x8x8xf32> to vector<8x8xf32>
    %cst_57 = arith.constant dense<0.000000e+00> : vector<8x32xf32>
    %61 = tpu.matmul %60, %58, %cst_57 {dimension_numbers = #tpu.dot_dimension_numbers<[1], [0], [0], [1], [0, 0, 1, 1], [], []>} : vector<8x8xf32>, vector<8x32xf32>, vector<8x32xf32> -> vector<8x32xf32>
    %62 = arith.addf %55, %61 : vector<8x32xf32>
    %c3_58 = arith.constant 3 : index
    %c0_59 = arith.constant 0 : index
    %c0_60 = arith.constant 0 : index
    %63 = vector.load %arg4[%c3_58, %c0_59, %c0_60] : memref<9x32x32xf32, #tpu.memory_space<vmem>>, vector<1x32x32xf32>
    %64 = vector.shape_cast %63 : vector<1x32x32xf32> to vector<32x32xf32>
    %cst_61 = arith.constant dense<0.000000e+00> : vector<8x32xf32>
    %65 = tpu.matmul %42, %64, %cst_61 {dimension_numbers = #tpu.dot_dimension_numbers<[1], [0], [0], [1], [0, 0, 1, 1], [], []>} : vector<8x32xf32>, vector<32x32xf32>, vector<8x32xf32> -> vector<8x32xf32>
    %c3_62 = arith.constant 3 : index
    %c0_63 = arith.constant 0 : index
    %c0_64 = arith.constant 0 : index
    %66 = vector.load %arg5[%c3_62, %c0_63, %c0_64] : memref<9x8x8xf32, #tpu.memory_space<vmem>>, vector<1x8x8xf32>
    %67 = vector.shape_cast %66 : vector<1x8x8xf32> to vector<8x8xf32>
    %cst_65 = arith.constant dense<0.000000e+00> : vector<8x32xf32>
    %68 = tpu.matmul %67, %65, %cst_65 {dimension_numbers = #tpu.dot_dimension_numbers<[1], [0], [0], [1], [0, 0, 1, 1], [], []>} : vector<8x8xf32>, vector<8x32xf32>, vector<8x32xf32> -> vector<8x32xf32>
    %69 = arith.addf %62, %68 : vector<8x32xf32>
    %c4_66 = arith.constant 4 : index
    %c0_67 = arith.constant 0 : index
    %c0_68 = arith.constant 0 : index
    %70 = vector.load %arg4[%c4_66, %c0_67, %c0_68] : memref<9x32x32xf32, #tpu.memory_space<vmem>>, vector<1x32x32xf32>
    %71 = vector.shape_cast %70 : vector<1x32x32xf32> to vector<32x32xf32>
    %cst_69 = arith.constant dense<0.000000e+00> : vector<8x32xf32>
    %72 = tpu.matmul %42, %71, %cst_69 {dimension_numbers = #tpu.dot_dimension_numbers<[1], [0], [0], [1], [0, 0, 1, 1], [], []>} : vector<8x32xf32>, vector<32x32xf32>, vector<8x32xf32> -> vector<8x32xf32>
    %c4_70 = arith.constant 4 : index
    %c0_71 = arith.constant 0 : index
    %c0_72 = arith.constant 0 : index
    %73 = vector.load %arg5[%c4_70, %c0_71, %c0_72] : memref<9x8x8xf32, #tpu.memory_space<vmem>>, vector<1x8x8xf32>
    %74 = vector.shape_cast %73 : vector<1x8x8xf32> to vector<8x8xf32>
    %cst_73 = arith.constant dense<0.000000e+00> : vector<8x32xf32>
    %75 = tpu.matmul %74, %72, %cst_73 {dimension_numbers = #tpu.dot_dimension_numbers<[1], [0], [0], [1], [0, 0, 1, 1], [], []>} : vector<8x8xf32>, vector<8x32xf32>, vector<8x32xf32> -> vector<8x32xf32>
    %76 = arith.addf %69, %75 : vector<8x32xf32>
    %c5_74 = arith.constant 5 : index
    %c0_75 = arith.constant 0 : index
    %c0_76 = arith.constant 0 : index
    %77 = vector.load %arg4[%c5_74, %c0_75, %c0_76] : memref<9x32x32xf32, #tpu.memory_space<vmem>>, vector<1x32x32xf32>
    %78 = vector.shape_cast %77 : vector<1x32x32xf32> to vector<32x32xf32>
    %cst_77 = arith.constant dense<0.000000e+00> : vector<8x32xf32>
    %79 = tpu.matmul %42, %78, %cst_77 {dimension_numbers = #tpu.dot_dimension_numbers<[1], [0], [0], [1], [0, 0, 1, 1], [], []>} : vector<8x32xf32>, vector<32x32xf32>, vector<8x32xf32> -> vector<8x32xf32>
    %c5_78 = arith.constant 5 : index
    %c0_79 = arith.constant 0 : index
    %c0_80 = arith.constant 0 : index
    %80 = vector.load %arg5[%c5_78, %c0_79, %c0_80] : memref<9x8x8xf32, #tpu.memory_space<vmem>>, vector<1x8x8xf32>
    %81 = vector.shape_cast %80 : vector<1x8x8xf32> to vector<8x8xf32>
    %cst_81 = arith.constant dense<0.000000e+00> : vector<8x32xf32>
    %82 = tpu.matmul %81, %79, %cst_81 {dimension_numbers = #tpu.dot_dimension_numbers<[1], [0], [0], [1], [0, 0, 1, 1], [], []>} : vector<8x8xf32>, vector<8x32xf32>, vector<8x32xf32> -> vector<8x32xf32>
    %83 = arith.addf %76, %82 : vector<8x32xf32>
    %c6_82 = arith.constant 6 : index
    %c0_83 = arith.constant 0 : index
    %c0_84 = arith.constant 0 : index
    %84 = vector.load %arg4[%c6_82, %c0_83, %c0_84] : memref<9x32x32xf32, #tpu.memory_space<vmem>>, vector<1x32x32xf32>
    %85 = vector.shape_cast %84 : vector<1x32x32xf32> to vector<32x32xf32>
    %cst_85 = arith.constant dense<0.000000e+00> : vector<8x32xf32>
    %86 = tpu.matmul %42, %85, %cst_85 {dimension_numbers = #tpu.dot_dimension_numbers<[1], [0], [0], [1], [0, 0, 1, 1], [], []>} : vector<8x32xf32>, vector<32x32xf32>, vector<8x32xf32> -> vector<8x32xf32>
    %c6_86 = arith.constant 6 : index
    %c0_87 = arith.constant 0 : index
    %c0_88 = arith.constant 0 : index
    %87 = vector.load %arg5[%c6_86, %c0_87, %c0_88] : memref<9x8x8xf32, #tpu.memory_space<vmem>>, vector<1x8x8xf32>
    %88 = vector.shape_cast %87 : vector<1x8x8xf32> to vector<8x8xf32>
    %cst_89 = arith.constant dense<0.000000e+00> : vector<8x32xf32>
    %89 = tpu.matmul %88, %86, %cst_89 {dimension_numbers = #tpu.dot_dimension_numbers<[1], [0], [0], [1], [0, 0, 1, 1], [], []>} : vector<8x8xf32>, vector<8x32xf32>, vector<8x32xf32> -> vector<8x32xf32>
    %90 = arith.addf %83, %89 : vector<8x32xf32>
    %c7_90 = arith.constant 7 : index
    %c0_91 = arith.constant 0 : index
    %c0_92 = arith.constant 0 : index
    %91 = vector.load %arg4[%c7_90, %c0_91, %c0_92] : memref<9x32x32xf32, #tpu.memory_space<vmem>>, vector<1x32x32xf32>
    %92 = vector.shape_cast %91 : vector<1x32x32xf32> to vector<32x32xf32>
    %cst_93 = arith.constant dense<0.000000e+00> : vector<8x32xf32>
    %93 = tpu.matmul %42, %92, %cst_93 {dimension_numbers = #tpu.dot_dimension_numbers<[1], [0], [0], [1], [0, 0, 1, 1], [], []>} : vector<8x32xf32>, vector<32x32xf32>, vector<8x32xf32> -> vector<8x32xf32>
    %c7_94 = arith.constant 7 : index
    %c0_95 = arith.constant 0 : index
    %c0_96 = arith.constant 0 : index
    %94 = vector.load %arg5[%c7_94, %c0_95, %c0_96] : memref<9x8x8xf32, #tpu.memory_space<vmem>>, vector<1x8x8xf32>
    %95 = vector.shape_cast %94 : vector<1x8x8xf32> to vector<8x8xf32>
    %cst_97 = arith.constant dense<0.000000e+00> : vector<8x32xf32>
    %96 = tpu.matmul %95, %93, %cst_97 {dimension_numbers = #tpu.dot_dimension_numbers<[1], [0], [0], [1], [0, 0, 1, 1], [], []>} : vector<8x8xf32>, vector<8x32xf32>, vector<8x32xf32> -> vector<8x32xf32>
    %97 = arith.addf %90, %96 : vector<8x32xf32>
    %c8_98 = arith.constant 8 : index
    %c0_99 = arith.constant 0 : index
    %c0_100 = arith.constant 0 : index
    %98 = vector.load %arg4[%c8_98, %c0_99, %c0_100] : memref<9x32x32xf32, #tpu.memory_space<vmem>>, vector<1x32x32xf32>
    %99 = vector.shape_cast %98 : vector<1x32x32xf32> to vector<32x32xf32>
    %cst_101 = arith.constant dense<0.000000e+00> : vector<8x32xf32>
    %100 = tpu.matmul %42, %99, %cst_101 {dimension_numbers = #tpu.dot_dimension_numbers<[1], [0], [0], [1], [0, 0, 1, 1], [], []>} : vector<8x32xf32>, vector<32x32xf32>, vector<8x32xf32> -> vector<8x32xf32>
    %c8_102 = arith.constant 8 : index
    %c0_103 = arith.constant 0 : index
    %c0_104 = arith.constant 0 : index
    %101 = vector.load %arg5[%c8_102, %c0_103, %c0_104] : memref<9x8x8xf32, #tpu.memory_space<vmem>>, vector<1x8x8xf32>
    %102 = vector.shape_cast %101 : vector<1x8x8xf32> to vector<8x8xf32>
    %cst_105 = arith.constant dense<0.000000e+00> : vector<8x32xf32>
    %103 = tpu.matmul %102, %100, %cst_105 {dimension_numbers = #tpu.dot_dimension_numbers<[1], [0], [0], [1], [0, 0, 1, 1], [], []>} : vector<8x8xf32>, vector<8x32xf32>, vector<8x32xf32> -> vector<8x32xf32>
    %104 = arith.addf %97, %103 : vector<8x32xf32>
    %c0_106 = arith.constant 0 : index
    %c0_107 = arith.constant 0 : index
    %105 = vector.load %arg6[%c0_106, %c0_107] : memref<8x1xf32, #tpu.memory_space<vmem>>, vector<8x1xf32>
    %106 = vector.broadcast %105 : vector<8x1xf32> to vector<8x32xf32>
    %107 = arith.addf %104, %106 : vector<8x32xf32>
    %cst_108 = arith.constant 0.000000e+00 : f32
    %108 = vector.broadcast %cst_108 : f32 to vector<8x32xf32>
    %109 = arith.maximumf %107, %108 : vector<8x32xf32>
    %c0_109 = arith.constant 0 : index
    %c0_110 = arith.constant 0 : index
    %c0_111 = arith.constant 0 : index
    %110 = vector.load %arg7[%c0_109, %c0_110, %c0_111] : memref<9x32x32xf32, #tpu.memory_space<vmem>>, vector<1x32x32xf32>
    %111 = vector.shape_cast %110 : vector<1x32x32xf32> to vector<32x32xf32>
    %cst_112 = arith.constant dense<0.000000e+00> : vector<8x32xf32>
    %112 = tpu.matmul %109, %111, %cst_112 {dimension_numbers = #tpu.dot_dimension_numbers<[1], [0], [0], [1], [0, 0, 1, 1], [], []>} : vector<8x32xf32>, vector<32x32xf32>, vector<8x32xf32> -> vector<8x32xf32>
    %c0_113 = arith.constant 0 : index
    %c0_114 = arith.constant 0 : index
    %c0_115 = arith.constant 0 : index
    %113 = vector.load %arg8[%c0_113, %c0_114, %c0_115] : memref<9x8x8xf32, #tpu.memory_space<vmem>>, vector<1x8x8xf32>
    %114 = vector.shape_cast %113 : vector<1x8x8xf32> to vector<8x8xf32>
    %cst_116 = arith.constant dense<0.000000e+00> : vector<8x32xf32>
    %115 = tpu.matmul %114, %112, %cst_116 {dimension_numbers = #tpu.dot_dimension_numbers<[1], [0], [0], [1], [0, 0, 1, 1], [], []>} : vector<8x8xf32>, vector<8x32xf32>, vector<8x32xf32> -> vector<8x32xf32>
    %c1_117 = arith.constant 1 : index
    %c0_118 = arith.constant 0 : index
    %c0_119 = arith.constant 0 : index
    %116 = vector.load %arg7[%c1_117, %c0_118, %c0_119] : memref<9x32x32xf32, #tpu.memory_space<vmem>>, vector<1x32x32xf32>
    %117 = vector.shape_cast %116 : vector<1x32x32xf32> to vector<32x32xf32>
    %cst_120 = arith.constant dense<0.000000e+00> : vector<8x32xf32>
    %118 = tpu.matmul %109, %117, %cst_120 {dimension_numbers = #tpu.dot_dimension_numbers<[1], [0], [0], [1], [0, 0, 1, 1], [], []>} : vector<8x32xf32>, vector<32x32xf32>, vector<8x32xf32> -> vector<8x32xf32>
    %c1_121 = arith.constant 1 : index
    %c0_122 = arith.constant 0 : index
    %c0_123 = arith.constant 0 : index
    %119 = vector.load %arg8[%c1_121, %c0_122, %c0_123] : memref<9x8x8xf32, #tpu.memory_space<vmem>>, vector<1x8x8xf32>
    %120 = vector.shape_cast %119 : vector<1x8x8xf32> to vector<8x8xf32>
    %cst_124 = arith.constant dense<0.000000e+00> : vector<8x32xf32>
    %121 = tpu.matmul %120, %118, %cst_124 {dimension_numbers = #tpu.dot_dimension_numbers<[1], [0], [0], [1], [0, 0, 1, 1], [], []>} : vector<8x8xf32>, vector<8x32xf32>, vector<8x32xf32> -> vector<8x32xf32>
    %122 = arith.addf %115, %121 : vector<8x32xf32>
    %c2_125 = arith.constant 2 : index
    %c0_126 = arith.constant 0 : index
    %c0_127 = arith.constant 0 : index
    %123 = vector.load %arg7[%c2_125, %c0_126, %c0_127] : memref<9x32x32xf32, #tpu.memory_space<vmem>>, vector<1x32x32xf32>
    %124 = vector.shape_cast %123 : vector<1x32x32xf32> to vector<32x32xf32>
    %cst_128 = arith.constant dense<0.000000e+00> : vector<8x32xf32>
    %125 = tpu.matmul %109, %124, %cst_128 {dimension_numbers = #tpu.dot_dimension_numbers<[1], [0], [0], [1], [0, 0, 1, 1], [], []>} : vector<8x32xf32>, vector<32x32xf32>, vector<8x32xf32> -> vector<8x32xf32>
    %c2_129 = arith.constant 2 : index
    %c0_130 = arith.constant 0 : index
    %c0_131 = arith.constant 0 : index
    %126 = vector.load %arg8[%c2_129, %c0_130, %c0_131] : memref<9x8x8xf32, #tpu.memory_space<vmem>>, vector<1x8x8xf32>
    %127 = vector.shape_cast %126 : vector<1x8x8xf32> to vector<8x8xf32>
    %cst_132 = arith.constant dense<0.000000e+00> : vector<8x32xf32>
    %128 = tpu.matmul %127, %125, %cst_132 {dimension_numbers = #tpu.dot_dimension_numbers<[1], [0], [0], [1], [0, 0, 1, 1], [], []>} : vector<8x8xf32>, vector<8x32xf32>, vector<8x32xf32> -> vector<8x32xf32>
    %129 = arith.addf %122, %128 : vector<8x32xf32>
    %c3_133 = arith.constant 3 : index
    %c0_134 = arith.constant 0 : index
    %c0_135 = arith.constant 0 : index
    %130 = vector.load %arg7[%c3_133, %c0_134, %c0_135] : memref<9x32x32xf32, #tpu.memory_space<vmem>>, vector<1x32x32xf32>
    %131 = vector.shape_cast %130 : vector<1x32x32xf32> to vector<32x32xf32>
    %cst_136 = arith.constant dense<0.000000e+00> : vector<8x32xf32>
    %132 = tpu.matmul %109, %131, %cst_136 {dimension_numbers = #tpu.dot_dimension_numbers<[1], [0], [0], [1], [0, 0, 1, 1], [], []>} : vector<8x32xf32>, vector<32x32xf32>, vector<8x32xf32> -> vector<8x32xf32>
    %c3_137 = arith.constant 3 : index
    %c0_138 = arith.constant 0 : index
    %c0_139 = arith.constant 0 : index
    %133 = vector.load %arg8[%c3_137, %c0_138, %c0_139] : memref<9x8x8xf32, #tpu.memory_space<vmem>>, vector<1x8x8xf32>
    %134 = vector.shape_cast %133 : vector<1x8x8xf32> to vector<8x8xf32>
    %cst_140 = arith.constant dense<0.000000e+00> : vector<8x32xf32>
    %135 = tpu.matmul %134, %132, %cst_140 {dimension_numbers = #tpu.dot_dimension_numbers<[1], [0], [0], [1], [0, 0, 1, 1], [], []>} : vector<8x8xf32>, vector<8x32xf32>, vector<8x32xf32> -> vector<8x32xf32>
    %136 = arith.addf %129, %135 : vector<8x32xf32>
    %c4_141 = arith.constant 4 : index
    %c0_142 = arith.constant 0 : index
    %c0_143 = arith.constant 0 : index
    %137 = vector.load %arg7[%c4_141, %c0_142, %c0_143] : memref<9x32x32xf32, #tpu.memory_space<vmem>>, vector<1x32x32xf32>
    %138 = vector.shape_cast %137 : vector<1x32x32xf32> to vector<32x32xf32>
    %cst_144 = arith.constant dense<0.000000e+00> : vector<8x32xf32>
    %139 = tpu.matmul %109, %138, %cst_144 {dimension_numbers = #tpu.dot_dimension_numbers<[1], [0], [0], [1], [0, 0, 1, 1], [], []>} : vector<8x32xf32>, vector<32x32xf32>, vector<8x32xf32> -> vector<8x32xf32>
    %c4_145 = arith.constant 4 : index
    %c0_146 = arith.constant 0 : index
    %c0_147 = arith.constant 0 : index
    %140 = vector.load %arg8[%c4_145, %c0_146, %c0_147] : memref<9x8x8xf32, #tpu.memory_space<vmem>>, vector<1x8x8xf32>
    %141 = vector.shape_cast %140 : vector<1x8x8xf32> to vector<8x8xf32>
    %cst_148 = arith.constant dense<0.000000e+00> : vector<8x32xf32>
    %142 = tpu.matmul %141, %139, %cst_148 {dimension_numbers = #tpu.dot_dimension_numbers<[1], [0], [0], [1], [0, 0, 1, 1], [], []>} : vector<8x8xf32>, vector<8x32xf32>, vector<8x32xf32> -> vector<8x32xf32>
    %143 = arith.addf %136, %142 : vector<8x32xf32>
    %c5_149 = arith.constant 5 : index
    %c0_150 = arith.constant 0 : index
    %c0_151 = arith.constant 0 : index
    %144 = vector.load %arg7[%c5_149, %c0_150, %c0_151] : memref<9x32x32xf32, #tpu.memory_space<vmem>>, vector<1x32x32xf32>
    %145 = vector.shape_cast %144 : vector<1x32x32xf32> to vector<32x32xf32>
    %cst_152 = arith.constant dense<0.000000e+00> : vector<8x32xf32>
    %146 = tpu.matmul %109, %145, %cst_152 {dimension_numbers = #tpu.dot_dimension_numbers<[1], [0], [0], [1], [0, 0, 1, 1], [], []>} : vector<8x32xf32>, vector<32x32xf32>, vector<8x32xf32> -> vector<8x32xf32>
    %c5_153 = arith.constant 5 : index
    %c0_154 = arith.constant 0 : index
    %c0_155 = arith.constant 0 : index
    %147 = vector.load %arg8[%c5_153, %c0_154, %c0_155] : memref<9x8x8xf32, #tpu.memory_space<vmem>>, vector<1x8x8xf32>
    %148 = vector.shape_cast %147 : vector<1x8x8xf32> to vector<8x8xf32>
    %cst_156 = arith.constant dense<0.000000e+00> : vector<8x32xf32>
    %149 = tpu.matmul %148, %146, %cst_156 {dimension_numbers = #tpu.dot_dimension_numbers<[1], [0], [0], [1], [0, 0, 1, 1], [], []>} : vector<8x8xf32>, vector<8x32xf32>, vector<8x32xf32> -> vector<8x32xf32>
    %150 = arith.addf %143, %149 : vector<8x32xf32>
    %c6_157 = arith.constant 6 : index
    %c0_158 = arith.constant 0 : index
    %c0_159 = arith.constant 0 : index
    %151 = vector.load %arg7[%c6_157, %c0_158, %c0_159] : memref<9x32x32xf32, #tpu.memory_space<vmem>>, vector<1x32x32xf32>
    %152 = vector.shape_cast %151 : vector<1x32x32xf32> to vector<32x32xf32>
    %cst_160 = arith.constant dense<0.000000e+00> : vector<8x32xf32>
    %153 = tpu.matmul %109, %152, %cst_160 {dimension_numbers = #tpu.dot_dimension_numbers<[1], [0], [0], [1], [0, 0, 1, 1], [], []>} : vector<8x32xf32>, vector<32x32xf32>, vector<8x32xf32> -> vector<8x32xf32>
    %c6_161 = arith.constant 6 : index
    %c0_162 = arith.constant 0 : index
    %c0_163 = arith.constant 0 : index
    %154 = vector.load %arg8[%c6_161, %c0_162, %c0_163] : memref<9x8x8xf32, #tpu.memory_space<vmem>>, vector<1x8x8xf32>
    %155 = vector.shape_cast %154 : vector<1x8x8xf32> to vector<8x8xf32>
    %cst_164 = arith.constant dense<0.000000e+00> : vector<8x32xf32>
    %156 = tpu.matmul %155, %153, %cst_164 {dimension_numbers = #tpu.dot_dimension_numbers<[1], [0], [0], [1], [0, 0, 1, 1], [], []>} : vector<8x8xf32>, vector<8x32xf32>, vector<8x32xf32> -> vector<8x32xf32>
    %157 = arith.addf %150, %156 : vector<8x32xf32>
    %c7_165 = arith.constant 7 : index
    %c0_166 = arith.constant 0 : index
    %c0_167 = arith.constant 0 : index
    %158 = vector.load %arg7[%c7_165, %c0_166, %c0_167] : memref<9x32x32xf32, #tpu.memory_space<vmem>>, vector<1x32x32xf32>
    %159 = vector.shape_cast %158 : vector<1x32x32xf32> to vector<32x32xf32>
    %cst_168 = arith.constant dense<0.000000e+00> : vector<8x32xf32>
    %160 = tpu.matmul %109, %159, %cst_168 {dimension_numbers = #tpu.dot_dimension_numbers<[1], [0], [0], [1], [0, 0, 1, 1], [], []>} : vector<8x32xf32>, vector<32x32xf32>, vector<8x32xf32> -> vector<8x32xf32>
    %c7_169 = arith.constant 7 : index
    %c0_170 = arith.constant 0 : index
    %c0_171 = arith.constant 0 : index
    %161 = vector.load %arg8[%c7_169, %c0_170, %c0_171] : memref<9x8x8xf32, #tpu.memory_space<vmem>>, vector<1x8x8xf32>
    %162 = vector.shape_cast %161 : vector<1x8x8xf32> to vector<8x8xf32>
    %cst_172 = arith.constant dense<0.000000e+00> : vector<8x32xf32>
    %163 = tpu.matmul %162, %160, %cst_172 {dimension_numbers = #tpu.dot_dimension_numbers<[1], [0], [0], [1], [0, 0, 1, 1], [], []>} : vector<8x8xf32>, vector<8x32xf32>, vector<8x32xf32> -> vector<8x32xf32>
    %164 = arith.addf %157, %163 : vector<8x32xf32>
    %c8_173 = arith.constant 8 : index
    %c0_174 = arith.constant 0 : index
    %c0_175 = arith.constant 0 : index
    %165 = vector.load %arg7[%c8_173, %c0_174, %c0_175] : memref<9x32x32xf32, #tpu.memory_space<vmem>>, vector<1x32x32xf32>
    %166 = vector.shape_cast %165 : vector<1x32x32xf32> to vector<32x32xf32>
    %cst_176 = arith.constant dense<0.000000e+00> : vector<8x32xf32>
    %167 = tpu.matmul %109, %166, %cst_176 {dimension_numbers = #tpu.dot_dimension_numbers<[1], [0], [0], [1], [0, 0, 1, 1], [], []>} : vector<8x32xf32>, vector<32x32xf32>, vector<8x32xf32> -> vector<8x32xf32>
    %c8_177 = arith.constant 8 : index
    %c0_178 = arith.constant 0 : index
    %c0_179 = arith.constant 0 : index
    %168 = vector.load %arg8[%c8_177, %c0_178, %c0_179] : memref<9x8x8xf32, #tpu.memory_space<vmem>>, vector<1x8x8xf32>
    %169 = vector.shape_cast %168 : vector<1x8x8xf32> to vector<8x8xf32>
    %cst_180 = arith.constant dense<0.000000e+00> : vector<8x32xf32>
    %170 = tpu.matmul %169, %167, %cst_180 {dimension_numbers = #tpu.dot_dimension_numbers<[1], [0], [0], [1], [0, 0, 1, 1], [], []>} : vector<8x8xf32>, vector<8x32xf32>, vector<8x32xf32> -> vector<8x32xf32>
    %171 = arith.addf %164, %170 : vector<8x32xf32>
    %c0_181 = arith.constant 0 : index
    %c0_182 = arith.constant 0 : index
    %172 = vector.load %arg9[%c0_181, %c0_182] : memref<8x1xf32, #tpu.memory_space<vmem>>, vector<8x1xf32>
    %173 = vector.broadcast %172 : vector<8x1xf32> to vector<8x32xf32>
    %174 = arith.addf %171, %173 : vector<8x32xf32>
    %175 = arith.addf %174, %42 : vector<8x32xf32>
    %cst_183 = arith.constant 0.000000e+00 : f32
    %176 = vector.broadcast %cst_183 : f32 to vector<8x32xf32>
    %177 = arith.maximumf %175, %176 : vector<8x32xf32>
    %c0_184 = arith.constant 0 : index
    %c0_185 = arith.constant 0 : index
    %c0_186 = arith.constant 0 : index
    %178 = vector.load %arg10[%c0_184, %c0_185, %c0_186] : memref<9x32x8xf32, #tpu.memory_space<vmem>>, vector<1x32x8xf32>
    %179 = vector.shape_cast %178 : vector<1x32x8xf32> to vector<32x8xf32>
    %cst_187 = arith.constant dense<0.000000e+00> : vector<8x8xf32>
    %180 = tpu.matmul %177, %179, %cst_187 {dimension_numbers = #tpu.dot_dimension_numbers<[1], [0], [0], [1], [0, 0, 1, 1], [], []>} : vector<8x32xf32>, vector<32x8xf32>, vector<8x8xf32> -> vector<8x8xf32>
    %c0_188 = arith.constant 0 : index
    %c0_189 = arith.constant 0 : index
    %c0_190 = arith.constant 0 : index
    %181 = vector.load %arg11[%c0_188, %c0_189, %c0_190] : memref<9x16x8xf32, #tpu.memory_space<vmem>>, vector<1x16x8xf32>
    %182 = vector.shape_cast %181 : vector<1x16x8xf32> to vector<16x8xf32>
    %cst_191 = arith.constant dense<0.000000e+00> : vector<16x8xf32>
    %183 = tpu.matmul %182, %180, %cst_191 {dimension_numbers = #tpu.dot_dimension_numbers<[1], [0], [0], [1], [0, 0, 1, 1], [], []>} : vector<16x8xf32>, vector<8x8xf32>, vector<16x8xf32> -> vector<16x8xf32>
    %c1_192 = arith.constant 1 : index
    %c0_193 = arith.constant 0 : index
    %c0_194 = arith.constant 0 : index
    %184 = vector.load %arg10[%c1_192, %c0_193, %c0_194] : memref<9x32x8xf32, #tpu.memory_space<vmem>>, vector<1x32x8xf32>
    %185 = vector.shape_cast %184 : vector<1x32x8xf32> to vector<32x8xf32>
    %cst_195 = arith.constant dense<0.000000e+00> : vector<8x8xf32>
    %186 = tpu.matmul %177, %185, %cst_195 {dimension_numbers = #tpu.dot_dimension_numbers<[1], [0], [0], [1], [0, 0, 1, 1], [], []>} : vector<8x32xf32>, vector<32x8xf32>, vector<8x8xf32> -> vector<8x8xf32>
    %c1_196 = arith.constant 1 : index
    %c0_197 = arith.constant 0 : index
    %c0_198 = arith.constant 0 : index
    %187 = vector.load %arg11[%c1_196, %c0_197, %c0_198] : memref<9x16x8xf32, #tpu.memory_space<vmem>>, vector<1x16x8xf32>
    %188 = vector.shape_cast %187 : vector<1x16x8xf32> to vector<16x8xf32>
    %cst_199 = arith.constant dense<0.000000e+00> : vector<16x8xf32>
    %189 = tpu.matmul %188, %186, %cst_199 {dimension_numbers = #tpu.dot_dimension_numbers<[1], [0], [0], [1], [0, 0, 1, 1], [], []>} : vector<16x8xf32>, vector<8x8xf32>, vector<16x8xf32> -> vector<16x8xf32>
    %190 = arith.addf %183, %189 : vector<16x8xf32>
    %c2_200 = arith.constant 2 : index
    %c0_201 = arith.constant 0 : index
    %c0_202 = arith.constant 0 : index
    %191 = vector.load %arg10[%c2_200, %c0_201, %c0_202] : memref<9x32x8xf32, #tpu.memory_space<vmem>>, vector<1x32x8xf32>
    %192 = vector.shape_cast %191 : vector<1x32x8xf32> to vector<32x8xf32>
    %cst_203 = arith.constant dense<0.000000e+00> : vector<8x8xf32>
    %193 = tpu.matmul %177, %192, %cst_203 {dimension_numbers = #tpu.dot_dimension_numbers<[1], [0], [0], [1], [0, 0, 1, 1], [], []>} : vector<8x32xf32>, vector<32x8xf32>, vector<8x8xf32> -> vector<8x8xf32>
    %c2_204 = arith.constant 2 : index
    %c0_205 = arith.constant 0 : index
    %c0_206 = arith.constant 0 : index
    %194 = vector.load %arg11[%c2_204, %c0_205, %c0_206] : memref<9x16x8xf32, #tpu.memory_space<vmem>>, vector<1x16x8xf32>
    %195 = vector.shape_cast %194 : vector<1x16x8xf32> to vector<16x8xf32>
    %cst_207 = arith.constant dense<0.000000e+00> : vector<16x8xf32>
    %196 = tpu.matmul %195, %193, %cst_207 {dimension_numbers = #tpu.dot_dimension_numbers<[1], [0], [0], [1], [0, 0, 1, 1], [], []>} : vector<16x8xf32>, vector<8x8xf32>, vector<16x8xf32> -> vector<16x8xf32>
    %197 = arith.addf %190, %196 : vector<16x8xf32>
    %c3_208 = arith.constant 3 : index
    %c0_209 = arith.constant 0 : index
    %c0_210 = arith.constant 0 : index
    %198 = vector.load %arg10[%c3_208, %c0_209, %c0_210] : memref<9x32x8xf32, #tpu.memory_space<vmem>>, vector<1x32x8xf32>
    %199 = vector.shape_cast %198 : vector<1x32x8xf32> to vector<32x8xf32>
    %cst_211 = arith.constant dense<0.000000e+00> : vector<8x8xf32>
    %200 = tpu.matmul %177, %199, %cst_211 {dimension_numbers = #tpu.dot_dimension_numbers<[1], [0], [0], [1], [0, 0, 1, 1], [], []>} : vector<8x32xf32>, vector<32x8xf32>, vector<8x8xf32> -> vector<8x8xf32>
    %c3_212 = arith.constant 3 : index
    %c0_213 = arith.constant 0 : index
    %c0_214 = arith.constant 0 : index
    %201 = vector.load %arg11[%c3_212, %c0_213, %c0_214] : memref<9x16x8xf32, #tpu.memory_space<vmem>>, vector<1x16x8xf32>
    %202 = vector.shape_cast %201 : vector<1x16x8xf32> to vector<16x8xf32>
    %cst_215 = arith.constant dense<0.000000e+00> : vector<16x8xf32>
    %203 = tpu.matmul %202, %200, %cst_215 {dimension_numbers = #tpu.dot_dimension_numbers<[1], [0], [0], [1], [0, 0, 1, 1], [], []>} : vector<16x8xf32>, vector<8x8xf32>, vector<16x8xf32> -> vector<16x8xf32>
    %204 = arith.addf %197, %203 : vector<16x8xf32>
    %c4_216 = arith.constant 4 : index
    %c0_217 = arith.constant 0 : index
    %c0_218 = arith.constant 0 : index
    %205 = vector.load %arg10[%c4_216, %c0_217, %c0_218] : memref<9x32x8xf32, #tpu.memory_space<vmem>>, vector<1x32x8xf32>
    %206 = vector.shape_cast %205 : vector<1x32x8xf32> to vector<32x8xf32>
    %cst_219 = arith.constant dense<0.000000e+00> : vector<8x8xf32>
    %207 = tpu.matmul %177, %206, %cst_219 {dimension_numbers = #tpu.dot_dimension_numbers<[1], [0], [0], [1], [0, 0, 1, 1], [], []>} : vector<8x32xf32>, vector<32x8xf32>, vector<8x8xf32> -> vector<8x8xf32>
    %c4_220 = arith.constant 4 : index
    %c0_221 = arith.constant 0 : index
    %c0_222 = arith.constant 0 : index
    %208 = vector.load %arg11[%c4_220, %c0_221, %c0_222] : memref<9x16x8xf32, #tpu.memory_space<vmem>>, vector<1x16x8xf32>
    %209 = vector.shape_cast %208 : vector<1x16x8xf32> to vector<16x8xf32>
    %cst_223 = arith.constant dense<0.000000e+00> : vector<16x8xf32>
    %210 = tpu.matmul %209, %207, %cst_223 {dimension_numbers = #tpu.dot_dimension_numbers<[1], [0], [0], [1], [0, 0, 1, 1], [], []>} : vector<16x8xf32>, vector<8x8xf32>, vector<16x8xf32> -> vector<16x8xf32>
    %211 = arith.addf %204, %210 : vector<16x8xf32>
    %c5_224 = arith.constant 5 : index
    %c0_225 = arith.constant 0 : index
    %c0_226 = arith.constant 0 : index
    %212 = vector.load %arg10[%c5_224, %c0_225, %c0_226] : memref<9x32x8xf32, #tpu.memory_space<vmem>>, vector<1x32x8xf32>
    %213 = vector.shape_cast %212 : vector<1x32x8xf32> to vector<32x8xf32>
    %cst_227 = arith.constant dense<0.000000e+00> : vector<8x8xf32>
    %214 = tpu.matmul %177, %213, %cst_227 {dimension_numbers = #tpu.dot_dimension_numbers<[1], [0], [0], [1], [0, 0, 1, 1], [], []>} : vector<8x32xf32>, vector<32x8xf32>, vector<8x8xf32> -> vector<8x8xf32>
    %c5_228 = arith.constant 5 : index
    %c0_229 = arith.constant 0 : index
    %c0_230 = arith.constant 0 : index
    %215 = vector.load %arg11[%c5_228, %c0_229, %c0_230] : memref<9x16x8xf32, #tpu.memory_space<vmem>>, vector<1x16x8xf32>
    %216 = vector.shape_cast %215 : vector<1x16x8xf32> to vector<16x8xf32>
    %cst_231 = arith.constant dense<0.000000e+00> : vector<16x8xf32>
    %217 = tpu.matmul %216, %214, %cst_231 {dimension_numbers = #tpu.dot_dimension_numbers<[1], [0], [0], [1], [0, 0, 1, 1], [], []>} : vector<16x8xf32>, vector<8x8xf32>, vector<16x8xf32> -> vector<16x8xf32>
    %218 = arith.addf %211, %217 : vector<16x8xf32>
    %c6_232 = arith.constant 6 : index
    %c0_233 = arith.constant 0 : index
    %c0_234 = arith.constant 0 : index
    %219 = vector.load %arg10[%c6_232, %c0_233, %c0_234] : memref<9x32x8xf32, #tpu.memory_space<vmem>>, vector<1x32x8xf32>
    %220 = vector.shape_cast %219 : vector<1x32x8xf32> to vector<32x8xf32>
    %cst_235 = arith.constant dense<0.000000e+00> : vector<8x8xf32>
    %221 = tpu.matmul %177, %220, %cst_235 {dimension_numbers = #tpu.dot_dimension_numbers<[1], [0], [0], [1], [0, 0, 1, 1], [], []>} : vector<8x32xf32>, vector<32x8xf32>, vector<8x8xf32> -> vector<8x8xf32>
    %c6_236 = arith.constant 6 : index
    %c0_237 = arith.constant 0 : index
    %c0_238 = arith.constant 0 : index
    %222 = vector.load %arg11[%c6_236, %c0_237, %c0_238] : memref<9x16x8xf32, #tpu.memory_space<vmem>>, vector<1x16x8xf32>
    %223 = vector.shape_cast %222 : vector<1x16x8xf32> to vector<16x8xf32>
    %cst_239 = arith.constant dense<0.000000e+00> : vector<16x8xf32>
    %224 = tpu.matmul %223, %221, %cst_239 {dimension_numbers = #tpu.dot_dimension_numbers<[1], [0], [0], [1], [0, 0, 1, 1], [], []>} : vector<16x8xf32>, vector<8x8xf32>, vector<16x8xf32> -> vector<16x8xf32>
    %225 = arith.addf %218, %224 : vector<16x8xf32>
    %c7_240 = arith.constant 7 : index
    %c0_241 = arith.constant 0 : index
    %c0_242 = arith.constant 0 : index
    %226 = vector.load %arg10[%c7_240, %c0_241, %c0_242] : memref<9x32x8xf32, #tpu.memory_space<vmem>>, vector<1x32x8xf32>
    %227 = vector.shape_cast %226 : vector<1x32x8xf32> to vector<32x8xf32>
    %cst_243 = arith.constant dense<0.000000e+00> : vector<8x8xf32>
    %228 = tpu.matmul %177, %227, %cst_243 {dimension_numbers = #tpu.dot_dimension_numbers<[1], [0], [0], [1], [0, 0, 1, 1], [], []>} : vector<8x32xf32>, vector<32x8xf32>, vector<8x8xf32> -> vector<8x8xf32>
    %c7_244 = arith.constant 7 : index
    %c0_245 = arith.constant 0 : index
    %c0_246 = arith.constant 0 : index
    %229 = vector.load %arg11[%c7_244, %c0_245, %c0_246] : memref<9x16x8xf32, #tpu.memory_space<vmem>>, vector<1x16x8xf32>
    %230 = vector.shape_cast %229 : vector<1x16x8xf32> to vector<16x8xf32>
    %cst_247 = arith.constant dense<0.000000e+00> : vector<16x8xf32>
    %231 = tpu.matmul %230, %228, %cst_247 {dimension_numbers = #tpu.dot_dimension_numbers<[1], [0], [0], [1], [0, 0, 1, 1], [], []>} : vector<16x8xf32>, vector<8x8xf32>, vector<16x8xf32> -> vector<16x8xf32>
    %232 = arith.addf %225, %231 : vector<16x8xf32>
    %c8_248 = arith.constant 8 : index
    %c0_249 = arith.constant 0 : index
    %c0_250 = arith.constant 0 : index
    %233 = vector.load %arg10[%c8_248, %c0_249, %c0_250] : memref<9x32x8xf32, #tpu.memory_space<vmem>>, vector<1x32x8xf32>
    %234 = vector.shape_cast %233 : vector<1x32x8xf32> to vector<32x8xf32>
    %cst_251 = arith.constant dense<0.000000e+00> : vector<8x8xf32>
    %235 = tpu.matmul %177, %234, %cst_251 {dimension_numbers = #tpu.dot_dimension_numbers<[1], [0], [0], [1], [0, 0, 1, 1], [], []>} : vector<8x32xf32>, vector<32x8xf32>, vector<8x8xf32> -> vector<8x8xf32>
    %c8_252 = arith.constant 8 : index
    %c0_253 = arith.constant 0 : index
    %c0_254 = arith.constant 0 : index
    %236 = vector.load %arg11[%c8_252, %c0_253, %c0_254] : memref<9x16x8xf32, #tpu.memory_space<vmem>>, vector<1x16x8xf32>
    %237 = vector.shape_cast %236 : vector<1x16x8xf32> to vector<16x8xf32>
    %cst_255 = arith.constant dense<0.000000e+00> : vector<16x8xf32>
    %238 = tpu.matmul %237, %235, %cst_255 {dimension_numbers = #tpu.dot_dimension_numbers<[1], [0], [0], [1], [0, 0, 1, 1], [], []>} : vector<16x8xf32>, vector<8x8xf32>, vector<16x8xf32> -> vector<16x8xf32>
    %239 = arith.addf %232, %238 : vector<16x8xf32>
    %c0_256 = arith.constant 0 : index
    %c0_257 = arith.constant 0 : index
    %240 = vector.load %arg12[%c0_256, %c0_257] : memref<16x1xf32, #tpu.memory_space<vmem>>, vector<16x1xf32>
    %241 = vector.broadcast %240 : vector<16x1xf32> to vector<16x8xf32>
    %242 = arith.addf %239, %241 : vector<16x8xf32>
    %cst_258 = arith.constant 0.000000e+00 : f32
    %243 = vector.broadcast %cst_258 : f32 to vector<16x8xf32>
    %244 = arith.maximumf %242, %243 : vector<16x8xf32>
    %c0_259 = arith.constant 0 : index
    %c0_260 = arith.constant 0 : index
    %c0_261 = arith.constant 0 : index
    %245 = vector.load %arg13[%c0_259, %c0_260, %c0_261] : memref<9x8x8xf32, #tpu.memory_space<vmem>>, vector<1x8x8xf32>
    %246 = vector.shape_cast %245 : vector<1x8x8xf32> to vector<8x8xf32>
    %cst_262 = arith.constant dense<0.000000e+00> : vector<16x8xf32>
    %247 = tpu.matmul %244, %246, %cst_262 {dimension_numbers = #tpu.dot_dimension_numbers<[1], [0], [0], [1], [0, 0, 1, 1], [], []>} : vector<16x8xf32>, vector<8x8xf32>, vector<16x8xf32> -> vector<16x8xf32>
    %c0_263 = arith.constant 0 : index
    %c0_264 = arith.constant 0 : index
    %c0_265 = arith.constant 0 : index
    %248 = vector.load %arg14[%c0_263, %c0_264, %c0_265] : memref<9x16x16xf32, #tpu.memory_space<vmem>>, vector<1x16x16xf32>
    %249 = vector.shape_cast %248 : vector<1x16x16xf32> to vector<16x16xf32>
    %cst_266 = arith.constant dense<0.000000e+00> : vector<16x8xf32>
    %250 = tpu.matmul %249, %247, %cst_266 {dimension_numbers = #tpu.dot_dimension_numbers<[1], [0], [0], [1], [0, 0, 1, 1], [], []>} : vector<16x16xf32>, vector<16x8xf32>, vector<16x8xf32> -> vector<16x8xf32>
    %c1_267 = arith.constant 1 : index
    %c0_268 = arith.constant 0 : index
    %c0_269 = arith.constant 0 : index
    %251 = vector.load %arg13[%c1_267, %c0_268, %c0_269] : memref<9x8x8xf32, #tpu.memory_space<vmem>>, vector<1x8x8xf32>
    %252 = vector.shape_cast %251 : vector<1x8x8xf32> to vector<8x8xf32>
    %cst_270 = arith.constant dense<0.000000e+00> : vector<16x8xf32>
    %253 = tpu.matmul %244, %252, %cst_270 {dimension_numbers = #tpu.dot_dimension_numbers<[1], [0], [0], [1], [0, 0, 1, 1], [], []>} : vector<16x8xf32>, vector<8x8xf32>, vector<16x8xf32> -> vector<16x8xf32>
    %c1_271 = arith.constant 1 : index
    %c0_272 = arith.constant 0 : index
    %c0_273 = arith.constant 0 : index
    %254 = vector.load %arg14[%c1_271, %c0_272, %c0_273] : memref<9x16x16xf32, #tpu.memory_space<vmem>>, vector<1x16x16xf32>
    %255 = vector.shape_cast %254 : vector<1x16x16xf32> to vector<16x16xf32>
    %cst_274 = arith.constant dense<0.000000e+00> : vector<16x8xf32>
    %256 = tpu.matmul %255, %253, %cst_274 {dimension_numbers = #tpu.dot_dimension_numbers<[1], [0], [0], [1], [0, 0, 1, 1], [], []>} : vector<16x16xf32>, vector<16x8xf32>, vector<16x8xf32> -> vector<16x8xf32>
    %257 = arith.addf %250, %256 : vector<16x8xf32>
    %c2_275 = arith.constant 2 : index
    %c0_276 = arith.constant 0 : index
    %c0_277 = arith.constant 0 : index
    %258 = vector.load %arg13[%c2_275, %c0_276, %c0_277] : memref<9x8x8xf32, #tpu.memory_space<vmem>>, vector<1x8x8xf32>
    %259 = vector.shape_cast %258 : vector<1x8x8xf32> to vector<8x8xf32>
    %cst_278 = arith.constant dense<0.000000e+00> : vector<16x8xf32>
    %260 = tpu.matmul %244, %259, %cst_278 {dimension_numbers = #tpu.dot_dimension_numbers<[1], [0], [0], [1], [0, 0, 1, 1], [], []>} : vector<16x8xf32>, vector<8x8xf32>, vector<16x8xf32> -> vector<16x8xf32>
    %c2_279 = arith.constant 2 : index
    %c0_280 = arith.constant 0 : index
    %c0_281 = arith.constant 0 : index
    %261 = vector.load %arg14[%c2_279, %c0_280, %c0_281] : memref<9x16x16xf32, #tpu.memory_space<vmem>>, vector<1x16x16xf32>
    %262 = vector.shape_cast %261 : vector<1x16x16xf32> to vector<16x16xf32>
    %cst_282 = arith.constant dense<0.000000e+00> : vector<16x8xf32>
    %263 = tpu.matmul %262, %260, %cst_282 {dimension_numbers = #tpu.dot_dimension_numbers<[1], [0], [0], [1], [0, 0, 1, 1], [], []>} : vector<16x16xf32>, vector<16x8xf32>, vector<16x8xf32> -> vector<16x8xf32>
    %264 = arith.addf %257, %263 : vector<16x8xf32>
    %c3_283 = arith.constant 3 : index
    %c0_284 = arith.constant 0 : index
    %c0_285 = arith.constant 0 : index
    %265 = vector.load %arg13[%c3_283, %c0_284, %c0_285] : memref<9x8x8xf32, #tpu.memory_space<vmem>>, vector<1x8x8xf32>
    %266 = vector.shape_cast %265 : vector<1x8x8xf32> to vector<8x8xf32>
    %cst_286 = arith.constant dense<0.000000e+00> : vector<16x8xf32>
    %267 = tpu.matmul %244, %266, %cst_286 {dimension_numbers = #tpu.dot_dimension_numbers<[1], [0], [0], [1], [0, 0, 1, 1], [], []>} : vector<16x8xf32>, vector<8x8xf32>, vector<16x8xf32> -> vector<16x8xf32>
    %c3_287 = arith.constant 3 : index
    %c0_288 = arith.constant 0 : index
    %c0_289 = arith.constant 0 : index
    %268 = vector.load %arg14[%c3_287, %c0_288, %c0_289] : memref<9x16x16xf32, #tpu.memory_space<vmem>>, vector<1x16x16xf32>
    %269 = vector.shape_cast %268 : vector<1x16x16xf32> to vector<16x16xf32>
    %cst_290 = arith.constant dense<0.000000e+00> : vector<16x8xf32>
    %270 = tpu.matmul %269, %267, %cst_290 {dimension_numbers = #tpu.dot_dimension_numbers<[1], [0], [0], [1], [0, 0, 1, 1], [], []>} : vector<16x16xf32>, vector<16x8xf32>, vector<16x8xf32> -> vector<16x8xf32>
    %271 = arith.addf %264, %270 : vector<16x8xf32>
    %c4_291 = arith.constant 4 : index
    %c0_292 = arith.constant 0 : index
    %c0_293 = arith.constant 0 : index
    %272 = vector.load %arg13[%c4_291, %c0_292, %c0_293] : memref<9x8x8xf32, #tpu.memory_space<vmem>>, vector<1x8x8xf32>
    %273 = vector.shape_cast %272 : vector<1x8x8xf32> to vector<8x8xf32>
    %cst_294 = arith.constant dense<0.000000e+00> : vector<16x8xf32>
    %274 = tpu.matmul %244, %273, %cst_294 {dimension_numbers = #tpu.dot_dimension_numbers<[1], [0], [0], [1], [0, 0, 1, 1], [], []>} : vector<16x8xf32>, vector<8x8xf32>, vector<16x8xf32> -> vector<16x8xf32>
    %c4_295 = arith.constant 4 : index
    %c0_296 = arith.constant 0 : index
    %c0_297 = arith.constant 0 : index
    %275 = vector.load %arg14[%c4_295, %c0_296, %c0_297] : memref<9x16x16xf32, #tpu.memory_space<vmem>>, vector<1x16x16xf32>
    %276 = vector.shape_cast %275 : vector<1x16x16xf32> to vector<16x16xf32>
    %cst_298 = arith.constant dense<0.000000e+00> : vector<16x8xf32>
    %277 = tpu.matmul %276, %274, %cst_298 {dimension_numbers = #tpu.dot_dimension_numbers<[1], [0], [0], [1], [0, 0, 1, 1], [], []>} : vector<16x16xf32>, vector<16x8xf32>, vector<16x8xf32> -> vector<16x8xf32>
    %278 = arith.addf %271, %277 : vector<16x8xf32>
    %c5_299 = arith.constant 5 : index
    %c0_300 = arith.constant 0 : index
    %c0_301 = arith.constant 0 : index
    %279 = vector.load %arg13[%c5_299, %c0_300, %c0_301] : memref<9x8x8xf32, #tpu.memory_space<vmem>>, vector<1x8x8xf32>
    %280 = vector.shape_cast %279 : vector<1x8x8xf32> to vector<8x8xf32>
    %cst_302 = arith.constant dense<0.000000e+00> : vector<16x8xf32>
    %281 = tpu.matmul %244, %280, %cst_302 {dimension_numbers = #tpu.dot_dimension_numbers<[1], [0], [0], [1], [0, 0, 1, 1], [], []>} : vector<16x8xf32>, vector<8x8xf32>, vector<16x8xf32> -> vector<16x8xf32>
    %c5_303 = arith.constant 5 : index
    %c0_304 = arith.constant 0 : index
    %c0_305 = arith.constant 0 : index
    %282 = vector.load %arg14[%c5_303, %c0_304, %c0_305] : memref<9x16x16xf32, #tpu.memory_space<vmem>>, vector<1x16x16xf32>
    %283 = vector.shape_cast %282 : vector<1x16x16xf32> to vector<16x16xf32>
    %cst_306 = arith.constant dense<0.000000e+00> : vector<16x8xf32>
    %284 = tpu.matmul %283, %281, %cst_306 {dimension_numbers = #tpu.dot_dimension_numbers<[1], [0], [0], [1], [0, 0, 1, 1], [], []>} : vector<16x16xf32>, vector<16x8xf32>, vector<16x8xf32> -> vector<16x8xf32>
    %285 = arith.addf %278, %284 : vector<16x8xf32>
    %c6_307 = arith.constant 6 : index
    %c0_308 = arith.constant 0 : index
    %c0_309 = arith.constant 0 : index
    %286 = vector.load %arg13[%c6_307, %c0_308, %c0_309] : memref<9x8x8xf32, #tpu.memory_space<vmem>>, vector<1x8x8xf32>
    %287 = vector.shape_cast %286 : vector<1x8x8xf32> to vector<8x8xf32>
    %cst_310 = arith.constant dense<0.000000e+00> : vector<16x8xf32>
    %288 = tpu.matmul %244, %287, %cst_310 {dimension_numbers = #tpu.dot_dimension_numbers<[1], [0], [0], [1], [0, 0, 1, 1], [], []>} : vector<16x8xf32>, vector<8x8xf32>, vector<16x8xf32> -> vector<16x8xf32>
    %c6_311 = arith.constant 6 : index
    %c0_312 = arith.constant 0 : index
    %c0_313 = arith.constant 0 : index
    %289 = vector.load %arg14[%c6_311, %c0_312, %c0_313] : memref<9x16x16xf32, #tpu.memory_space<vmem>>, vector<1x16x16xf32>
    %290 = vector.shape_cast %289 : vector<1x16x16xf32> to vector<16x16xf32>
    %cst_314 = arith.constant dense<0.000000e+00> : vector<16x8xf32>
    %291 = tpu.matmul %290, %288, %cst_314 {dimension_numbers = #tpu.dot_dimension_numbers<[1], [0], [0], [1], [0, 0, 1, 1], [], []>} : vector<16x16xf32>, vector<16x8xf32>, vector<16x8xf32> -> vector<16x8xf32>
    %292 = arith.addf %285, %291 : vector<16x8xf32>
    %c7_315 = arith.constant 7 : index
    %c0_316 = arith.constant 0 : index
    %c0_317 = arith.constant 0 : index
    %293 = vector.load %arg13[%c7_315, %c0_316, %c0_317] : memref<9x8x8xf32, #tpu.memory_space<vmem>>, vector<1x8x8xf32>
    %294 = vector.shape_cast %293 : vector<1x8x8xf32> to vector<8x8xf32>
    %cst_318 = arith.constant dense<0.000000e+00> : vector<16x8xf32>
    %295 = tpu.matmul %244, %294, %cst_318 {dimension_numbers = #tpu.dot_dimension_numbers<[1], [0], [0], [1], [0, 0, 1, 1], [], []>} : vector<16x8xf32>, vector<8x8xf32>, vector<16x8xf32> -> vector<16x8xf32>
    %c7_319 = arith.constant 7 : index
    %c0_320 = arith.constant 0 : index
    %c0_321 = arith.constant 0 : index
    %296 = vector.load %arg14[%c7_319, %c0_320, %c0_321] : memref<9x16x16xf32, #tpu.memory_space<vmem>>, vector<1x16x16xf32>
    %297 = vector.shape_cast %296 : vector<1x16x16xf32> to vector<16x16xf32>
    %cst_322 = arith.constant dense<0.000000e+00> : vector<16x8xf32>
    %298 = tpu.matmul %297, %295, %cst_322 {dimension_numbers = #tpu.dot_dimension_numbers<[1], [0], [0], [1], [0, 0, 1, 1], [], []>} : vector<16x16xf32>, vector<16x8xf32>, vector<16x8xf32> -> vector<16x8xf32>
    %299 = arith.addf %292, %298 : vector<16x8xf32>
    %c8_323 = arith.constant 8 : index
    %c0_324 = arith.constant 0 : index
    %c0_325 = arith.constant 0 : index
    %300 = vector.load %arg13[%c8_323, %c0_324, %c0_325] : memref<9x8x8xf32, #tpu.memory_space<vmem>>, vector<1x8x8xf32>
    %301 = vector.shape_cast %300 : vector<1x8x8xf32> to vector<8x8xf32>
    %cst_326 = arith.constant dense<0.000000e+00> : vector<16x8xf32>
    %302 = tpu.matmul %244, %301, %cst_326 {dimension_numbers = #tpu.dot_dimension_numbers<[1], [0], [0], [1], [0, 0, 1, 1], [], []>} : vector<16x8xf32>, vector<8x8xf32>, vector<16x8xf32> -> vector<16x8xf32>
    %c8_327 = arith.constant 8 : index
    %c0_328 = arith.constant 0 : index
    %c0_329 = arith.constant 0 : index
    %303 = vector.load %arg14[%c8_327, %c0_328, %c0_329] : memref<9x16x16xf32, #tpu.memory_space<vmem>>, vector<1x16x16xf32>
    %304 = vector.shape_cast %303 : vector<1x16x16xf32> to vector<16x16xf32>
    %cst_330 = arith.constant dense<0.000000e+00> : vector<16x8xf32>
    %305 = tpu.matmul %304, %302, %cst_330 {dimension_numbers = #tpu.dot_dimension_numbers<[1], [0], [0], [1], [0, 0, 1, 1], [], []>} : vector<16x16xf32>, vector<16x8xf32>, vector<16x8xf32> -> vector<16x8xf32>
    %306 = arith.addf %299, %305 : vector<16x8xf32>
    %c0_331 = arith.constant 0 : index
    %c0_332 = arith.constant 0 : index
    %307 = vector.load %arg15[%c0_331, %c0_332] : memref<16x1xf32, #tpu.memory_space<vmem>>, vector<16x1xf32>
    %308 = vector.broadcast %307 : vector<16x1xf32> to vector<16x8xf32>
    %309 = arith.addf %306, %308 : vector<16x8xf32>
    %c0_333 = arith.constant 0 : index
    %c0_334 = arith.constant 0 : index
    %310 = vector.load %arg17[%c0_333, %c0_334] : memref<16x8xf32, #tpu.memory_space<vmem>>, vector<16x8xf32>
    %c0_335 = arith.constant 0 : index
    %c0_336 = arith.constant 0 : index
    %311 = vector.load %arg16[%c0_335, %c0_336] : memref<32x8xf32, #tpu.memory_space<vmem>>, vector<32x8xf32>
    %cst_337 = arith.constant dense<0.000000e+00> : vector<8x8xf32>
    %312 = tpu.matmul %177, %311, %cst_337 {dimension_numbers = #tpu.dot_dimension_numbers<[1], [0], [0], [1], [0, 0, 1, 1], [], []>} : vector<8x32xf32>, vector<32x8xf32>, vector<8x8xf32> -> vector<8x8xf32>
    %cst_338 = arith.constant dense<0.000000e+00> : vector<16x8xf32>
    %313 = tpu.matmul %310, %312, %cst_338 {dimension_numbers = #tpu.dot_dimension_numbers<[1], [0], [0], [1], [0, 0, 1, 1], [], []>} : vector<16x8xf32>, vector<8x8xf32>, vector<16x8xf32> -> vector<16x8xf32>
    %c0_339 = arith.constant 0 : index
    %c0_340 = arith.constant 0 : index
    %314 = vector.load %arg18[%c0_339, %c0_340] : memref<16x1xf32, #tpu.memory_space<vmem>>, vector<16x1xf32>
    %315 = vector.broadcast %314 : vector<16x1xf32> to vector<16x8xf32>
    %316 = arith.addf %313, %315 : vector<16x8xf32>
    %317 = arith.addf %309, %316 : vector<16x8xf32>
    %cst_341 = arith.constant 0.000000e+00 : f32
    %318 = vector.broadcast %cst_341 : f32 to vector<16x8xf32>
    %319 = arith.maximumf %317, %318 : vector<16x8xf32>
    %c0_342 = arith.constant 0 : index
    %c0_343 = arith.constant 0 : index
    %320 = vector.load %arg19[%c0_342, %c0_343] : memref<8x2xf32, #tpu.memory_space<vmem>>, vector<8x2xf32>
    %cst_344 = arith.constant dense<0.000000e+00> : vector<16x2xf32>
    %321 = tpu.matmul %319, %320, %cst_344 {dimension_numbers = #tpu.dot_dimension_numbers<[1], [0], [0], [1], [0, 0, 1, 1], [], []>} : vector<16x8xf32>, vector<8x2xf32>, vector<16x2xf32> -> vector<16x2xf32>
    %c0_345 = arith.constant 0 : index
    %c0_346 = arith.constant 0 : index
    %322 = vector.load %arg23[%c0_345, %c0_346] : memref<16x2xf32, #tpu.memory_space<vmem>>, vector<16x2xf32>
    tpu.vector_store %arg23[%c0_345, %c0_346], %321 {strides = array<i32>} : memref<16x2xf32, #tpu.memory_space<vmem>>, vector<16x2xf32>,
    %c0_347 = arith.constant 0 : index
    %c0_348 = arith.constant 0 : index
    %323 = vector.load %arg20[%c0_347, %c0_348] : memref<10x16xf32, #tpu.memory_space<vmem>>, vector<10x16xf32>
    %cst_349 = arith.constant dense<0.000000e+00> : vector<10x2xf32>
    %324 = tpu.matmul %323, %321, %cst_349 {dimension_numbers = #tpu.dot_dimension_numbers<[1], [0], [0], [1], [0, 0, 1, 1], [], []>} : vector<10x16xf32>, vector<16x2xf32>, vector<10x2xf32> -> vector<10x2xf32>
    %c0_350 = arith.constant 0 : index
    %c0_351 = arith.constant 0 : index
    %325 = vector.load %arg21[%c0_350, %c0_351] : memref<10x1xf32, #tpu.memory_space<vmem>>, vector<10x1xf32>
    %326 = vector.broadcast %325 : vector<10x1xf32> to vector<10x2xf32>
    %327 = arith.addf %324, %326 : vector<10x2xf32>
    %c0_352 = arith.constant 0 : index
    %c0_353 = arith.constant 0 : index
    %328 = vector.load %arg22[%c0_352, %c0_353] : memref<10x2xf32, #tpu.memory_space<vmem>>, vector<10x2xf32>
    tpu.vector_store %arg22[%c0_352, %c0_353], %327 {strides = array<i32>} : memref<10x2xf32, #tpu.memory_space<vmem>>, vector<10x2xf32>,
    return
  }
}

</mosaic_0001>

<llo_original>
// kernel: resnet_forward_pallas.1
$region0: #{resnet_forward_pallas.1}
  #allocation0 [shape = 'u32[]', space=smem, size = 0x4, offset = 0x4, fixed_abs, tag = 'smem constant byte address 0x4 - core index']
  #allocation1 [shape = 'u32[72,128]{1,0:T(1,128)}', space=vmem, size = 0x9000, scoped, tag = 'internal scratch']
  %s0 = inlined_call_operand.vmem [shape: f32[27,128], index: 0, kind: input, shape index: {}]
  %s1 = inlined_call_operand.vmem [shape: f32[8,27], index: 1, kind: input, shape index: {}]
  %s2 = inlined_call_operand.vmem [shape: f32[8,1], index: 2, kind: input, shape index: {}]
  %s3 = inlined_call_operand.vmem [shape: f32[9,128,32], index: 3, kind: input, shape index: {}]
  %s4 = inlined_call_operand.vmem [shape: f32[9,32,32], index: 4, kind: input, shape index: {}, may-alias: {4,7}]
  %s5 = inlined_call_operand.vmem [shape: f32[9,8,8], index: 5, kind: input, shape index: {}]
  %s6 = inlined_call_operand.vmem [shape: f32[8,1], index: 6, kind: input, shape index: {}]
  %s7 = inlined_call_operand.vmem [shape: f32[9,32,32], index: 7, kind: input, shape index: {}, may-alias: {4,7}]
  %s8 = inlined_call_operand.vmem [shape: f32[9,8,8], index: 8, kind: input, shape index: {}]
  %s9 = inlined_call_operand.vmem [shape: f32[8,1], index: 9, kind: input, shape index: {}]
  %s10 = inlined_call_operand.vmem [shape: f32[9,32,8], index: 10, kind: input, shape index: {}]
  %s11 = inlined_call_operand.vmem [shape: f32[9,16,8], index: 11, kind: input, shape index: {}]
  %s12 = inlined_call_operand.vmem [shape: f32[16,1], index: 12, kind: input, shape index: {}]
  %s13 = inlined_call_operand.vmem [shape: f32[9,8,8], index: 13, kind: input, shape index: {}]
  %s14 = inlined_call_operand.vmem [shape: f32[9,16,16], index: 14, kind: input, shape index: {}]
  %s15 = inlined_call_operand.vmem [shape: f32[16,1], index: 15, kind: input, shape index: {}]
  %s16 = inlined_call_operand.vmem [shape: f32[32,8], index: 16, kind: input, shape index: {}]
  %s17 = inlined_call_operand.vmem [shape: f32[16,8], index: 17, kind: input, shape index: {}]
  %s18 = inlined_call_operand.vmem [shape: f32[16,1], index: 18, kind: input, shape index: {}]
  %s19 = inlined_call_operand.vmem [shape: f32[8,2], index: 19, kind: input, shape index: {}]
  %s20 = inlined_call_operand.vmem [shape: f32[10,16], index: 20, kind: input, shape index: {}]
  %s21 = inlined_call_operand.vmem [shape: f32[10,1], index: 21, kind: input, shape index: {}]
  %s22 = inlined_call_operand.vmem [shape: f32[10,2], index: 22, kind: output, shape index: {0}]
  %s23 = inlined_call_operand.vmem [shape: f32[16,2], index: 23, kind: output, shape index: {1}]
  %24 = xla_tuple %s22, %s23
  %s25 = sld [smem:[#allocation0]]
  $region106: #{resnet_forward_pallas.1} parent=0
    _
  %s27 = ssub.s32 1, %s25
  %s28 = scalar_select 0, %s27, %s25
  // Predicated region
  $region2: #{resnet_forward_pallas.1} parent=0 // pred_check
    _
  $region3: #{resnet_forward_pallas.1} parent=0 // pred_check_branch
    %30 = sbr.rel (0) target = $region5
  $region4: #{resnet_forward_pallas.1} parent=0 // pred_region
    _
  $region5: #{resnet_forward_pallas.1} parent=0 // pred_fallthru
    _
  // Predicated region
  $region6: #{resnet_forward_pallas.1} parent=0 // pred_check
    _
  $region7: #{resnet_forward_pallas.1} parent=0 // pred_check_branch
    %32 = sbr.rel (0) target = $region9
  $region8: #{resnet_forward_pallas.1} parent=0 // pred_region
    _
  $region9: #{resnet_forward_pallas.1} parent=0 // pred_fallthru
    _
  // Predicated region
  $region10: #{resnet_forward_pallas.1} parent=0 // pred_check
    _
  $region11: #{resnet_forward_pallas.1} parent=0 // pred_check_branch
    %34 = sbr.rel (0) target = $region13
  $region12: #{resnet_forward_pallas.1} parent=0 // pred_region
    _
  $region13: #{resnet_forward_pallas.1} parent=0 // pred_fallthru
    _
  // Predicated region
  $region14: #{resnet_forward_pallas.1} parent=0 // pred_check
    _
  $region15: #{resnet_forward_pallas.1} parent=0 // pred_check_branch
    %36 = sbr.rel (0) target = $region17
  $region16: #{resnet_forward_pallas.1} parent=0 // pred_region
    _
  $region17: #{resnet_forward_pallas.1} parent=0 // pred_fallthru
    _
  // Predicated region
  $region18: #{resnet_forward_pallas.1} parent=0 // pred_check
    _
  $region19: #{resnet_forward_pallas.1} parent=0 // pred_check_branch
    %38 = sbr.rel (0) target = $region21
  $region20: #{resnet_forward_pallas.1} parent=0 // pred_region
    _
  $region21: #{resnet_forward_pallas.1} parent=0 // pred_fallthru
    _
  // Predicated region
  $region22: #{resnet_forward_pallas.1} parent=0 // pred_check
    _
  $region23: #{resnet_forward_pallas.1} parent=0 // pred_check_branch
    %40 = sbr.rel (0) target = $region25
  $region24: #{resnet_forward_pallas.1} parent=0 // pred_region
    _
  $region25: #{resnet_forward_pallas.1} parent=0 // pred_fallthru
    _
  // Predicated region
  $region26: #{resnet_forward_pallas.1} parent=0 // pred_check
    _
  $region27: #{resnet_forward_pallas.1} parent=0 // pred_check_branch
    %42 = sbr.rel (0) target = $region29
  $region28: #{resnet_forward_pallas.1} parent=0 // pred_region
    _
  $region29: #{resnet_forward_pallas.1} parent=0 // pred_fallthru
    _
  // Predicated region
  $region30: #{resnet_forward_pallas.1} parent=0 // pred_check
    _
  $region31: #{resnet_forward_pallas.1} parent=0 // pred_check_branch
    %44 = sbr.rel (0) target = $region33
  $region32: #{resnet_forward_pallas.1} parent=0 // pred_region
    _
  $region33: #{resnet_forward_pallas.1} parent=0 // pred_fallthru
    _
  // Predicated region
  $region34: #{resnet_forward_pallas.1} parent=0 // pred_check
    _
  $region35: #{resnet_forward_pallas.1} parent=0 // pred_check_branch
    %46 = sbr.rel (0) target = $region37
  $region36: #{resnet_forward_pallas.1} parent=0 // pred_region
    _
  $region37: #{resnet_forward_pallas.1} parent=0 // pred_fallthru
    _
  // Predicated region
  $region38: #{resnet_forward_pallas.1} parent=0 // pred_check
    _
  $region39: #{resnet_forward_pallas.1} parent=0 // pred_check_branch
    %48 = sbr.rel (0) target = $region41
  $region40: #{resnet_forward_pallas.1} parent=0 // pred_region
    _
  $region41: #{resnet_forward_pallas.1} parent=0 // pred_fallthru
    _
  // Predicated region
  $region42: #{resnet_forward_pallas.1} parent=0 // pred_check
    _
  $region43: #{resnet_forward_pallas.1} parent=0 // pred_check_branch
    %50 = sbr.rel (0) target = $region45
  $region44: #{resnet_forward_pallas.1} parent=0 // pred_region
    _
  $region45: #{resnet_forward_pallas.1} parent=0 // pred_fallthru
    _
  // Predicated region
  $region46: #{resnet_forward_pallas.1} parent=0 // pred_check
    _
  $region47: #{resnet_forward_pallas.1} parent=0 // pred_check_branch
    %52 = sbr.rel (0) target = $region49
  $region48: #{resnet_forward_pallas.1} parent=0 // pred_region
    _
  $region49: #{resnet_forward_pallas.1} parent=0 // pred_fallthru
    _
  // Predicated region
  $region50: #{resnet_forward_pallas.1} parent=0 // pred_check
    _
  $region51: #{resnet_forward_pallas.1} parent=0 // pred_check_branch
    %54 = sbr.rel (0) target = $region53
  $region52: #{resnet_forward_pallas.1} parent=0 // pred_region
    _
  $region53: #{resnet_forward_pallas.1} parent=0 // pred_fallthru
    _
  // Predicated region
  $region54: #{resnet_forward_pallas.1} parent=0 // pred_check
    _
  $region55: #{resnet_forward_pallas.1} parent=0 // pred_check_branch
    %56 = sbr.rel (0) target = $region57
  $region56: #{resnet_forward_pallas.1} parent=0 // pred_region
    _
  $region57: #{resnet_forward_pallas.1} parent=0 // pred_fallthru
    _
  // Predicated region
  $region58: #{resnet_forward_pallas.1} parent=0 // pred_check
    _
  $region59: #{resnet_forward_pallas.1} parent=0 // pred_check_branch
    %58 = sbr.rel (0) target = $region61
  $region60: #{resnet_forward_pallas.1} parent=0 // pred_region
    _
  $region61: #{resnet_forward_pallas.1} parent=0 // pred_fallthru
    _
  // Predicated region
  $region62: #{resnet_forward_pallas.1} parent=0 // pred_check
    _
  $region63: #{resnet_forward_pallas.1} parent=0 // pred_check_branch
    %60 = sbr.rel (0) target = $region65
  $region64: #{resnet_forward_pallas.1} parent=0 // pred_region
    _
  $region65: #{resnet_forward_pallas.1} parent=0 // pred_fallthru
    _
  // Predicated region
  $region66: #{resnet_forward_pallas.1} parent=0 // pred_check
    _
  $region67: #{resnet_forward_pallas.1} parent=0 // pred_check_branch
    %62 = sbr.rel (0) target = $region69
  $region68: #{resnet_forward_pallas.1} parent=0 // pred_region
    _
  $region69: #{resnet_forward_pallas.1} parent=0 // pred_fallthru
    _
  // Predicated region
  $region70: #{resnet_forward_pallas.1} parent=0 // pred_check
    _
  $region71: #{resnet_forward_pallas.1} parent=0 // pred_check_branch
    %64 = sbr.rel (0) target = $region73
  $region72: #{resnet_forward_pallas.1} parent=0 // pred_region
    _
  $region73: #{resnet_forward_pallas.1} parent=0 // pred_fallthru
    _
  // Predicated region
  $region74: #{resnet_forward_pallas.1} parent=0 // pred_check
    _
  $region75: #{resnet_forward_pallas.1} parent=0 // pred_check_branch
    %66 = sbr.rel (0) target = $region77
  $region76: #{resnet_forward_pallas.1} parent=0 // pred_region
    _
  $region77: #{resnet_forward_pallas.1} parent=0 // pred_fallthru
    _
  // Predicated region
  $region78: #{resnet_forward_pallas.1} parent=0 // pred_check
    _
  $region79: #{resnet_forward_pallas.1} parent=0 // pred_check_branch
    %68 = sbr.rel (0) target = $region81
  $region80: #{resnet_forward_pallas.1} parent=0 // pred_region
    _
  $region81: #{resnet_forward_pallas.1} parent=0 // pred_fallthru
    _
  // Predicated region
  $region82: #{resnet_forward_pallas.1} parent=0 // pred_check
    _
  $region83: #{resnet_forward_pallas.1} parent=0 // pred_check_branch
    %70 = sbr.rel (0) target = $region85
  $region84: #{resnet_forward_pallas.1} parent=0 // pred_region
    _
  $region85: #{resnet_forward_pallas.1} parent=0 // pred_fallthru
    _
  // Predicated region
  $region86: #{resnet_forward_pallas.1} parent=0 // pred_check
    _
  $region87: #{resnet_forward_pallas.1} parent=0 // pred_check_branch
    %72 = sbr.rel (0) target = $region89
  $region88: #{resnet_forward_pallas.1} parent=0 // pred_region
    _
  $region89: #{resnet_forward_pallas.1} parent=0 // pred_fallthru
    _
  %v73 = vld [vmem:[%s1] sm:$0xff]
  %v74 = vld [vmem:[%s0] sm:$0xff]
  %v75 = vld [vmem:[%s0 + $0x8] sm:$0xff]
  %v76 = vld [vmem:[%s0 + $0x10] sm:$0xff]
  %v77 = vld [vmem:[%s0 + $0x18] sm:$0x7]
  %v78 = vld [vmem:[%s2] sm:$0xff]
  %80 = vset.pattern.permute.xlu0 0
  %81 = vperm.xlu0 %80, %v78
  %v82 = vpop.permute.xlu0 %81
  %vm84 = vcmask 220160
  %v86 = vsel %vm84, %v73, 0
  %vm88 = vcmask 1042432
  %v90 = vsel %vm88, %v77, 0
  %92 = vmatpush.msra.mxu0 0.0
  %93 = vmatpush.msra.mxu0 0.0
  %94 = vmatpush.msra.mxu0 0.0
  %95 = vmatpush.msra.mxu0 0.0
  %96 = vmatpush.msra.mxu0 0.0
  %97 = vmatpush.msra.mxu0 0.0
  %98 = vmatpush.msra.mxu0 0.0
  %99 = vmatpush.msra.mxu0 0.0
  %100 = vmatpush.msra.mxu0 0.0
  %101 = vmatpush.msra.mxu0 0.0
  %102 = vmatpush.msra.mxu0 0.0
  %103 = vmatpush.msra.mxu0 0.0
  %104 = vmatpush.msra.mxu0 %v90
  %105 = vmatpush.msra.mxu0 %v76
  %106 = vmatpush.msra.mxu0 %v75
  %107 = vmatpush.msra.mxu0 %v74
  %108 = vmatmul.f32.gmra.mxu0 %v86
  %v109 = vpop.f32.mrf.mxu0
  %v110 = vadd.f32 %v82, %v109
  %111 = vdwg.mxu0
  %v112 = vmax.f32 %v110, 0.0
  %v113 = vld [vmem:[%s3] sm:$0xff]
  %v114 = vld [vmem:[%s3 + $0x8] sm:$0xff]
  %v115 = vld [vmem:[%s3 + $0x10] sm:$0xff]
  %v116 = vld [vmem:[%s3 + $0x18] sm:$0xff]
  %v117 = vld [vmem:[%s3 + $0x20] sm:$0xff]
  %v118 = vld [vmem:[%s3 + $0x28] sm:$0xff]
  %v119 = vld [vmem:[%s3 + $0x30] sm:$0xff]
  %v120 = vld [vmem:[%s3 + $0x38] sm:$0xff]
  %v121 = vld [vmem:[%s3 + $0x40] sm:$0xff]
  %v122 = vld [vmem:[%s3 + $0x48] sm:$0xff]
  %v123 = vld [vmem:[%s3 + $0x50] sm:$0xff]
  %v124 = vld [vmem:[%s3 + $0x58] sm:$0xff]
  %v125 = vld [vmem:[%s3 + $0x60] sm:$0xff]
  %v126 = vld [vmem:[%s3 + $0x68] sm:$0xff]
  %v127 = vld [vmem:[%s3 + $0x70] sm:$0xff]
  %v128 = vld [vmem:[%s3 + $0x78] sm:$0xff]
  %129 = vmatpush.msra.mxu0 %v128
  %130 = vmatpush.msra.mxu0 %v127
  %131 = vmatpush.msra.mxu0 %v126
  %132 = vmatpush.msra.mxu0 %v125
  %133 = vmatpush.msra.mxu0 %v124
  %134 = vmatpush.msra.mxu0 %v123
  %135 = vmatpush.msra.mxu0 %v122
  %136 = vmatpush.msra.mxu0 %v121
  %137 = vmatpush.msra.mxu0 %v120
  %138 = vmatpush.msra.mxu0 %v119
  %139 = vmatpush.msra.mxu0 %v118
  %140 = vmatpush.msra.mxu0 %v117
  %141 = vmatpush.msra.mxu0 %v116
  %142 = vmatpush.msra.mxu0 %v115
  %143 = vmatpush.msra.mxu0 %v114
  %144 = vmatpush.msra.mxu0 %v113
  %145 = vmatmul.f32.gmra.mxu0 %v112
  %v146 = vpop.f32.mrf.mxu0
  %v147 = vadd.f32 0.0, %v146
  %148 = vdwg.mxu0
  %s149 = scalar_lea.vmem %s3, 128
  %v150 = vld [vmem:[%s149] sm:$0xff]
  %v151 = vld [vmem:[%s149 + $0x8] sm:$0xff]
  %v152 = vld [vmem:[%s149 + $0x10] sm:$0xff]
  %v153 = vld [vmem:[%s149 + $0x18] sm:$0xff]
  %v154 = vld [vmem:[%s149 + $0x20] sm:$0xff]
  %v155 = vld [vmem:[%s149 + $0x28] sm:$0xff]
  %v156 = vld [vmem:[%s149 + $0x30] sm:$0xff]
  %v157 = vld [vmem:[%s149 + $0x38] sm:$0xff]
  %v158 = vld [vmem:[%s149 + $0x40] sm:$0xff]
  %v159 = vld [vmem:[%s149 + $0x48] sm:$0xff]
  %v160 = vld [vmem:[%s149 + $0x50] sm:$0xff]
  %v161 = vld [vmem:[%s149 + $0x58] sm:$0xff]
  %v162 = vld [vmem:[%s149 + $0x60] sm:$0xff]
  %v163 = vld [vmem:[%s149 + $0x68] sm:$0xff]
  %v164 = vld [vmem:[%s149 + $0x70] sm:$0xff]
  %v165 = vld [vmem:[%s149 + $0x78] sm:$0xff]
  %166 = vmatpush.msra.mxu0 %v165
  %167 = vmatpush.msra.mxu0 %v164
  %168 = vmatpush.msra.mxu0 %v163
  %169 = vmatpush.msra.mxu0 %v162
  %170 = vmatpush.msra.mxu0 %v161
  %171 = vmatpush.msra.mxu0 %v160
  %172 = vmatpush.msra.mxu0 %v159
  %173 = vmatpush.msra.mxu0 %v158
  %174 = vmatpush.msra.mxu0 %v157
  %175 = vmatpush.msra.mxu0 %v156
  %176 = vmatpush.msra.mxu0 %v155
  %177 = vmatpush.msra.mxu0 %v154
  %178 = vmatpush.msra.mxu0 %v153
  %179 = vmatpush.msra.mxu0 %v152
  %180 = vmatpush.msra.mxu0 %v151
  %181 = vmatpush.msra.mxu0 %v150
  %182 = vmatmul.f32.gmra.mxu0 %v112
  %v183 = vpop.f32.mrf.mxu0
  %v184 = vadd.f32 0.0, %v183
  %185 = vdwg.mxu0
  %v186 = vmax.f32 %v147, %v184
  %s187 = scalar_lea.vmem %s3, 256
  %v188 = vld [vmem:[%s187] sm:$0xff]
  %v189 = vld [vmem:[%s187 + $0x8] sm:$0xff]
  %v190 = vld [vmem:[%s187 + $0x10] sm:$0xff]
  %v191 = vld [vmem:[%s187 + $0x18] sm:$0xff]
  %v192 = vld [vmem:[%s187 + $0x20] sm:$0xff]
  %v193 = vld [vmem:[%s187 + $0x28] sm:$0xff]
  %v194 = vld [vmem:[%s187 + $0x30] sm:$0xff]
  %v195 = vld [vmem:[%s187 + $0x38] sm:$0xff]
  %v196 = vld [vmem:[%s187 + $0x40] sm:$0xff]
  %v197 = vld [vmem:[%s187 + $0x48] sm:$0xff]
  %v198 = vld [vmem:[%s187 + $0x50] sm:$0xff]
  %v199 = vld [vmem:[%s187 + $0x58] sm:$0xff]
  %v200 = vld [vmem:[%s187 + $0x60] sm:$0xff]
  %v201 = vld [vmem:[%s187 + $0x68] sm:$0xff]
  %v202 = vld [vmem:[%s187 + $0x70] sm:$0xff]
  %v203 = vld [vmem:[%s187 + $0x78] sm:$0xff]
  %204 = vmatpush.msra.mxu0 %v203
  %205 = vmatpush.msra.mxu0 %v202
  %206 = vmatpush.msra.mxu0 %v201
  %207 = vmatpush.msra.mxu0 %v200
  %208 = vmatpush.msra.mxu0 %v199
  %209 = vmatpush.msra.mxu0 %v198
  %210 = vmatpush.msra.mxu0 %v197
  %211 = vmatpush.msra.mxu0 %v196
  %212 = vmatpush.msra.mxu0 %v195
  %213 = vmatpush.msra.mxu0 %v194
  %214 = vmatpush.msra.mxu0 %v193
  %215 = vmatpush.msra.mxu0 %v192
  %216 = vmatpush.msra.mxu0 %v191
  %217 = vmatpush.msra.mxu0 %v190
  %218 = vmatpush.msra.mxu0 %v189
  %219 = vmatpush.msra.mxu0 %v188
  %220 = vmatmul.f32.gmra.mxu0 %v112
  %v221 = vpop.f32.mrf.mxu0
  %v222 = vadd.f32 0.0, %v221
  %223 = vdwg.mxu0
  %v224 = vmax.f32 %v186, %v222
  %s225 = scalar_lea.vmem %s3, 384
  %v226 = vld [vmem:[%s225] sm:$0xff]
  %v227 = vld [vmem:[%s225 + $0x8] sm:$0xff]
  %v228 = vld [vmem:[%s225 + $0x10] sm:$0xff]
  %v229 = vld [vmem:[%s225 + $0x18] sm:$0xff]
  %v230 = vld [vmem:[%s225 + $0x20] sm:$0xff]
  %v231 = vld [vmem:[%s225 + $0x28] sm:$0xff]
  %v232 = vld [vmem:[%s225 + $0x30] sm:$0xff]
  %v233 = vld [vmem:[%s225 + $0x38] sm:$0xff]
  %v234 = vld [vmem:[%s225 + $0x40] sm:$0xff]
  %v235 = vld [vmem:[%s225 + $0x48] sm:$0xff]
  %v236 = vld [vmem:[%s225 + $0x50] sm:$0xff]
  %v237 = vld [vmem:[%s225 + $0x58] sm:$0xff]
  %v238 = vld [vmem:[%s225 + $0x60] sm:$0xff]
  %v239 = vld [vmem:[%s225 + $0x68] sm:$0xff]
  %v240 = vld [vmem:[%s225 + $0x70] sm:$0xff]
  %v241 = vld [vmem:[%s225 + $0x78] sm:$0xff]
  %242 = vmatpush.msra.mxu0 %v241
  %243 = vmatpush.msra.mxu0 %v240
  %244 = vmatpush.msra.mxu0 %v239
  %245 = vmatpush.msra.mxu0 %v238
  %246 = vmatpush.msra.mxu0 %v237
  %247 = vmatpush.msra.mxu0 %v236
  %248 = vmatpush.msra.mxu0 %v235
  %249 = vmatpush.msra.mxu0 %v234
  %250 = vmatpush.msra.mxu0 %v233
  %251 = vmatpush.msra.mxu0 %v232
  %252 = vmatpush.msra.mxu0 %v231
  %253 = vmatpush.msra.mxu0 %v230
  %254 = vmatpush.msra.mxu0 %v229
  %255 = vmatpush.msra.mxu0 %v228
  %256 = vmatpush.msra.mxu0 %v227
  %257 = vmatpush.msra.mxu0 %v226
  %258 = vmatmul.f32.gmra.mxu0 %v112
  %v259 = vpop.f32.mrf.mxu0
  %v260 = vadd.f32 0.0, %v259
  %261 = vdwg.mxu0
  %v262 = vmax.f32 %v224, %v260
  %s263 = scalar_lea.vmem %s3, 512
  %v264 = vld [vmem:[%s263] sm:$0xff]
  %v265 = vld [vmem:[%s263 + $0x8] sm:$0xff]
  %v266 = vld [vmem:[%s263 + $0x10] sm:$0xff]
  %v267 = vld [vmem:[%s263 + $0x18] sm:$0xff]
  %v268 = vld [vmem:[%s263 + $0x20] sm:$0xff]
  %v269 = vld [vmem:[%s263 + $0x28] sm:$0xff]
  %v270 = vld [vmem:[%s263 + $0x30] sm:$0xff]
  %v271 = vld [vmem:[%s263 + $0x38] sm:$0xff]
  %v272 = vld [vmem:[%s263 + $0x40] sm:$0xff]
  %v273 = vld [vmem:[%s263 + $0x48] sm:$0xff]
  %v274 = vld [vmem:[%s263 + $0x50] sm:$0xff]
  %v275 = vld [vmem:[%s263 + $0x58] sm:$0xff]
  %v276 = vld [vmem:[%s263 + $0x60] sm:$0xff]
  %v277 = vld [vmem:[%s263 + $0x68] sm:$0xff]
  %v278 = vld [vmem:[%s263 + $0x70] sm:$0xff]
  %v279 = vld [vmem:[%s263 + $0x78] sm:$0xff]
  %280 = vmatpush.msra.mxu0 %v279
  %281 = vmatpush.msra.mxu0 %v278
  %282 = vmatpush.msra.mxu0 %v277
  %283 = vmatpush.msra.mxu0 %v276
  %284 = vmatpush.msra.mxu0 %v275
  %285 = vmatpush.msra.mxu0 %v274
  %286 = vmatpush.msra.mxu0 %v273
  %287 = vmatpush.msra.mxu0 %v272
  %288 = vmatpush.msra.mxu0 %v271
  %289 = vmatpush.msra.mxu0 %v270
  %290 = vmatpush.msra.mxu0 %v269
  %291 = vmatpush.msra.mxu0 %v268
  %292 = vmatpush.msra.mxu0 %v267
  %293 = vmatpush.msra.mxu0 %v266
  %294 = vmatpush.msra.mxu0 %v265
  %295 = vmatpush.msra.mxu0 %v264
  %296 = vmatmul.f32.gmra.mxu0 %v112
  %v297 = vpop.f32.mrf.mxu0
  %v298 = vadd.f32 0.0, %v297
  %299 = vdwg.mxu0
  %v300 = vmax.f32 %v262, %v298
  %s301 = scalar_lea.vmem %s3, 640
  %v302 = vld [vmem:[%s301] sm:$0xff]
  %v303 = vld [vmem:[%s301 + $0x8] sm:$0xff]
  %v304 = vld [vmem:[%s301 + $0x10] sm:$0xff]
  %v305 = vld [vmem:[%s301 + $0x18] sm:$0xff]
  %v306 = vld [vmem:[%s301 + $0x20] sm:$0xff]
  %v307 = vld [vmem:[%s301 + $0x28] sm:$0xff]
  %v308 = vld [vmem:[%s301 + $0x30] sm:$0xff]
  %v309 = vld [vmem:[%s301 + $0x38] sm:$0xff]
  %v310 = vld [vmem:[%s301 + $0x40] sm:$0xff]
  %v311 = vld [vmem:[%s301 + $0x48] sm:$0xff]
  %v312 = vld [vmem:[%s301 + $0x50] sm:$0xff]
  %v313 = vld [vmem:[%s301 + $0x58] sm:$0xff]
  %v314 = vld [vmem:[%s301 + $0x60] sm:$0xff]
  %v315 = vld [vmem:[%s301 + $0x68] sm:$0xff]
  %v316 = vld [vmem:[%s301 + $0x70] sm:$0xff]
  %v317 = vld [vmem:[%s301 + $0x78] sm:$0xff]
  %318 = vmatpush.msra.mxu0 %v317
  %319 = vmatpush.msra.mxu0 %v316
  %320 = vmatpush.msra.mxu0 %v315
  %321 = vmatpush.msra.mxu0 %v314
  %322 = vmatpush.msra.mxu0 %v313
  %323 = vmatpush.msra.mxu0 %v312
  %324 = vmatpush.msra.mxu0 %v311
  %325 = vmatpush.msra.mxu0 %v310
  %326 = vmatpush.msra.mxu0 %v309
  %327 = vmatpush.msra.mxu0 %v308
  %328 = vmatpush.msra.mxu0 %v307
  %329 = vmatpush.msra.mxu0 %v306
  %330 = vmatpush.msra.mxu0 %v305
  %331 = vmatpush.msra.mxu0 %v304
  %332 = vmatpush.msra.mxu0 %v303
  %333 = vmatpush.msra.mxu0 %v302
  %334 = vmatmul.f32.gmra.mxu0 %v112
  %v335 = vpop.f32.mrf.mxu0
  %v336 = vadd.f32 0.0, %v335
  %337 = vdwg.mxu0
  %v338 = vmax.f32 %v300, %v336
  %s339 = scalar_lea.vmem %s3, 768
  %v340 = vld [vmem:[%s339] sm:$0xff]
  %v341 = vld [vmem:[%s339 + $0x8] sm:$0xff]
  %v342 = vld [vmem:[%s339 + $0x10] sm:$0xff]
  %v343 = vld [vmem:[%s339 + $0x18] sm:$0xff]
  %v344 = vld [vmem:[%s339 + $0x20] sm:$0xff]
  %v345 = vld [vmem:[%s339 + $0x28] sm:$0xff]
  %v346 = vld [vmem:[%s339 + $0x30] sm:$0xff]
  %v347 = vld [vmem:[%s339 + $0x38] sm:$0xff]
  %v348 = vld [vmem:[%s339 + $0x40] sm:$0xff]
  %v349 = vld [vmem:[%s339 + $0x48] sm:$0xff]
  %v350 = vld [vmem:[%s339 + $0x50] sm:$0xff]
  %v351 = vld [vmem:[%s339 + $0x58] sm:$0xff]
  %v352 = vld [vmem:[%s339 + $0x60] sm:$0xff]
  %v353 = vld [vmem:[%s339 + $0x68] sm:$0xff]
  %v354 = vld [vmem:[%s339 + $0x70] sm:$0xff]
  %v355 = vld [vmem:[%s339 + $0x78] sm:$0xff]
  %356 = vmatpush.msra.mxu0 %v355
  %357 = vmatpush.msra.mxu0 %v354
  %358 = vmatpush.msra.mxu0 %v353
  %359 = vmatpush.msra.mxu0 %v352
  %360 = vmatpush.msra.mxu0 %v351
  %361 = vmatpush.msra.mxu0 %v350
  %362 = vmatpush.msra.mxu0 %v349
  %363 = vmatpush.msra.mxu0 %v348
  %364 = vmatpush.msra.mxu0 %v347
  %365 = vmatpush.msra.mxu0 %v346
  %366 = vmatpush.msra.mxu0 %v345
  %367 = vmatpush.msra.mxu0 %v344
  %368 = vmatpush.msra.mxu0 %v343
  %369 = vmatpush.msra.mxu0 %v342
  %370 = vmatpush.msra.mxu0 %v341
  %371 = vmatpush.msra.mxu0 %v340
  %372 = vmatmul.f32.gmra.mxu0 %v112
  %v373 = vpop.f32.mrf.mxu0
  %v374 = vadd.f32 0.0, %v373
  %375 = vdwg.mxu0
  %v376 = vmax.f32 %v338, %v374
  %s377 = scalar_lea.vmem %s3, 896
  %v378 = vld [vmem:[%s377] sm:$0xff]
  %v379 = vld [vmem:[%s377 + $0x8] sm:$0xff]
  %v380 = vld [vmem:[%s377 + $0x10] sm:$0xff]
  %v381 = vld [vmem:[%s377 + $0x18] sm:$0xff]
  %v382 = vld [vmem:[%s377 + $0x20] sm:$0xff]
  %v383 = vld [vmem:[%s377 + $0x28] sm:$0xff]
  %v384 = vld [vmem:[%s377 + $0x30] sm:$0xff]
  %v385 = vld [vmem:[%s377 + $0x38] sm:$0xff]
  %v386 = vld [vmem:[%s377 + $0x40] sm:$0xff]
  %v387 = vld [vmem:[%s377 + $0x48] sm:$0xff]
  %v388 = vld [vmem:[%s377 + $0x50] sm:$0xff]
  %v389 = vld [vmem:[%s377 + $0x58] sm:$0xff]
  %v390 = vld [vmem:[%s377 + $0x60] sm:$0xff]
  %v391 = vld [vmem:[%s377 + $0x68] sm:$0xff]
  %v392 = vld [vmem:[%s377 + $0x70] sm:$0xff]
  %v393 = vld [vmem:[%s377 + $0x78] sm:$0xff]
  %394 = vmatpush.msra.mxu0 %v393
  %395 = vmatpush.msra.mxu0 %v392
  %396 = vmatpush.msra.mxu0 %v391
  %397 = vmatpush.msra.mxu0 %v390
  %398 = vmatpush.msra.mxu0 %v389
  %399 = vmatpush.msra.mxu0 %v388
  %400 = vmatpush.msra.mxu0 %v387
  %401 = vmatpush.msra.mxu0 %v386
  %402 = vmatpush.msra.mxu0 %v385
  %403 = vmatpush.msra.mxu0 %v384
  %404 = vmatpush.msra.mxu0 %v383
  %405 = vmatpush.msra.mxu0 %v382
  %406 = vmatpush.msra.mxu0 %v381
  %407 = vmatpush.msra.mxu0 %v380
  %408 = vmatpush.msra.mxu0 %v379
  %409 = vmatpush.msra.mxu0 %v378
  %410 = vmatmul.f32.gmra.mxu0 %v112
  %v411 = vpop.f32.mrf.mxu0
  %v412 = vadd.f32 0.0, %v411
  %413 = vdwg.mxu0
  %v414 = vmax.f32 %v376, %v412
  %s415 = scalar_lea.vmem %s3, 1024
  %v416 = vld [vmem:[%s415] sm:$0xff]
  %v417 = vld [vmem:[%s415 + $0x8] sm:$0xff]
  %v418 = vld [vmem:[%s415 + $0x10] sm:$0xff]
  %v419 = vld [vmem:[%s415 + $0x18] sm:$0xff]
  %v420 = vld [vmem:[%s415 + $0x20] sm:$0xff]
  %v421 = vld [vmem:[%s415 + $0x28] sm:$0xff]
  %v422 = vld [vmem:[%s415 + $0x30] sm:$0xff]
  %v423 = vld [vmem:[%s415 + $0x38] sm:$0xff]
  %v424 = vld [vmem:[%s415 + $0x40] sm:$0xff]
  %v425 = vld [vmem:[%s415 + $0x48] sm:$0xff]
  %v426 = vld [vmem:[%s415 + $0x50] sm:$0xff]
  %v427 = vld [vmem:[%s415 + $0x58] sm:$0xff]
  %v428 = vld [vmem:[%s415 + $0x60] sm:$0xff]
  %v429 = vld [vmem:[%s415 + $0x68] sm:$0xff]
  %v430 = vld [vmem:[%s415 + $0x70] sm:$0xff]
  %v431 = vld [vmem:[%s415 + $0x78] sm:$0xff]
  %432 = vmatpush.msra.mxu0 %v431
  %433 = vmatpush.msra.mxu0 %v430
  %434 = vmatpush.msra.mxu0 %v429
  %435 = vmatpush.msra.mxu0 %v428
  %436 = vmatpush.msra.mxu0 %v427
  %437 = vmatpush.msra.mxu0 %v426
  %438 = vmatpush.msra.mxu0 %v425
  %439 = vmatpush.msra.mxu0 %v424
  %440 = vmatpush.msra.mxu0 %v423
  %441 = vmatpush.msra.mxu0 %v422
  %442 = vmatpush.msra.mxu0 %v421
  %443 = vmatpush.msra.mxu0 %v420
  %444 = vmatpush.msra.mxu0 %v419
  %445 = vmatpush.msra.mxu0 %v418
  %446 = vmatpush.msra.mxu0 %v417
  %447 = vmatpush.msra.mxu0 %v416
  %448 = vmatmul.f32.gmra.mxu0 %v112
  %v449 = vpop.f32.mrf.mxu0
  %v450 = vadd.f32 0.0, %v449
  %451 = vdwg.mxu0
  %v452 = vmax.f32 %v414, %v450
  %v453 = vld [vmem:[%s4] sm:$0xff]
  %v454 = vld [vmem:[%s4 + $0x8] sm:$0xff]
  %v455 = vld [vmem:[%s4 + $0x10] sm:$0xff]
  %v456 = vld [vmem:[%s4 + $0x18] sm:$0xff]
  %vm457 = vcmask 261120
  %v459 = vsel %vm457, %v452, 0
  %461 = vmatpush.msra.mxu0 0.0
  %462 = vmatpush.msra.mxu0 0.0
  %463 = vmatpush.msra.mxu0 0.0
  %464 = vmatpush.msra.mxu0 0.0
  %465 = vmatpush.msra.mxu0 0.0
  %466 = vmatpush.msra.mxu0 0.0
  %467 = vmatpush.msra.mxu0 0.0
  %468 = vmatpush.msra.mxu0 0.0
  %469 = vmatpush.msra.mxu0 0.0
  %470 = vmatpush.msra.mxu0 0.0
  %471 = vmatpush.msra.mxu0 0.0
  %472 = vmatpush.msra.mxu0 0.0
  %473 = vmatpush.msra.mxu0 %v456
  %474 = vmatpush.msra.mxu0 %v455
  %475 = vmatpush.msra.mxu0 %v454
  %476 = vmatpush.msra.mxu0 %v453
  %477 = vmatmul.f32.gmra.mxu0 %v459
  %v478 = vpop.f32.mrf.mxu0
  %v479 = vadd.f32 0.0, %v478
  %480 = vdwg.mxu0
  %v481 = vld [vmem:[%s5] sm:$0xff]
  %s482 = scalar_lea.vmem %s4, 32
  %v483 = vld [vmem:[%s482] sm:$0xff]
  %v484 = vld [vmem:[%s482 + $0x8] sm:$0xff]
  %v485 = vld [vmem:[%s482 + $0x10] sm:$0xff]
  %v486 = vld [vmem:[%s482 + $0x18] sm:$0xff]
  %487 = vmatpush.msra.mxu0 0.0
  %488 = vmatpush.msra.mxu0 0.0
  %489 = vmatpush.msra.mxu0 0.0
  %490 = vmatpush.msra.mxu0 0.0
  %491 = vmatpush.msra.mxu0 0.0
  %492 = vmatpush.msra.mxu0 0.0
  %493 = vmatpush.msra.mxu0 0.0
  %494 = vmatpush.msra.mxu0 0.0
  %495 = vmatpush.msra.mxu0 0.0
  %496 = vmatpush.msra.mxu0 0.0
  %497 = vmatpush.msra.mxu0 0.0
  %498 = vmatpush.msra.mxu0 0.0
  %499 = vmatpush.msra.mxu0 %v486
  %500 = vmatpush.msra.mxu0 %v485
  %501 = vmatpush.msra.mxu0 %v484
  %502 = vmatpush.msra.mxu0 %v483
  %503 = vmatmul.f32.gmra.mxu0 %v459
  %v504 = vpop.f32.mrf.mxu0
  %v505 = vadd.f32 0.0, %v504
  %506 = vdwg.mxu0
  %s507 = scalar_lea.vmem %s5, 8
  %v508 = vld [vmem:[%s507] sm:$0xff]
  %vm509 = vcmask 64512
  %v511 = vsel %vm509, %v508, 0
  %513 = vmatpush.msra.mxu0 0.0
  %514 = vmatpush.msra.mxu0 0.0
  %515 = vmatpush.msra.mxu0 0.0
  %516 = vmatpush.msra.mxu0 0.0
  %517 = vmatpush.msra.mxu0 0.0
  %518 = vmatpush.msra.mxu0 0.0
  %519 = vmatpush.msra.mxu0 0.0
  %520 = vmatpush.msra.mxu0 0.0
  %521 = vmatpush.msra.mxu0 0.0
  %522 = vmatpush.msra.mxu0 0.0
  %523 = vmatpush.msra.mxu0 0.0
  %524 = vmatpush.msra.mxu0 0.0
  %525 = vmatpush.msra.mxu0 0.0
  %526 = vmatpush.msra.mxu0 0.0
  %527 = vmatpush.msra.mxu0 0.0
  %528 = vmatpush.msra.mxu0 %v505
  %529 = vmatmul.f32.gmra.mxu0 %v511
  %v530 = vpop.f32.mrf.mxu0
  %v531 = vadd.f32 0.0, %v530
  %532 = vdwg.mxu0
  %v534 = vsel %vm509, %v481, 0
  %536 = vmatpush.msra.mxu0 0.0
  %537 = vmatpush.msra.mxu0 0.0
  %538 = vmatpush.msra.mxu0 0.0
  %539 = vmatpush.msra.mxu0 0.0
  %540 = vmatpush.msra.mxu0 0.0
  %541 = vmatpush.msra.mxu0 0.0
  %542 = vmatpush.msra.mxu0 0.0
  %543 = vmatpush.msra.mxu0 0.0
  %544 = vmatpush.msra.mxu0 0.0
  %545 = vmatpush.msra.mxu0 0.0
  %546 = vmatpush.msra.mxu0 0.0
  %547 = vmatpush.msra.mxu0 0.0
  %548 = vmatpush.msra.mxu0 0.0
  %549 = vmatpush.msra.mxu0 0.0
  %550 = vmatpush.msra.mxu0 0.0
  %551 = vmatpush.msra.mxu0 %v479
  %552 = vmatmul.f32.gmra.mxu0 %v534
  %v553 = vpop.f32.mrf.mxu0
  %v554 = vadd.f32 %v531, %v553
  %555 = vdwg.mxu0
  %s556 = scalar_lea.vmem %s4, 64
  %v557 = vld [vmem:[%s556] sm:$0xff]
  %v558 = vld [vmem:[%s556 + $0x8] sm:$0xff]
  %v559 = vld [vmem:[%s556 + $0x10] sm:$0xff]
  %v560 = vld [vmem:[%s556 + $0x18] sm:$0xff]
  %561 = vmatpush.msra.mxu0 0.0
  %562 = vmatpush.msra.mxu0 0.0
  %563 = vmatpush.msra.mxu0 0.0
  %564 = vmatpush.msra.mxu0 0.0
  %565 = vmatpush.msra.mxu0 0.0
  %566 = vmatpush.msra.mxu0 0.0
  %567 = vmatpush.msra.mxu0 0.0
  %568 = vmatpush.msra.mxu0 0.0
  %569 = vmatpush.msra.mxu0 0.0
  %570 = vmatpush.msra.mxu0 0.0
  %571 = vmatpush.msra.mxu0 0.0
  %572 = vmatpush.msra.mxu0 0.0
  %573 = vmatpush.msra.mxu0 %v560
  %574 = vmatpush.msra.mxu0 %v559
  %575 = vmatpush.msra.mxu0 %v558
  %576 = vmatpush.msra.mxu0 %v557
  %577 = vmatmul.f32.gmra.mxu0 %v459
  %v578 = vpop.f32.mrf.mxu0
  %v579 = vadd.f32 0.0, %v578
  %580 = vdwg.mxu0
  %s581 = scalar_lea.vmem %s5, 16
  %v582 = vld [vmem:[%s581] sm:$0xff]
  %v584 = vsel %vm509, %v582, 0
  %586 = vmatpush.msra.mxu0 0.0
  %587 = vmatpush.msra.mxu0 0.0
  %588 = vmatpush.msra.mxu0 0.0
  %589 = vmatpush.msra.mxu0 0.0
  %590 = vmatpush.msra.mxu0 0.0
  %591 = vmatpush.msra.mxu0 0.0
  %592 = vmatpush.msra.mxu0 0.0
  %593 = vmatpush.msra.mxu0 0.0
  %594 = vmatpush.msra.mxu0 0.0
  %595 = vmatpush.msra.mxu0 0.0
  %596 = vmatpush.msra.mxu0 0.0
  %597 = vmatpush.msra.mxu0 0.0
  %598 = vmatpush.msra.mxu0 0.0
  %599 = vmatpush.msra.mxu0 0.0
  %600 = vmatpush.msra.mxu0 0.0
  %601 = vmatpush.msra.mxu0 %v579
  %602 = vmatmul.f32.gmra.mxu0 %v584
  %v603 = vpop.f32.mrf.mxu0
  %v604 = vadd.f32 0.0, %v603
  %605 = vdwg.mxu0
  %v606 = vadd.f32 %v554, %v604
  %s607 = scalar_lea.vmem %s4, 96
  %v608 = vld [vmem:[%s607] sm:$0xff]
  %v609 = vld [vmem:[%s607 + $0x8] sm:$0xff]
  %v610 = vld [vmem:[%s607 + $0x10] sm:$0xff]
  %v611 = vld [vmem:[%s607 + $0x18] sm:$0xff]
  %612 = vmatpush.msra.mxu0 0.0
  %613 = vmatpush.msra.mxu0 0.0
  %614 = vmatpush.msra.mxu0 0.0
  %615 = vmatpush.msra.mxu0 0.0
  %616 = vmatpush.msra.mxu0 0.0
  %617 = vmatpush.msra.mxu0 0.0
  %618 = vmatpush.msra.mxu0 0.0
  %619 = vmatpush.msra.mxu0 0.0
  %620 = vmatpush.msra.mxu0 0.0
  %621 = vmatpush.msra.mxu0 0.0
  %622 = vmatpush.msra.mxu0 0.0
  %623 = vmatpush.msra.mxu0 0.0
  %624 = vmatpush.msra.mxu0 %v611
  %625 = vmatpush.msra.mxu0 %v610
  %626 = vmatpush.msra.mxu0 %v609
  %627 = vmatpush.msra.mxu0 %v608
  %628 = vmatmul.f32.gmra.mxu0 %v459
  %v629 = vpop.f32.mrf.mxu0
  %v630 = vadd.f32 0.0, %v629
  %631 = vdwg.mxu0
  %s632 = scalar_lea.vmem %s5, 24
  %v633 = vld [vmem:[%s632] sm:$0xff]
  %v635 = vsel %vm509, %v633, 0
  %637 = vmatpush.msra.mxu0 0.0
  %638 = vmatpush.msra.mxu0 0.0
  %639 = vmatpush.msra.mxu0 0.0
  %640 = vmatpush.msra.mxu0 0.0
  %641 = vmatpush.msra.mxu0 0.0
  %642 = vmatpush.msra.mxu0 0.0
  %643 = vmatpush.msra.mxu0 0.0
  %644 = vmatpush.msra.mxu0 0.0
  %645 = vmatpush.msra.mxu0 0.0
  %646 = vmatpush.msra.mxu0 0.0
  %647 = vmatpush.msra.mxu0 0.0
  %648 = vmatpush.msra.mxu0 0.0
  %649 = vmatpush.msra.mxu0 0.0
  %650 = vmatpush.msra.mxu0 0.0
  %651 = vmatpush.msra.mxu0 0.0
  %652 = vmatpush.msra.mxu0 %v630
  %653 = vmatmul.f32.gmra.mxu0 %v635
  %v654 = vpop.f32.mrf.mxu0
  %v655 = vadd.f32 0.0, %v654
  %656 = vdwg.mxu0
  %v657 = vadd.f32 %v606, %v655
  %s658 = scalar_lea.vmem %s4, 128
  %v659 = vld [vmem:[%s658] sm:$0xff]
  %v660 = vld [vmem:[%s658 + $0x8] sm:$0xff]
  %v661 = vld [vmem:[%s658 + $0x10] sm:$0xff]
  %v662 = vld [vmem:[%s658 + $0x18] sm:$0xff]
  %663 = vmatpush.msra.mxu0 0.0
  %664 = vmatpush.msra.mxu0 0.0
  %665 = vmatpush.msra.mxu0 0.0
  %666 = vmatpush.msra.mxu0 0.0
  %667 = vmatpush.msra.mxu0 0.0
  %668 = vmatpush.msra.mxu0 0.0
  %669 = vmatpush.msra.mxu0 0.0
  %670 = vmatpush.msra.mxu0 0.0
  %671 = vmatpush.msra.mxu0 0.0
  %672 = vmatpush.msra.mxu0 0.0
  %673 = vmatpush.msra.mxu0 0.0
  %674 = vmatpush.msra.mxu0 0.0
  %675 = vmatpush.msra.mxu0 %v662
  %676 = vmatpush.msra.mxu0 %v661
  %677 = vmatpush.msra.mxu0 %v660
  %678 = vmatpush.msra.mxu0 %v659
  %679 = vmatmul.f32.gmra.mxu0 %v459
  %v680 = vpop.f32.mrf.mxu0
  %v681 = vadd.f32 0.0, %v680
  %682 = vdwg.mxu0
  %s683 = scalar_lea.vmem %s5, 32
  %v684 = vld [vmem:[%s683] sm:$0xff]
  %v686 = vsel %vm509, %v684, 0
  %688 = vmatpush.msra.mxu0 0.0
  %689 = vmatpush.msra.mxu0 0.0
  %690 = vmatpush.msra.mxu0 0.0
  %691 = vmatpush.msra.mxu0 0.0
  %692 = vmatpush.msra.mxu0 0.0
  %693 = vmatpush.msra.mxu0 0.0
  %694 = vmatpush.msra.mxu0 0.0
  %695 = vmatpush.msra.mxu0 0.0
  %696 = vmatpush.msra.mxu0 0.0
  %697 = vmatpush.msra.mxu0 0.0
  %698 = vmatpush.msra.mxu0 0.0
  %699 = vmatpush.msra.mxu0 0.0
  %700 = vmatpush.msra.mxu0 0.0
  %701 = vmatpush.msra.mxu0 0.0
  %702 = vmatpush.msra.mxu0 0.0
  %703 = vmatpush.msra.mxu0 %v681
  %704 = vmatmul.f32.gmra.mxu0 %v686
  %v705 = vpop.f32.mrf.mxu0
  %v706 = vadd.f32 0.0, %v705
  %707 = vdwg.mxu0
  %v708 = vadd.f32 %v657, %v706
  %s709 = scalar_lea.vmem %s4, 160
  %v710 = vld [vmem:[%s709] sm:$0xff]
  %v711 = vld [vmem:[%s709 + $0x8] sm:$0xff]
  %v712 = vld [vmem:[%s709 + $0x10] sm:$0xff]
  %v713 = vld [vmem:[%s709 + $0x18] sm:$0xff]
  %714 = vmatpush.msra.mxu0 0.0
  %715 = vmatpush.msra.mxu0 0.0
  %716 = vmatpush.msra.mxu0 0.0
  %717 = vmatpush.msra.mxu0 0.0
  %718 = vmatpush.msra.mxu0 0.0
  %719 = vmatpush.msra.mxu0 0.0
  %720 = vmatpush.msra.mxu0 0.0
  %721 = vmatpush.msra.mxu0 0.0
  %722 = vmatpush.msra.mxu0 0.0
  %723 = vmatpush.msra.mxu0 0.0
  %724 = vmatpush.msra.mxu0 0.0
  %725 = vmatpush.msra.mxu0 0.0
  %726 = vmatpush.msra.mxu0 %v713
  %727 = vmatpush.msra.mxu0 %v712
  %728 = vmatpush.msra.mxu0 %v711
  %729 = vmatpush.msra.mxu0 %v710
  %730 = vmatmul.f32.gmra.mxu0 %v459
  %v731 = vpop.f32.mrf.mxu0
  %v732 = vadd.f32 0.0, %v731
  %733 = vdwg.mxu0
  %s734 = scalar_lea.vmem %s5, 40
  %v735 = vld [vmem:[%s734] sm:$0xff]
  %v737 = vsel %vm509, %v735, 0
  %739 = vmatpush.msra.mxu0 0.0
  %740 = vmatpush.msra.mxu0 0.0
  %741 = vmatpush.msra.mxu0 0.0
  %742 = vmatpush.msra.mxu0 0.0
  %743 = vmatpush.msra.mxu0 0.0
  %744 = vmatpush.msra.mxu0 0.0
  %745 = vmatpush.msra.mxu0 0.0
  %746 = vmatpush.msra.mxu0 0.0
  %747 = vmatpush.msra.mxu0 0.0
  %748 = vmatpush.msra.mxu0 0.0
  %749 = vmatpush.msra.mxu0 0.0
  %750 = vmatpush.msra.mxu0 0.0
  %751 = vmatpush.msra.mxu0 0.0
  %752 = vmatpush.msra.mxu0 0.0
  %753 = vmatpush.msra.mxu0 0.0
  %754 = vmatpush.msra.mxu0 %v732
  %755 = vmatmul.f32.gmra.mxu0 %v737
  %v756 = vpop.f32.mrf.mxu0
  %v757 = vadd.f32 0.0, %v756
  %758 = vdwg.mxu0
  %v759 = vadd.f32 %v708, %v757
  %s760 = scalar_lea.vmem %s4, 192
  %v761 = vld [vmem:[%s760] sm:$0xff]
  %v762 = vld [vmem:[%s760 + $0x8] sm:$0xff]
  %v763 = vld [vmem:[%s760 + $0x10] sm:$0xff]
  %v764 = vld [vmem:[%s760 + $0x18] sm:$0xff]
  %765 = vmatpush.msra.mxu0 0.0
  %766 = vmatpush.msra.mxu0 0.0
  %767 = vmatpush.msra.mxu0 0.0
  %768 = vmatpush.msra.mxu0 0.0
  %769 = vmatpush.msra.mxu0 0.0
  %770 = vmatpush.msra.mxu0 0.0
  %771 = vmatpush.msra.mxu0 0.0
  %772 = vmatpush.msra.mxu0 0.0
  %773 = vmatpush.msra.mxu0 0.0
  %774 = vmatpush.msra.mxu0 0.0
  %775 = vmatpush.msra.mxu0 0.0
  %776 = vmatpush.msra.mxu0 0.0
  %777 = vmatpush.msra.mxu0 %v764
  %778 = vmatpush.msra.mxu0 %v763
  %779 = vmatpush.msra.mxu0 %v762
  %780 = vmatpush.msra.mxu0 %v761
  %781 = vmatmul.f32.gmra.mxu0 %v459
  %v782 = vpop.f32.mrf.mxu0
  %v783 = vadd.f32 0.0, %v782
  %784 = vdwg.mxu0
  %s785 = scalar_lea.vmem %s5, 48
  %v786 = vld [vmem:[%s785] sm:$0xff]
  %v788 = vsel %vm509, %v786, 0
  %790 = vmatpush.msra.mxu0 0.0
  %791 = vmatpush.msra.mxu0 0.0
  %792 = vmatpush.msra.mxu0 0.0
  %793 = vmatpush.msra.mxu0 0.0
  %794 = vmatpush.msra.mxu0 0.0
  %795 = vmatpush.msra.mxu0 0.0
  %796 = vmatpush.msra.mxu0 0.0
  %797 = vmatpush.msra.mxu0 0.0
  %798 = vmatpush.msra.mxu0 0.0
  %799 = vmatpush.msra.mxu0 0.0
  %800 = vmatpush.msra.mxu0 0.0
  %801 = vmatpush.msra.mxu0 0.0
  %802 = vmatpush.msra.mxu0 0.0
  %803 = vmatpush.msra.mxu0 0.0
  %804 = vmatpush.msra.mxu0 0.0
  %805 = vmatpush.msra.mxu0 %v783
  %806 = vmatmul.f32.gmra.mxu0 %v788
  %v807 = vpop.f32.mrf.mxu0
  %v808 = vadd.f32 0.0, %v807
  %809 = vdwg.mxu0
  %v810 = vadd.f32 %v759, %v808
  %s811 = scalar_lea.vmem %s4, 224
  %v812 = vld [vmem:[%s811] sm:$0xff]
  %v813 = vld [vmem:[%s811 + $0x8] sm:$0xff]
  %v814 = vld [vmem:[%s811 + $0x10] sm:$0xff]
  %v815 = vld [vmem:[%s811 + $0x18] sm:$0xff]
  %816 = vmatpush.msra.mxu0 0.0
  %817 = vmatpush.msra.mxu0 0.0
  %818 = vmatpush.msra.mxu0 0.0
  %819 = vmatpush.msra.mxu0 0.0
  %820 = vmatpush.msra.mxu0 0.0
  %821 = vmatpush.msra.mxu0 0.0
  %822 = vmatpush.msra.mxu0 0.0
  %823 = vmatpush.msra.mxu0 0.0
  %824 = vmatpush.msra.mxu0 0.0
  %825 = vmatpush.msra.mxu0 0.0
  %826 = vmatpush.msra.mxu0 0.0
  %827 = vmatpush.msra.mxu0 0.0
  %828 = vmatpush.msra.mxu0 %v815
  %829 = vmatpush.msra.mxu0 %v814
  %830 = vmatpush.msra.mxu0 %v813
  %831 = vmatpush.msra.mxu0 %v812
  %832 = vmatmul.f32.gmra.mxu0 %v459
  %v833 = vpop.f32.mrf.mxu0
  %v834 = vadd.f32 0.0, %v833
  %835 = vdwg.mxu0
  %s836 = scalar_lea.vmem %s5, 56
  %v837 = vld [vmem:[%s836] sm:$0xff]
  %v839 = vsel %vm509, %v837, 0
  %841 = vmatpush.msra.mxu0 0.0
  %842 = vmatpush.msra.mxu0 0.0
  %843 = vmatpush.msra.mxu0 0.0
  %844 = vmatpush.msra.mxu0 0.0
  %845 = vmatpush.msra.mxu0 0.0
  %846 = vmatpush.msra.mxu0 0.0
  %847 = vmatpush.msra.mxu0 0.0
  %848 = vmatpush.msra.mxu0 0.0
  %849 = vmatpush.msra.mxu0 0.0
  %850 = vmatpush.msra.mxu0 0.0
  %851 = vmatpush.msra.mxu0 0.0
  %852 = vmatpush.msra.mxu0 0.0
  %853 = vmatpush.msra.mxu0 0.0
  %854 = vmatpush.msra.mxu0 0.0
  %855 = vmatpush.msra.mxu0 0.0
  %856 = vmatpush.msra.mxu0 %v834
  %857 = vmatmul.f32.gmra.mxu0 %v839
  %v858 = vpop.f32.mrf.mxu0
  %v859 = vadd.f32 0.0, %v858
  %860 = vdwg.mxu0
  %v861 = vadd.f32 %v810, %v859
  %s862 = scalar_lea.vmem %s4, 256
  %v863 = vld [vmem:[%s862] sm:$0xff]
  %v864 = vld [vmem:[%s862 + $0x8] sm:$0xff]
  %v865 = vld [vmem:[%s862 + $0x10] sm:$0xff]
  %v866 = vld [vmem:[%s862 + $0x18] sm:$0xff]
  %867 = vmatpush.msra.mxu0 0.0
  %868 = vmatpush.msra.mxu0 0.0
  %869 = vmatpush.msra.mxu0 0.0
  %870 = vmatpush.msra.mxu0 0.0
  %871 = vmatpush.msra.mxu0 0.0
  %872 = vmatpush.msra.mxu0 0.0
  %873 = vmatpush.msra.mxu0 0.0
  %874 = vmatpush.msra.mxu0 0.0
  %875 = vmatpush.msra.mxu0 0.0
  %876 = vmatpush.msra.mxu0 0.0
  %877 = vmatpush.msra.mxu0 0.0
  %878 = vmatpush.msra.mxu0 0.0
  %879 = vmatpush.msra.mxu0 %v866
  %880 = vmatpush.msra.mxu0 %v865
  %881 = vmatpush.msra.mxu0 %v864
  %882 = vmatpush.msra.mxu0 %v863
  %883 = vmatmul.f32.gmra.mxu0 %v459
  %v884 = vpop.f32.mrf.mxu0
  %v885 = vadd.f32 0.0, %v884
  %886 = vdwg.mxu0
  %s887 = scalar_lea.vmem %s5, 64
  %v888 = vld [vmem:[%s887] sm:$0xff]
  %v890 = vsel %vm509, %v888, 0
  %892 = vmatpush.msra.mxu0 0.0
  %893 = vmatpush.msra.mxu0 0.0
  %894 = vmatpush.msra.mxu0 0.0
  %895 = vmatpush.msra.mxu0 0.0
  %896 = vmatpush.msra.mxu0 0.0
  %897 = vmatpush.msra.mxu0 0.0
  %898 = vmatpush.msra.mxu0 0.0
  %899 = vmatpush.msra.mxu0 0.0
  %900 = vmatpush.msra.mxu0 0.0
  %901 = vmatpush.msra.mxu0 0.0
  %902 = vmatpush.msra.mxu0 0.0
  %903 = vmatpush.msra.mxu0 0.0
  %904 = vmatpush.msra.mxu0 0.0
  %905 = vmatpush.msra.mxu0 0.0
  %906 = vmatpush.msra.mxu0 0.0
  %907 = vmatpush.msra.mxu0 %v885
  %908 = vmatmul.f32.gmra.mxu0 %v890
  %v909 = vpop.f32.mrf.mxu0
  %v910 = vadd.f32 0.0, %v909
  %911 = vdwg.mxu0
  %v912 = vadd.f32 %v861, %v910
  %v913 = vld [vmem:[%s6] sm:$0xff]
  %915 = vset.pattern.permute.xlu0 0
  %916 = vperm.xlu0 %915, %v913
  %v917 = vpop.permute.xlu0 %916
  %v919 = vadd.f32 %v912, %v917
  %v920 = vmax.f32 %v919, 0.0
  %v921 = vld [vmem:[%s7] sm:$0xff]
  %v922 = vld [vmem:[%s7 + $0x8] sm:$0xff]
  %v923 = vld [vmem:[%s7 + $0x10] sm:$0xff]
  %v924 = vld [vmem:[%s7 + $0x18] sm:$0xff]
  %v926 = vsel %vm457, %v920, 0
  %928 = vmatpush.msra.mxu0 0.0
  %929 = vmatpush.msra.mxu0 0.0
  %930 = vmatpush.msra.mxu0 0.0
  %931 = vmatpush.msra.mxu0 0.0
  %932 = vmatpush.msra.mxu0 0.0
  %933 = vmatpush.msra.mxu0 0.0
  %934 = vmatpush.msra.mxu0 0.0
  %935 = vmatpush.msra.mxu0 0.0
  %936 = vmatpush.msra.mxu0 0.0
  %937 = vmatpush.msra.mxu0 0.0
  %938 = vmatpush.msra.mxu0 0.0
  %939 = vmatpush.msra.mxu0 0.0
  %940 = vmatpush.msra.mxu0 %v924
  %941 = vmatpush.msra.mxu0 %v923
  %942 = vmatpush.msra.mxu0 %v922
  %943 = vmatpush.msra.mxu0 %v921
  %944 = vmatmul.f32.gmra.mxu0 %v926
  %v945 = vpop.f32.mrf.mxu0
  %v946 = vadd.f32 0.0, %v945
  %947 = vdwg.mxu0
  %v948 = vld [vmem:[%s8] sm:$0xff]
  %s949 = scalar_lea.vmem %s7, 32
  %v950 = vld [vmem:[%s949] sm:$0xff]
  %v951 = vld [vmem:[%s949 + $0x8] sm:$0xff]
  %v952 = vld [vmem:[%s949 + $0x10] sm:$0xff]
  %v953 = vld [vmem:[%s949 + $0x18] sm:$0xff]
  %954 = vmatpush.msra.mxu0 0.0
  %955 = vmatpush.msra.mxu0 0.0
  %956 = vmatpush.msra.mxu0 0.0
  %957 = vmatpush.msra.mxu0 0.0
  %958 = vmatpush.msra.mxu0 0.0
  %959 = vmatpush.msra.mxu0 0.0
  %960 = vmatpush.msra.mxu0 0.0
  %961 = vmatpush.msra.mxu0 0.0
  %962 = vmatpush.msra.mxu0 0.0
  %963 = vmatpush.msra.mxu0 0.0
  %964 = vmatpush.msra.mxu0 0.0
  %965 = vmatpush.msra.mxu0 0.0
  %966 = vmatpush.msra.mxu0 %v953
  %967 = vmatpush.msra.mxu0 %v952
  %968 = vmatpush.msra.mxu0 %v951
  %969 = vmatpush.msra.mxu0 %v950
  %970 = vmatmul.f32.gmra.mxu0 %v926
  %v971 = vpop.f32.mrf.mxu0
  %v972 = vadd.f32 0.0, %v971
  %973 = vdwg.mxu0
  %s974 = scalar_lea.vmem %s8, 8
  %v975 = vld [vmem:[%s974] sm:$0xff]
  %v977 = vsel %vm509, %v975, 0
  %979 = vmatpush.msra.mxu0 0.0
  %980 = vmatpush.msra.mxu0 0.0
  %981 = vmatpush.msra.mxu0 0.0
  %982 = vmatpush.msra.mxu0 0.0
  %983 = vmatpush.msra.mxu0 0.0
  %984 = vmatpush.msra.mxu0 0.0
  %985 = vmatpush.msra.mxu0 0.0
  %986 = vmatpush.msra.mxu0 0.0
  %987 = vmatpush.msra.mxu0 0.0
  %988 = vmatpush.msra.mxu0 0.0
  %989 = vmatpush.msra.mxu0 0.0
  %990 = vmatpush.msra.mxu0 0.0
  %991 = vmatpush.msra.mxu0 0.0
  %992 = vmatpush.msra.mxu0 0.0
  %993 = vmatpush.msra.mxu0 0.0
  %994 = vmatpush.msra.mxu0 %v972
  %995 = vmatmul.f32.gmra.mxu0 %v977
  %v996 = vpop.f32.mrf.mxu0
  %v997 = vadd.f32 0.0, %v996
  %998 = vdwg.mxu0
  %v1000 = vsel %vm509, %v948, 0
  %1002 = vmatpush.msra.mxu0 0.0
  %1003 = vmatpush.msra.mxu0 0.0
  %1004 = vmatpush.msra.mxu0 0.0
  %1005 = vmatpush.msra.mxu0 0.0
  %1006 = vmatpush.msra.mxu0 0.0
  %1007 = vmatpush.msra.mxu0 0.0
  %1008 = vmatpush.msra.mxu0 0.0
  %1009 = vmatpush.msra.mxu0 0.0
  %1010 = vmatpush.msra.mxu0 0.0
  %1011 = vmatpush.msra.mxu0 0.0
  %1012 = vmatpush.msra.mxu0 0.0
  %1013 = vmatpush.msra.mxu0 0.0
  %1014 = vmatpush.msra.mxu0 0.0
  %1015 = vmatpush.msra.mxu0 0.0
  %1016 = vmatpush.msra.mxu0 0.0
  %1017 = vmatpush.msra.mxu0 %v946
  %1018 = vmatmul.f32.gmra.mxu0 %v1000
  %v1019 = vpop.f32.mrf.mxu0
  %v1020 = vadd.f32 %v997, %v1019
  %1021 = vdwg.mxu0
  %s1022 = scalar_lea.vmem %s7, 64
  %v1023 = vld [vmem:[%s1022] sm:$0xff]
  %v1024 = vld [vmem:[%s1022 + $0x8] sm:$0xff]
  %v1025 = vld [vmem:[%s1022 + $0x10] sm:$0xff]
  %v1026 = vld [vmem:[%s1022 + $0x18] sm:$0xff]
  %1027 = vmatpush.msra.mxu0 0.0
  %1028 = vmatpush.msra.mxu0 0.0
  %1029 = vmatpush.msra.mxu0 0.0
  %1030 = vmatpush.msra.mxu0 0.0
  %1031 = vmatpush.msra.mxu0 0.0
  %1032 = vmatpush.msra.mxu0 0.0
  %1033 = vmatpush.msra.mxu0 0.0
  %1034 = vmatpush.msra.mxu0 0.0
  %1035 = vmatpush.msra.mxu0 0.0
  %1036 = vmatpush.msra.mxu0 0.0
  %1037 = vmatpush.msra.mxu0 0.0
  %1038 = vmatpush.msra.mxu0 0.0
  %1039 = vmatpush.msra.mxu0 %v1026
  %1040 = vmatpush.msra.mxu0 %v1025
  %1041 = vmatpush.msra.mxu0 %v1024
  %1042 = vmatpush.msra.mxu0 %v1023
  %1043 = vmatmul.f32.gmra.mxu0 %v926
  %v1044 = vpop.f32.mrf.mxu0
  %v1045 = vadd.f32 0.0, %v1044
  %1046 = vdwg.mxu0
  %s1047 = scalar_lea.vmem %s8, 16
  %v1048 = vld [vmem:[%s1047] sm:$0xff]
  %v1050 = vsel %vm509, %v1048, 0
  %1052 = vmatpush.msra.mxu0 0.0
  %1053 = vmatpush.msra.mxu0 0.0
  %1054 = vmatpush.msra.mxu0 0.0
  %1055 = vmatpush.msra.mxu0 0.0
  %1056 = vmatpush.msra.mxu0 0.0
  %1057 = vmatpush.msra.mxu0 0.0
  %1058 = vmatpush.msra.mxu0 0.0
  %1059 = vmatpush.msra.mxu0 0.0
  %1060 = vmatpush.msra.mxu0 0.0
  %1061 = vmatpush.msra.mxu0 0.0
  %1062 = vmatpush.msra.mxu0 0.0
  %1063 = vmatpush.msra.mxu0 0.0
  %1064 = vmatpush.msra.mxu0 0.0
  %1065 = vmatpush.msra.mxu0 0.0
  %1066 = vmatpush.msra.mxu0 0.0
  %1067 = vmatpush.msra.mxu0 %v1045
  %1068 = vmatmul.f32.gmra.mxu0 %v1050
  %v1069 = vpop.f32.mrf.mxu0
  %v1070 = vadd.f32 0.0, %v1069
  %1071 = vdwg.mxu0
  %v1072 = vadd.f32 %v1020, %v1070
  %s1073 = scalar_lea.vmem %s7, 96
  %v1074 = vld [vmem:[%s1073] sm:$0xff]
  %v1075 = vld [vmem:[%s1073 + $0x8] sm:$0xff]
  %v1076 = vld [vmem:[%s1073 + $0x10] sm:$0xff]
  %v1077 = vld [vmem:[%s1073 + $0x18] sm:$0xff]
  %1078 = vmatpush.msra.mxu0 0.0
  %1079 = vmatpush.msra.mxu0 0.0
  %1080 = vmatpush.msra.mxu0 0.0
  %1081 = vmatpush.msra.mxu0 0.0
  %1082 = vmatpush.msra.mxu0 0.0
  %1083 = vmatpush.msra.mxu0 0.0
  %1084 = vmatpush.msra.mxu0 0.0
  %1085 = vmatpush.msra.mxu0 0.0
  %1086 = vmatpush.msra.mxu0 0.0
  %1087 = vmatpush.msra.mxu0 0.0
  %1088 = vmatpush.msra.mxu0 0.0
  %1089 = vmatpush.msra.mxu0 0.0
  %1090 = vmatpush.msra.mxu0 %v1077
  %1091 = vmatpush.msra.mxu0 %v1076
  %1092 = vmatpush.msra.mxu0 %v1075
  %1093 = vmatpush.msra.mxu0 %v1074
  %1094 = vmatmul.f32.gmra.mxu0 %v926
  %v1095 = vpop.f32.mrf.mxu0
  %v1096 = vadd.f32 0.0, %v1095
  %1097 = vdwg.mxu0
  %s1098 = scalar_lea.vmem %s8, 24
  %v1099 = vld [vmem:[%s1098] sm:$0xff]
  %v1101 = vsel %vm509, %v1099, 0
  %1103 = vmatpush.msra.mxu0 0.0
  %1104 = vmatpush.msra.mxu0 0.0
  %1105 = vmatpush.msra.mxu0 0.0
  %1106 = vmatpush.msra.mxu0 0.0
  %1107 = vmatpush.msra.mxu0 0.0
  %1108 = vmatpush.msra.mxu0 0.0
  %1109 = vmatpush.msra.mxu0 0.0
  %1110 = vmatpush.msra.mxu0 0.0
  %1111 = vmatpush.msra.mxu0 0.0
  %1112 = vmatpush.msra.mxu0 0.0
  %1113 = vmatpush.msra.mxu0 0.0
  %1114 = vmatpush.msra.mxu0 0.0
  %1115 = vmatpush.msra.mxu0 0.0
  %1116 = vmatpush.msra.mxu0 0.0
  %1117 = vmatpush.msra.mxu0 0.0
  %1118 = vmatpush.msra.mxu0 %v1096
  %1119 = vmatmul.f32.gmra.mxu0 %v1101
  %v1120 = vpop.f32.mrf.mxu0
  %v1121 = vadd.f32 0.0, %v1120
  %1122 = vdwg.mxu0
  %v1123 = vadd.f32 %v1072, %v1121
  %s1124 = scalar_lea.vmem %s7, 128
  %v1125 = vld [vmem:[%s1124] sm:$0xff]
  %v1126 = vld [vmem:[%s1124 + $0x8] sm:$0xff]
  %v1127 = vld [vmem:[%s1124 + $0x10] sm:$0xff]
  %v1128 = vld [vmem:[%s1124 + $0x18] sm:$0xff]
  %1129 = vmatpush.msra.mxu0 0.0
  %1130 = vmatpush.msra.mxu0 0.0
  %1131 = vmatpush.msra.mxu0 0.0
  %1132 = vmatpush.msra.mxu0 0.0
  %1133 = vmatpush.msra.mxu0 0.0
  %1134 = vmatpush.msra.mxu0 0.0
  %1135 = vmatpush.msra.mxu0 0.0
  %1136 = vmatpush.msra.mxu0 0.0
  %1137 = vmatpush.msra.mxu0 0.0
  %1138 = vmatpush.msra.mxu0 0.0
  %1139 = vmatpush.msra.mxu0 0.0
  %1140 = vmatpush.msra.mxu0 0.0
  %1141 = vmatpush.msra.mxu0 %v1128
  %1142 = vmatpush.msra.mxu0 %v1127
  %1143 = vmatpush.msra.mxu0 %v1126
  %1144 = vmatpush.msra.mxu0 %v1125
  %1145 = vmatmul.f32.gmra.mxu0 %v926
  %v1146 = vpop.f32.mrf.mxu0
  %v1147 = vadd.f32 0.0, %v1146
  %1148 = vdwg.mxu0
  %s1149 = scalar_lea.vmem %s8, 32
  %v1150 = vld [vmem:[%s1149] sm:$0xff]
  %v1152 = vsel %vm509, %v1150, 0
  %1154 = vmatpush.msra.mxu0 0.0
  %1155 = vmatpush.msra.mxu0 0.0
  %1156 = vmatpush.msra.mxu0 0.0
  %1157 = vmatpush.msra.mxu0 0.0
  %1158 = vmatpush.msra.mxu0 0.0
  %1159 = vmatpush.msra.mxu0 0.0
  %1160 = vmatpush.msra.mxu0 0.0
  %1161 = vmatpush.msra.mxu0 0.0
  %1162 = vmatpush.msra.mxu0 0.0
  %1163 = vmatpush.msra.mxu0 0.0
  %1164 = vmatpush.msra.mxu0 0.0
  %1165 = vmatpush.msra.mxu0 0.0
  %1166 = vmatpush.msra.mxu0 0.0
  %1167 = vmatpush.msra.mxu0 0.0
  %1168 = vmatpush.msra.mxu0 0.0
  %1169 = vmatpush.msra.mxu0 %v1147
  %1170 = vmatmul.f32.gmra.mxu0 %v1152
  %v1171 = vpop.f32.mrf.mxu0
  %v1172 = vadd.f32 0.0, %v1171
  %1173 = vdwg.mxu0
  %v1174 = vadd.f32 %v1123, %v1172
  %s1175 = scalar_lea.vmem %s7, 160
  %v1176 = vld [vmem:[%s1175] sm:$0xff]
  %v1177 = vld [vmem:[%s1175 + $0x8] sm:$0xff]
  %v1178 = vld [vmem:[%s1175 + $0x10] sm:$0xff]
  %v1179 = vld [vmem:[%s1175 + $0x18] sm:$0xff]
  %1180 = vmatpush.msra.mxu0 0.0
  %1181 = vmatpush.msra.mxu0 0.0
  %1182 = vmatpush.msra.mxu0 0.0
  %1183 = vmatpush.msra.mxu0 0.0
  %1184 = vmatpush.msra.mxu0 0.0
  %1185 = vmatpush.msra.mxu0 0.0
  %1186 = vmatpush.msra.mxu0 0.0
  %1187 = vmatpush.msra.mxu0 0.0
  %1188 = vmatpush.msra.mxu0 0.0
  %1189 = vmatpush.msra.mxu0 0.0
  %1190 = vmatpush.msra.mxu0 0.0
  %1191 = vmatpush.msra.mxu0 0.0
  %1192 = vmatpush.msra.mxu0 %v1179
  %1193 = vmatpush.msra.mxu0 %v1178
  %1194 = vmatpush.msra.mxu0 %v1177
  %1195 = vmatpush.msra.mxu0 %v1176
  %1196 = vmatmul.f32.gmra.mxu0 %v926
  %v1197 = vpop.f32.mrf.mxu0
  %v1198 = vadd.f32 0.0, %v1197
  %1199 = vdwg.mxu0
  %s1200 = scalar_lea.vmem %s8, 40
  %v1201 = vld [vmem:[%s1200] sm:$0xff]
  %v1203 = vsel %vm509, %v1201, 0
  %1205 = vmatpush.msra.mxu0 0.0
  %1206 = vmatpush.msra.mxu0 0.0
  %1207 = vmatpush.msra.mxu0 0.0
  %1208 = vmatpush.msra.mxu0 0.0
  %1209 = vmatpush.msra.mxu0 0.0
  %1210 = vmatpush.msra.mxu0 0.0
  %1211 = vmatpush.msra.mxu0 0.0
  %1212 = vmatpush.msra.mxu0 0.0
  %1213 = vmatpush.msra.mxu0 0.0
  %1214 = vmatpush.msra.mxu0 0.0
  %1215 = vmatpush.msra.mxu0 0.0
  %1216 = vmatpush.msra.mxu0 0.0
  %1217 = vmatpush.msra.mxu0 0.0
  %1218 = vmatpush.msra.mxu0 0.0
  %1219 = vmatpush.msra.mxu0 0.0
  %1220 = vmatpush.msra.mxu0 %v1198
  %1221 = vmatmul.f32.gmra.mxu0 %v1203
  %v1222 = vpop.f32.mrf.mxu0
  %v1223 = vadd.f32 0.0, %v1222
  %1224 = vdwg.mxu0
  %v1225 = vadd.f32 %v1174, %v1223
  %s1226 = scalar_lea.vmem %s7, 192
  %v1227 = vld [vmem:[%s1226] sm:$0xff]
  %v1228 = vld [vmem:[%s1226 + $0x8] sm:$0xff]
  %v1229 = vld [vmem:[%s1226 + $0x10] sm:$0xff]
  %v1230 = vld [vmem:[%s1226 + $0x18] sm:$0xff]
  %1231 = vmatpush.msra.mxu0 0.0
  %1232 = vmatpush.msra.mxu0 0.0
  %1233 = vmatpush.msra.mxu0 0.0
  %1234 = vmatpush.msra.mxu0 0.0
  %1235 = vmatpush.msra.mxu0 0.0
  %1236 = vmatpush.msra.mxu0 0.0
  %1237 = vmatpush.msra.mxu0 0.0
  %1238 = vmatpush.msra.mxu0 0.0
  %1239 = vmatpush.msra.mxu0 0.0
  %1240 = vmatpush.msra.mxu0 0.0
  %1241 = vmatpush.msra.mxu0 0.0
  %1242 = vmatpush.msra.mxu0 0.0
  %1243 = vmatpush.msra.mxu0 %v1230
  %1244 = vmatpush.msra.mxu0 %v1229
  %1245 = vmatpush.msra.mxu0 %v1228
  %1246 = vmatpush.msra.mxu0 %v1227
  %1247 = vmatmul.f32.gmra.mxu0 %v926
  %v1248 = vpop.f32.mrf.mxu0
  %v1249 = vadd.f32 0.0, %v1248
  %1250 = vdwg.mxu0
  %s1251 = scalar_lea.vmem %s8, 48
  %v1252 = vld [vmem:[%s1251] sm:$0xff]
  %v1254 = vsel %vm509, %v1252, 0
  %1256 = vmatpush.msra.mxu0 0.0
  %1257 = vmatpush.msra.mxu0 0.0
  %1258 = vmatpush.msra.mxu0 0.0
  %1259 = vmatpush.msra.mxu0 0.0
  %1260 = vmatpush.msra.mxu0 0.0
  %1261 = vmatpush.msra.mxu0 0.0
  %1262 = vmatpush.msra.mxu0 0.0
  %1263 = vmatpush.msra.mxu0 0.0
  %1264 = vmatpush.msra.mxu0 0.0
  %1265 = vmatpush.msra.mxu0 0.0
  %1266 = vmatpush.msra.mxu0 0.0
  %1267 = vmatpush.msra.mxu0 0.0
  %1268 = vmatpush.msra.mxu0 0.0
  %1269 = vmatpush.msra.mxu0 0.0
  %1270 = vmatpush.msra.mxu0 0.0
  %1271 = vmatpush.msra.mxu0 %v1249
  %1272 = vmatmul.f32.gmra.mxu0 %v1254
  %v1273 = vpop.f32.mrf.mxu0
  %v1274 = vadd.f32 0.0, %v1273
  %1275 = vdwg.mxu0
  %v1276 = vadd.f32 %v1225, %v1274
  %s1277 = scalar_lea.vmem %s7, 224
  %v1278 = vld [vmem:[%s1277] sm:$0xff]
  %v1279 = vld [vmem:[%s1277 + $0x8] sm:$0xff]
  %v1280 = vld [vmem:[%s1277 + $0x10] sm:$0xff]
  %v1281 = vld [vmem:[%s1277 + $0x18] sm:$0xff]
  %1282 = vmatpush.msra.mxu0 0.0
  %1283 = vmatpush.msra.mxu0 0.0
  %1284 = vmatpush.msra.mxu0 0.0
  %1285 = vmatpush.msra.mxu0 0.0
  %1286 = vmatpush.msra.mxu0 0.0
  %1287 = vmatpush.msra.mxu0 0.0
  %1288 = vmatpush.msra.mxu0 0.0
  %1289 = vmatpush.msra.mxu0 0.0
  %1290 = vmatpush.msra.mxu0 0.0
  %1291 = vmatpush.msra.mxu0 0.0
  %1292 = vmatpush.msra.mxu0 0.0
  %1293 = vmatpush.msra.mxu0 0.0
  %1294 = vmatpush.msra.mxu0 %v1281
  %1295 = vmatpush.msra.mxu0 %v1280
  %1296 = vmatpush.msra.mxu0 %v1279
  %1297 = vmatpush.msra.mxu0 %v1278
  %1298 = vmatmul.f32.gmra.mxu0 %v926
  %v1299 = vpop.f32.mrf.mxu0
  %v1300 = vadd.f32 0.0, %v1299
  %1301 = vdwg.mxu0
  %s1302 = scalar_lea.vmem %s8, 56
  %v1303 = vld [vmem:[%s1302] sm:$0xff]
  %v1305 = vsel %vm509, %v1303, 0
  %1307 = vmatpush.msra.mxu0 0.0
  %1308 = vmatpush.msra.mxu0 0.0
  %1309 = vmatpush.msra.mxu0 0.0
  %1310 = vmatpush.msra.mxu0 0.0
  %1311 = vmatpush.msra.mxu0 0.0
  %1312 = vmatpush.msra.mxu0 0.0
  %1313 = vmatpush.msra.mxu0 0.0
  %1314 = vmatpush.msra.mxu0 0.0
  %1315 = vmatpush.msra.mxu0 0.0
  %1316 = vmatpush.msra.mxu0 0.0
  %1317 = vmatpush.msra.mxu0 0.0
  %1318 = vmatpush.msra.mxu0 0.0
  %1319 = vmatpush.msra.mxu0 0.0
  %1320 = vmatpush.msra.mxu0 0.0
  %1321 = vmatpush.msra.mxu0 0.0
  %1322 = vmatpush.msra.mxu0 %v1300
  %1323 = vmatmul.f32.gmra.mxu0 %v1305
  %v1324 = vpop.f32.mrf.mxu0
  %v1325 = vadd.f32 0.0, %v1324
  %1326 = vdwg.mxu0
  %v1327 = vadd.f32 %v1276, %v1325
  %s1328 = scalar_lea.vmem %s7, 256
  %v1329 = vld [vmem:[%s1328] sm:$0xff]
  %v1330 = vld [vmem:[%s1328 + $0x8] sm:$0xff]
  %v1331 = vld [vmem:[%s1328 + $0x10] sm:$0xff]
  %v1332 = vld [vmem:[%s1328 + $0x18] sm:$0xff]
  %1333 = vmatpush.msra.mxu0 0.0
  %1334 = vmatpush.msra.mxu0 0.0
  %1335 = vmatpush.msra.mxu0 0.0
  %1336 = vmatpush.msra.mxu0 0.0
  %1337 = vmatpush.msra.mxu0 0.0
  %1338 = vmatpush.msra.mxu0 0.0
  %1339 = vmatpush.msra.mxu0 0.0
  %1340 = vmatpush.msra.mxu0 0.0
  %1341 = vmatpush.msra.mxu0 0.0
  %1342 = vmatpush.msra.mxu0 0.0
  %1343 = vmatpush.msra.mxu0 0.0
  %1344 = vmatpush.msra.mxu0 0.0
  %1345 = vmatpush.msra.mxu0 %v1332
  %1346 = vmatpush.msra.mxu0 %v1331
  %1347 = vmatpush.msra.mxu0 %v1330
  %1348 = vmatpush.msra.mxu0 %v1329
  %1349 = vmatmul.f32.gmra.mxu0 %v926
  %v1350 = vpop.f32.mrf.mxu0
  %v1351 = vadd.f32 0.0, %v1350
  %1352 = vdwg.mxu0
  %s1353 = scalar_lea.vmem %s8, 64
  %v1354 = vld [vmem:[%s1353] sm:$0xff]
  %v1356 = vsel %vm509, %v1354, 0
  %1358 = vmatpush.msra.mxu0 0.0
  %1359 = vmatpush.msra.mxu0 0.0
  %1360 = vmatpush.msra.mxu0 0.0
  %1361 = vmatpush.msra.mxu0 0.0
  %1362 = vmatpush.msra.mxu0 0.0
  %1363 = vmatpush.msra.mxu0 0.0
  %1364 = vmatpush.msra.mxu0 0.0
  %1365 = vmatpush.msra.mxu0 0.0
  %1366 = vmatpush.msra.mxu0 0.0
  %1367 = vmatpush.msra.mxu0 0.0
  %1368 = vmatpush.msra.mxu0 0.0
  %1369 = vmatpush.msra.mxu0 0.0
  %1370 = vmatpush.msra.mxu0 0.0
  %1371 = vmatpush.msra.mxu0 0.0
  %1372 = vmatpush.msra.mxu0 0.0
  %1373 = vmatpush.msra.mxu0 %v1351
  %1374 = vmatmul.f32.gmra.mxu0 %v1356
  %v1375 = vpop.f32.mrf.mxu0
  %v1376 = vadd.f32 0.0, %v1375
  %1377 = vdwg.mxu0
  %v1378 = vadd.f32 %v1327, %v1376
  %v1379 = vld [vmem:[%s9] sm:$0xff]
  %1381 = vset.pattern.permute.xlu0 0
  %1382 = vperm.xlu0 %1381, %v1379
  %v1383 = vpop.permute.xlu0 %1382
  %v1385 = vadd.f32 %v1378, %v1383
  %v1386 = vadd.f32 %v1385, %v452
  %v1387 = vmax.f32 %v1386, 0.0
  %v1388 = vld [vmem:[%s10] sm:$0xff]
  %v1389 = vld [vmem:[%s10 + $0x8] sm:$0xff]
  %v1390 = vld [vmem:[%s10 + $0x10] sm:$0xff]
  %v1391 = vld [vmem:[%s10 + $0x18] sm:$0xff]
  %v1393 = vsel %vm457, %v1387, 0
  %1395 = vmatpush.msra.mxu0 0.0
  %1396 = vmatpush.msra.mxu0 0.0
  %1397 = vmatpush.msra.mxu0 0.0
  %1398 = vmatpush.msra.mxu0 0.0
  %1399 = vmatpush.msra.mxu0 0.0
  %1400 = vmatpush.msra.mxu0 0.0
  %1401 = vmatpush.msra.mxu0 0.0
  %1402 = vmatpush.msra.mxu0 0.0
  %1403 = vmatpush.msra.mxu0 0.0
  %1404 = vmatpush.msra.mxu0 0.0
  %1405 = vmatpush.msra.mxu0 0.0
  %1406 = vmatpush.msra.mxu0 0.0
  %1407 = vmatpush.msra.mxu0 %v1391
  %1408 = vmatpush.msra.mxu0 %v1390
  %1409 = vmatpush.msra.mxu0 %v1389
  %1410 = vmatpush.msra.mxu0 %v1388
  %1411 = vmatmul.f32.gmra.mxu0 %v1393
  %v1412 = vpop.f32.mrf.mxu0
  %v1413 = vadd.f32 0.0, %v1412
  %1414 = vdwg.mxu0
  %v1415 = vld [vmem:[%s11] sm:$0xff]
  %v1416 = vld [vmem:[%s11 + $0x8] sm:$0xff]
  %s1417 = scalar_lea.vmem %s10, 32
  %v1418 = vld [vmem:[%s1417] sm:$0xff]
  %v1419 = vld [vmem:[%s1417 + $0x8] sm:$0xff]
  %v1420 = vld [vmem:[%s1417 + $0x10] sm:$0xff]
  %v1421 = vld [vmem:[%s1417 + $0x18] sm:$0xff]
  %1422 = vmatpush.msra.mxu0 0.0
  %1423 = vmatpush.msra.mxu0 0.0
  %1424 = vmatpush.msra.mxu0 0.0
  %1425 = vmatpush.msra.mxu0 0.0
  %1426 = vmatpush.msra.mxu0 0.0
  %1427 = vmatpush.msra.mxu0 0.0
  %1428 = vmatpush.msra.mxu0 0.0
  %1429 = vmatpush.msra.mxu0 0.0
  %1430 = vmatpush.msra.mxu0 0.0
  %1431 = vmatpush.msra.mxu0 0.0
  %1432 = vmatpush.msra.mxu0 0.0
  %1433 = vmatpush.msra.mxu0 0.0
  %1434 = vmatpush.msra.mxu0 %v1421
  %1435 = vmatpush.msra.mxu0 %v1420
  %1436 = vmatpush.msra.mxu0 %v1419
  %1437 = vmatpush.msra.mxu0 %v1418
  %1438 = vmatmul.f32.gmra.mxu0 %v1393
  %v1439 = vpop.f32.mrf.mxu0
  %v1440 = vadd.f32 0.0, %v1439
  %1441 = vdwg.mxu0
  %s1442 = scalar_lea.vmem %s11, 16
  %v1443 = vld [vmem:[%s1442] sm:$0xff]
  %v1444 = vld [vmem:[%s1442 + $0x8] sm:$0xff]
  %v1446 = vsel %vm509, %v1443, 0
  %v1449 = vsel %vm509, %v1444, 0
  %1451 = vmatpush.msra.mxu0 0.0
  %1452 = vmatpush.msra.mxu0 0.0
  %1453 = vmatpush.msra.mxu0 0.0
  %1454 = vmatpush.msra.mxu0 0.0
  %1455 = vmatpush.msra.mxu0 0.0
  %1456 = vmatpush.msra.mxu0 0.0
  %1457 = vmatpush.msra.mxu0 0.0
  %1458 = vmatpush.msra.mxu0 0.0
  %1459 = vmatpush.msra.mxu0 0.0
  %1460 = vmatpush.msra.mxu0 0.0
  %1461 = vmatpush.msra.mxu0 0.0
  %1462 = vmatpush.msra.mxu0 0.0
  %1463 = vmatpush.msra.mxu0 0.0
  %1464 = vmatpush.msra.mxu0 0.0
  %1465 = vmatpush.msra.mxu0 0.0
  %1466 = vmatpush.msra.mxu0 %v1440
  %1467 = vmatmul.f32.gmra.mxu0 %v1446
  %v1468 = vpop.f32.mrf.mxu0
  %v1469 = vadd.f32 0.0, %v1468
  %1470 = vmatmul.f32.gmra.mxu0 %v1449
  %v1471 = vpop.f32.mrf.mxu0
  %v1472 = vadd.f32 0.0, %v1471
  %1473 = vdwg.mxu0
  %v1475 = vsel %vm509, %v1415, 0
  %v1478 = vsel %vm509, %v1416, 0
  %1480 = vmatpush.msra.mxu0 0.0
  %1481 = vmatpush.msra.mxu0 0.0
  %1482 = vmatpush.msra.mxu0 0.0
  %1483 = vmatpush.msra.mxu0 0.0
  %1484 = vmatpush.msra.mxu0 0.0
  %1485 = vmatpush.msra.mxu0 0.0
  %1486 = vmatpush.msra.mxu0 0.0
  %1487 = vmatpush.msra.mxu0 0.0
  %1488 = vmatpush.msra.mxu0 0.0
  %1489 = vmatpush.msra.mxu0 0.0
  %1490 = vmatpush.msra.mxu0 0.0
  %1491 = vmatpush.msra.mxu0 0.0
  %1492 = vmatpush.msra.mxu0 0.0
  %1493 = vmatpush.msra.mxu0 0.0
  %1494 = vmatpush.msra.mxu0 0.0
  %1495 = vmatpush.msra.mxu0 %v1413
  %1496 = vmatmul.f32.gmra.mxu0 %v1475
  %v1497 = vpop.f32.mrf.mxu0
  %v1498 = vadd.f32 %v1469, %v1497
  %1499 = vmatmul.f32.gmra.mxu0 %v1478
  %v1500 = vpop.f32.mrf.mxu0
  %v1501 = vadd.f32 %v1472, %v1500
  %1502 = vdwg.mxu0
  %s1503 = scalar_lea.vmem %s10, 64
  %v1504 = vld [vmem:[%s1503] sm:$0xff]
  %v1505 = vld [vmem:[%s1503 + $0x8] sm:$0xff]
  %v1506 = vld [vmem:[%s1503 + $0x10] sm:$0xff]
  %v1507 = vld [vmem:[%s1503 + $0x18] sm:$0xff]
  %1508 = vmatpush.msra.mxu0 0.0
  %1509 = vmatpush.msra.mxu0 0.0
  %1510 = vmatpush.msra.mxu0 0.0
  %1511 = vmatpush.msra.mxu0 0.0
  %1512 = vmatpush.msra.mxu0 0.0
  %1513 = vmatpush.msra.mxu0 0.0
  %1514 = vmatpush.msra.mxu0 0.0
  %1515 = vmatpush.msra.mxu0 0.0
  %1516 = vmatpush.msra.mxu0 0.0
  %1517 = vmatpush.msra.mxu0 0.0
  %1518 = vmatpush.msra.mxu0 0.0
  %1519 = vmatpush.msra.mxu0 0.0
  %1520 = vmatpush.msra.mxu0 %v1507
  %1521 = vmatpush.msra.mxu0 %v1506
  %1522 = vmatpush.msra.mxu0 %v1505
  %1523 = vmatpush.msra.mxu0 %v1504
  %1524 = vmatmul.f32.gmra.mxu0 %v1393
  %v1525 = vpop.f32.mrf.mxu0
  %v1526 = vadd.f32 0.0, %v1525
  %1527 = vdwg.mxu0
  %s1528 = scalar_lea.vmem %s11, 32
  %v1529 = vld [vmem:[%s1528] sm:$0xff]
  %v1530 = vld [vmem:[%s1528 + $0x8] sm:$0xff]
  %v1532 = vsel %vm509, %v1529, 0
  %v1535 = vsel %vm509, %v1530, 0
  %1537 = vmatpush.msra.mxu0 0.0
  %1538 = vmatpush.msra.mxu0 0.0
  %1539 = vmatpush.msra.mxu0 0.0
  %1540 = vmatpush.msra.mxu0 0.0
  %1541 = vmatpush.msra.mxu0 0.0
  %1542 = vmatpush.msra.mxu0 0.0
  %1543 = vmatpush.msra.mxu0 0.0
  %1544 = vmatpush.msra.mxu0 0.0
  %1545 = vmatpush.msra.mxu0 0.0
  %1546 = vmatpush.msra.mxu0 0.0
  %1547 = vmatpush.msra.mxu0 0.0
  %1548 = vmatpush.msra.mxu0 0.0
  %1549 = vmatpush.msra.mxu0 0.0
  %1550 = vmatpush.msra.mxu0 0.0
  %1551 = vmatpush.msra.mxu0 0.0
  %1552 = vmatpush.msra.mxu0 %v1526
  %1553 = vmatmul.f32.gmra.mxu0 %v1532
  %v1554 = vpop.f32.mrf.mxu0
  %v1555 = vadd.f32 0.0, %v1554
  %1556 = vmatmul.f32.gmra.mxu0 %v1535
  %v1557 = vpop.f32.mrf.mxu0
  %v1558 = vadd.f32 0.0, %v1557
  %1559 = vdwg.mxu0
  %v1560 = vadd.f32 %v1498, %v1555
  %v1561 = vadd.f32 %v1501, %v1558
  %s1562 = scalar_lea.vmem %s10, 96
  %v1563 = vld [vmem:[%s1562] sm:$0xff]
  %v1564 = vld [vmem:[%s1562 + $0x8] sm:$0xff]
  %v1565 = vld [vmem:[%s1562 + $0x10] sm:$0xff]
  %v1566 = vld [vmem:[%s1562 + $0x18] sm:$0xff]
  %1567 = vmatpush.msra.mxu0 0.0
  %1568 = vmatpush.msra.mxu0 0.0
  %1569 = vmatpush.msra.mxu0 0.0
  %1570 = vmatpush.msra.mxu0 0.0
  %1571 = vmatpush.msra.mxu0 0.0
  %1572 = vmatpush.msra.mxu0 0.0
  %1573 = vmatpush.msra.mxu0 0.0
  %1574 = vmatpush.msra.mxu0 0.0
  %1575 = vmatpush.msra.mxu0 0.0
  %1576 = vmatpush.msra.mxu0 0.0
  %1577 = vmatpush.msra.mxu0 0.0
  %1578 = vmatpush.msra.mxu0 0.0
  %1579 = vmatpush.msra.mxu0 %v1566
  %1580 = vmatpush.msra.mxu0 %v1565
  %1581 = vmatpush.msra.mxu0 %v1564
  %1582 = vmatpush.msra.mxu0 %v1563
  %1583 = vmatmul.f32.gmra.mxu0 %v1393
  %v1584 = vpop.f32.mrf.mxu0
  %v1585 = vadd.f32 0.0, %v1584
  %1586 = vdwg.mxu0
  %s1587 = scalar_lea.vmem %s11, 48
  %v1588 = vld [vmem:[%s1587] sm:$0xff]
  %v1589 = vld [vmem:[%s1587 + $0x8] sm:$0xff]
  %v1591 = vsel %vm509, %v1588, 0
  %v1594 = vsel %vm509, %v1589, 0
  %1596 = vmatpush.msra.mxu0 0.0
  %1597 = vmatpush.msra.mxu0 0.0
  %1598 = vmatpush.msra.mxu0 0.0
  %1599 = vmatpush.msra.mxu0 0.0
  %1600 = vmatpush.msra.mxu0 0.0
  %1601 = vmatpush.msra.mxu0 0.0
  %1602 = vmatpush.msra.mxu0 0.0
  %1603 = vmatpush.msra.mxu0 0.0
  %1604 = vmatpush.msra.mxu0 0.0
  %1605 = vmatpush.msra.mxu0 0.0
  %1606 = vmatpush.msra.mxu0 0.0
  %1607 = vmatpush.msra.mxu0 0.0
  %1608 = vmatpush.msra.mxu0 0.0
  %1609 = vmatpush.msra.mxu0 0.0
  %1610 = vmatpush.msra.mxu0 0.0
  %1611 = vmatpush.msra.mxu0 %v1585
  %1612 = vmatmul.f32.gmra.mxu0 %v1591
  %v1613 = vpop.f32.mrf.mxu0
  %v1614 = vadd.f32 0.0, %v1613
  %1615 = vmatmul.f32.gmra.mxu0 %v1594
  %v1616 = vpop.f32.mrf.mxu0
  %v1617 = vadd.f32 0.0, %v1616
  %1618 = vdwg.mxu0
  %v1619 = vadd.f32 %v1560, %v1614
  %v1620 = vadd.f32 %v1561, %v1617
  %s1621 = scalar_lea.vmem %s10, 128
  %v1622 = vld [vmem:[%s1621] sm:$0xff]
  %v1623 = vld [vmem:[%s1621 + $0x8] sm:$0xff]
  %v1624 = vld [vmem:[%s1621 + $0x10] sm:$0xff]
  %v1625 = vld [vmem:[%s1621 + $0x18] sm:$0xff]
  %1626 = vmatpush.msra.mxu0 0.0
  %1627 = vmatpush.msra.mxu0 0.0
  %1628 = vmatpush.msra.mxu0 0.0
  %1629 = vmatpush.msra.mxu0 0.0
  %1630 = vmatpush.msra.mxu0 0.0
  %1631 = vmatpush.msra.mxu0 0.0
  %1632 = vmatpush.msra.mxu0 0.0
  %1633 = vmatpush.msra.mxu0 0.0
  %1634 = vmatpush.msra.mxu0 0.0
  %1635 = vmatpush.msra.mxu0 0.0
  %1636 = vmatpush.msra.mxu0 0.0
  %1637 = vmatpush.msra.mxu0 0.0
  %1638 = vmatpush.msra.mxu0 %v1625
  %1639 = vmatpush.msra.mxu0 %v1624
  %1640 = vmatpush.msra.mxu0 %v1623
  %1641 = vmatpush.msra.mxu0 %v1622
  %1642 = vmatmul.f32.gmra.mxu0 %v1393
  %v1643 = vpop.f32.mrf.mxu0
  %v1644 = vadd.f32 0.0, %v1643
  %1645 = vdwg.mxu0
  %s1646 = scalar_lea.vmem %s11, 64
  %v1647 = vld [vmem:[%s1646] sm:$0xff]
  %v1648 = vld [vmem:[%s1646 + $0x8] sm:$0xff]
  %v1650 = vsel %vm509, %v1647, 0
  %v1653 = vsel %vm509, %v1648, 0
  %1655 = vmatpush.msra.mxu0 0.0
  %1656 = vmatpush.msra.mxu0 0.0
  %1657 = vmatpush.msra.mxu0 0.0
  %1658 = vmatpush.msra.mxu0 0.0
  %1659 = vmatpush.msra.mxu0 0.0
  %1660 = vmatpush.msra.mxu0 0.0
  %1661 = vmatpush.msra.mxu0 0.0
  %1662 = vmatpush.msra.mxu0 0.0
  %1663 = vmatpush.msra.mxu0 0.0
  %1664 = vmatpush.msra.mxu0 0.0
  %1665 = vmatpush.msra.mxu0 0.0
  %1666 = vmatpush.msra.mxu0 0.0
  %1667 = vmatpush.msra.mxu0 0.0
  %1668 = vmatpush.msra.mxu0 0.0
  %1669 = vmatpush.msra.mxu0 0.0
  %1670 = vmatpush.msra.mxu0 %v1644
  %1671 = vmatmul.f32.gmra.mxu0 %v1650
  %v1672 = vpop.f32.mrf.mxu0
  %v1673 = vadd.f32 0.0, %v1672
  %1674 = vmatmul.f32.gmra.mxu0 %v1653
  %v1675 = vpop.f32.mrf.mxu0
  %v1676 = vadd.f32 0.0, %v1675
  %1677 = vdwg.mxu0
  %v1678 = vadd.f32 %v1619, %v1673
  %v1679 = vadd.f32 %v1620, %v1676
  %s1680 = scalar_lea.vmem %s10, 160
  %v1681 = vld [vmem:[%s1680] sm:$0xff]
  %v1682 = vld [vmem:[%s1680 + $0x8] sm:$0xff]
  %v1683 = vld [vmem:[%s1680 + $0x10] sm:$0xff]
  %v1684 = vld [vmem:[%s1680 + $0x18] sm:$0xff]
  %1685 = vmatpush.msra.mxu0 0.0
  %1686 = vmatpush.msra.mxu0 0.0
  %1687 = vmatpush.msra.mxu0 0.0
  %1688 = vmatpush.msra.mxu0 0.0
  %1689 = vmatpush.msra.mxu0 0.0
  %1690 = vmatpush.msra.mxu0 0.0
  %1691 = vmatpush.msra.mxu0 0.0
  %1692 = vmatpush.msra.mxu0 0.0
  %1693 = vmatpush.msra.mxu0 0.0
  %1694 = vmatpush.msra.mxu0 0.0
  %1695 = vmatpush.msra.mxu0 0.0
  %1696 = vmatpush.msra.mxu0 0.0
  %1697 = vmatpush.msra.mxu0 %v1684
  %1698 = vmatpush.msra.mxu0 %v1683
  %1699 = vmatpush.msra.mxu0 %v1682
  %1700 = vmatpush.msra.mxu0 %v1681
  %1701 = vmatmul.f32.gmra.mxu0 %v1393
  %v1702 = vpop.f32.mrf.mxu0
  %v1703 = vadd.f32 0.0, %v1702
  %1704 = vdwg.mxu0
  %s1705 = scalar_lea.vmem %s11, 80
  %v1706 = vld [vmem:[%s1705] sm:$0xff]
  %v1707 = vld [vmem:[%s1705 + $0x8] sm:$0xff]
  %v1709 = vsel %vm509, %v1706, 0
  %v1712 = vsel %vm509, %v1707, 0
  %1714 = vmatpush.msra.mxu0 0.0
  %1715 = vmatpush.msra.mxu0 0.0
  %1716 = vmatpush.msra.mxu0 0.0
  %1717 = vmatpush.msra.mxu0 0.0
  %1718 = vmatpush.msra.mxu0 0.0
  %1719 = vmatpush.msra.mxu0 0.0
  %1720 = vmatpush.msra.mxu0 0.0
  %1721 = vmatpush.msra.mxu0 0.0
  %1722 = vmatpush.msra.mxu0 0.0
  %1723 = vmatpush.msra.mxu0 0.0
  %1724 = vmatpush.msra.mxu0 0.0
  %1725 = vmatpush.msra.mxu0 0.0
  %1726 = vmatpush.msra.mxu0 0.0
  %1727 = vmatpush.msra.mxu0 0.0
  %1728 = vmatpush.msra.mxu0 0.0
  %1729 = vmatpush.msra.mxu0 %v1703
  %1730 = vmatmul.f32.gmra.mxu0 %v1709
  %v1731 = vpop.f32.mrf.mxu0
  %v1732 = vadd.f32 0.0, %v1731
  %1733 = vmatmul.f32.gmra.mxu0 %v1712
  %v1734 = vpop.f32.mrf.mxu0
  %v1735 = vadd.f32 0.0, %v1734
  %1736 = vdwg.mxu0
  %v1737 = vadd.f32 %v1678, %v1732
  %v1738 = vadd.f32 %v1679, %v1735
  %s1739 = scalar_lea.vmem %s10, 192
  %v1740 = vld [vmem:[%s1739] sm:$0xff]
  %v1741 = vld [vmem:[%s1739 + $0x8] sm:$0xff]
  %v1742 = vld [vmem:[%s1739 + $0x10] sm:$0xff]
  %v1743 = vld [vmem:[%s1739 + $0x18] sm:$0xff]
  %1744 = vmatpush.msra.mxu0 0.0
  %1745 = vmatpush.msra.mxu0 0.0
  %1746 = vmatpush.msra.mxu0 0.0
  %1747 = vmatpush.msra.mxu0 0.0
  %1748 = vmatpush.msra.mxu0 0.0
  %1749 = vmatpush.msra.mxu0 0.0
  %1750 = vmatpush.msra.mxu0 0.0
  %1751 = vmatpush.msra.mxu0 0.0
  %1752 = vmatpush.msra.mxu0 0.0
  %1753 = vmatpush.msra.mxu0 0.0
  %1754 = vmatpush.msra.mxu0 0.0
  %1755 = vmatpush.msra.mxu0 0.0
  %1756 = vmatpush.msra.mxu0 %v1743
  %1757 = vmatpush.msra.mxu0 %v1742
  %1758 = vmatpush.msra.mxu0 %v1741
  %1759 = vmatpush.msra.mxu0 %v1740
  %1760 = vmatmul.f32.gmra.mxu0 %v1393
  %v1761 = vpop.f32.mrf.mxu0
  %v1762 = vadd.f32 0.0, %v1761
  %1763 = vdwg.mxu0
  %s1764 = scalar_lea.vmem %s11, 96
  %v1765 = vld [vmem:[%s1764] sm:$0xff]
  %v1766 = vld [vmem:[%s1764 + $0x8] sm:$0xff]
  %v1768 = vsel %vm509, %v1765, 0
  %v1771 = vsel %vm509, %v1766, 0
  %1773 = vmatpush.msra.mxu0 0.0
  %1774 = vmatpush.msra.mxu0 0.0
  %1775 = vmatpush.msra.mxu0 0.0
  %1776 = vmatpush.msra.mxu0 0.0
  %1777 = vmatpush.msra.mxu0 0.0
  %1778 = vmatpush.msra.mxu0 0.0
  %1779 = vmatpush.msra.mxu0 0.0
  %1780 = vmatpush.msra.mxu0 0.0
  %1781 = vmatpush.msra.mxu0 0.0
  %1782 = vmatpush.msra.mxu0 0.0
  %1783 = vmatpush.msra.mxu0 0.0
  %1784 = vmatpush.msra.mxu0 0.0
  %1785 = vmatpush.msra.mxu0 0.0
  %1786 = vmatpush.msra.mxu0 0.0
  %1787 = vmatpush.msra.mxu0 0.0
  %1788 = vmatpush.msra.mxu0 %v1762
  %1789 = vmatmul.f32.gmra.mxu0 %v1768
  %v1790 = vpop.f32.mrf.mxu0
  %v1791 = vadd.f32 0.0, %v1790
  %1792 = vmatmul.f32.gmra.mxu0 %v1771
  %v1793 = vpop.f32.mrf.mxu0
  %v1794 = vadd.f32 0.0, %v1793
  %1795 = vdwg.mxu0
  %v1796 = vadd.f32 %v1737, %v1791
  %v1797 = vadd.f32 %v1738, %v1794
  %s1798 = scalar_lea.vmem %s10, 224
  %v1799 = vld [vmem:[%s1798] sm:$0xff]
  %v1800 = vld [vmem:[%s1798 + $0x8] sm:$0xff]
  %v1801 = vld [vmem:[%s1798 + $0x10] sm:$0xff]
  %v1802 = vld [vmem:[%s1798 + $0x18] sm:$0xff]
  %1803 = vmatpush.msra.mxu0 0.0
  %1804 = vmatpush.msra.mxu0 0.0
  %1805 = vmatpush.msra.mxu0 0.0
  %1806 = vmatpush.msra.mxu0 0.0
  %1807 = vmatpush.msra.mxu0 0.0
  %1808 = vmatpush.msra.mxu0 0.0
  %1809 = vmatpush.msra.mxu0 0.0
  %1810 = vmatpush.msra.mxu0 0.0
  %1811 = vmatpush.msra.mxu0 0.0
  %1812 = vmatpush.msra.mxu0 0.0
  %1813 = vmatpush.msra.mxu0 0.0
  %1814 = vmatpush.msra.mxu0 0.0
  %1815 = vmatpush.msra.mxu0 %v1802
  %1816 = vmatpush.msra.mxu0 %v1801
  %1817 = vmatpush.msra.mxu0 %v1800
  %1818 = vmatpush.msra.mxu0 %v1799
  %1819 = vmatmul.f32.gmra.mxu0 %v1393
  %v1820 = vpop.f32.mrf.mxu0
  %v1821 = vadd.f32 0.0, %v1820
  %1822 = vdwg.mxu0
  %s1823 = scalar_lea.vmem %s11, 112
  %v1824 = vld [vmem:[%s1823] sm:$0xff]
  %v1825 = vld [vmem:[%s1823 + $0x8] sm:$0xff]
  %v1827 = vsel %vm509, %v1824, 0
  %v1830 = vsel %vm509, %v1825, 0
  %1832 = vmatpush.msra.mxu0 0.0
  %1833 = vmatpush.msra.mxu0 0.0
  %1834 = vmatpush.msra.mxu0 0.0
  %1835 = vmatpush.msra.mxu0 0.0
  %1836 = vmatpush.msra.mxu0 0.0
  %1837 = vmatpush.msra.mxu0 0.0
  %1838 = vmatpush.msra.mxu0 0.0
  %1839 = vmatpush.msra.mxu0 0.0
  %1840 = vmatpush.msra.mxu0 0.0
  %1841 = vmatpush.msra.mxu0 0.0
  %1842 = vmatpush.msra.mxu0 0.0
  %1843 = vmatpush.msra.mxu0 0.0
  %1844 = vmatpush.msra.mxu0 0.0
  %1845 = vmatpush.msra.mxu0 0.0
  %1846 = vmatpush.msra.mxu0 0.0
  %1847 = vmatpush.msra.mxu0 %v1821
  %1848 = vmatmul.f32.gmra.mxu0 %v1827
  %v1849 = vpop.f32.mrf.mxu0
  %v1850 = vadd.f32 0.0, %v1849
  %1851 = vmatmul.f32.gmra.mxu0 %v1830
  %v1852 = vpop.f32.mrf.mxu0
  %v1853 = vadd.f32 0.0, %v1852
  %1854 = vdwg.mxu0
  %v1855 = vadd.f32 %v1796, %v1850
  %v1856 = vadd.f32 %v1797, %v1853
  %s1857 = scalar_lea.vmem %s10, 256
  %v1858 = vld [vmem:[%s1857] sm:$0xff]
  %v1859 = vld [vmem:[%s1857 + $0x8] sm:$0xff]
  %v1860 = vld [vmem:[%s1857 + $0x10] sm:$0xff]
  %v1861 = vld [vmem:[%s1857 + $0x18] sm:$0xff]
  %1862 = vmatpush.msra.mxu0 0.0
  %1863 = vmatpush.msra.mxu0 0.0
  %1864 = vmatpush.msra.mxu0 0.0
  %1865 = vmatpush.msra.mxu0 0.0
  %1866 = vmatpush.msra.mxu0 0.0
  %1867 = vmatpush.msra.mxu0 0.0
  %1868 = vmatpush.msra.mxu0 0.0
  %1869 = vmatpush.msra.mxu0 0.0
  %1870 = vmatpush.msra.mxu0 0.0
  %1871 = vmatpush.msra.mxu0 0.0
  %1872 = vmatpush.msra.mxu0 0.0
  %1873 = vmatpush.msra.mxu0 0.0
  %1874 = vmatpush.msra.mxu0 %v1861
  %1875 = vmatpush.msra.mxu0 %v1860
  %1876 = vmatpush.msra.mxu0 %v1859
  %1877 = vmatpush.msra.mxu0 %v1858
  %1878 = vmatmul.f32.gmra.mxu0 %v1393
  %v1879 = vpop.f32.mrf.mxu0
  %v1880 = vadd.f32 0.0, %v1879
  %1881 = vdwg.mxu0
  %s1882 = scalar_lea.vmem %s11, 128
  %v1883 = vld [vmem:[%s1882] sm:$0xff]
  %v1884 = vld [vmem:[%s1882 + $0x8] sm:$0xff]
  %v1886 = vsel %vm509, %v1883, 0
  %v1889 = vsel %vm509, %v1884, 0
  %1891 = vmatpush.msra.mxu0 0.0
  %1892 = vmatpush.msra.mxu0 0.0
  %1893 = vmatpush.msra.mxu0 0.0
  %1894 = vmatpush.msra.mxu0 0.0
  %1895 = vmatpush.msra.mxu0 0.0
  %1896 = vmatpush.msra.mxu0 0.0
  %1897 = vmatpush.msra.mxu0 0.0
  %1898 = vmatpush.msra.mxu0 0.0
  %1899 = vmatpush.msra.mxu0 0.0
  %1900 = vmatpush.msra.mxu0 0.0
  %1901 = vmatpush.msra.mxu0 0.0
  %1902 = vmatpush.msra.mxu0 0.0
  %1903 = vmatpush.msra.mxu0 0.0
  %1904 = vmatpush.msra.mxu0 0.0
  %1905 = vmatpush.msra.mxu0 0.0
  %1906 = vmatpush.msra.mxu0 %v1880
  %1907 = vmatmul.f32.gmra.mxu0 %v1886
  %v1908 = vpop.f32.mrf.mxu0
  %v1909 = vadd.f32 0.0, %v1908
  %1910 = vmatmul.f32.gmra.mxu0 %v1889
  %v1911 = vpop.f32.mrf.mxu0
  %v1912 = vadd.f32 0.0, %v1911
  %1913 = vdwg.mxu0
  %v1914 = vadd.f32 %v1855, %v1909
  %v1915 = vadd.f32 %v1856, %v1912
  %v1916 = vld [vmem:[%s12] sm:$0xff]
  %v1917 = vld [vmem:[%s12 + $0x8] sm:$0xff]
  %1919 = vset.pattern.permute.xlu0 0
  %1920 = vperm.xlu0 %1919, %v1916
  %v1921 = vpop.permute.xlu0 %1920
  %1924 = vset.pattern.permute.xlu0 0
  %1925 = vperm.xlu0 %1924, %v1917
  %v1926 = vpop.permute.xlu0 %1925
  %v1928 = vadd.f32 %v1914, %v1921
  %v1929 = vadd.f32 %v1915, %v1926
  %v1930 = vmax.f32 %v1928, 0.0
  %v1931 = vmax.f32 %v1929, 0.0
  %v1932 = vld [vmem:[%s13] sm:$0xff]
  %v1934 = vsel %vm509, %v1930, 0
  %v1937 = vsel %vm509, %v1931, 0
  %1939 = vmatpush.msra.mxu0 0.0
  %1940 = vmatpush.msra.mxu0 0.0
  %1941 = vmatpush.msra.mxu0 0.0
  %1942 = vmatpush.msra.mxu0 0.0
  %1943 = vmatpush.msra.mxu0 0.0
  %1944 = vmatpush.msra.mxu0 0.0
  %1945 = vmatpush.msra.mxu0 0.0
  %1946 = vmatpush.msra.mxu0 0.0
  %1947 = vmatpush.msra.mxu0 0.0
  %1948 = vmatpush.msra.mxu0 0.0
  %1949 = vmatpush.msra.mxu0 0.0
  %1950 = vmatpush.msra.mxu0 0.0
  %1951 = vmatpush.msra.mxu0 0.0
  %1952 = vmatpush.msra.mxu0 0.0
  %1953 = vmatpush.msra.mxu0 0.0
  %1954 = vmatpush.msra.mxu0 %v1932
  %1955 = vmatmul.f32.gmra.mxu0 %v1934
  %v1956 = vpop.f32.mrf.mxu0
  %v1957 = vadd.f32 0.0, %v1956
  %1958 = vmatmul.f32.gmra.mxu0 %v1937
  %v1959 = vpop.f32.mrf.mxu0
  %v1960 = vadd.f32 0.0, %v1959
  %1961 = vdwg.mxu0
  %v1962 = vld [vmem:[%s14] sm:$0xff]
  %v1963 = vld [vmem:[%s14 + $0x8] sm:$0xff]
  %s1964 = scalar_lea.vmem %s13, 8
  %v1965 = vld [vmem:[%s1964] sm:$0xff]
  %1966 = vmatpush.msra.mxu0 0.0
  %1967 = vmatpush.msra.mxu0 0.0
  %1968 = vmatpush.msra.mxu0 0.0
  %1969 = vmatpush.msra.mxu0 0.0
  %1970 = vmatpush.msra.mxu0 0.0
  %1971 = vmatpush.msra.mxu0 0.0
  %1972 = vmatpush.msra.mxu0 0.0
  %1973 = vmatpush.msra.mxu0 0.0
  %1974 = vmatpush.msra.mxu0 0.0
  %1975 = vmatpush.msra.mxu0 0.0
  %1976 = vmatpush.msra.mxu0 0.0
  %1977 = vmatpush.msra.mxu0 0.0
  %1978 = vmatpush.msra.mxu0 0.0
  %1979 = vmatpush.msra.mxu0 0.0
  %1980 = vmatpush.msra.mxu0 0.0
  %1981 = vmatpush.msra.mxu0 %v1965
  %1982 = vmatmul.f32.gmra.mxu0 %v1934
  %v1983 = vpop.f32.mrf.mxu0
  %v1984 = vadd.f32 0.0, %v1983
  %1985 = vmatmul.f32.gmra.mxu0 %v1937
  %v1986 = vpop.f32.mrf.mxu0
  %v1987 = vadd.f32 0.0, %v1986
  %1988 = vdwg.mxu0
  %s1989 = scalar_lea.vmem %s14, 16
  %v1990 = vld [vmem:[%s1989] sm:$0xff]
  %v1991 = vld [vmem:[%s1989 + $0x8] sm:$0xff]
  %vm1992 = vcmask 130048
  %v1994 = vsel %vm1992, %v1990, 0
  %v1997 = vsel %vm1992, %v1991, 0
  %1999 = vmatpush.msra.mxu0 0.0
  %2000 = vmatpush.msra.mxu0 0.0
  %2001 = vmatpush.msra.mxu0 0.0
  %2002 = vmatpush.msra.mxu0 0.0
  %2003 = vmatpush.msra.mxu0 0.0
  %2004 = vmatpush.msra.mxu0 0.0
  %2005 = vmatpush.msra.mxu0 0.0
  %2006 = vmatpush.msra.mxu0 0.0
  %2007 = vmatpush.msra.mxu0 0.0
  %2008 = vmatpush.msra.mxu0 0.0
  %2009 = vmatpush.msra.mxu0 0.0
  %2010 = vmatpush.msra.mxu0 0.0
  %2011 = vmatpush.msra.mxu0 0.0
  %2012 = vmatpush.msra.mxu0 0.0
  %2013 = vmatpush.msra.mxu0 %v1987
  %2014 = vmatpush.msra.mxu0 %v1984
  %2015 = vmatmul.f32.gmra.mxu0 %v1994
  %v2016 = vpop.f32.mrf.mxu0
  %v2017 = vadd.f32 0.0, %v2016
  %2018 = vmatmul.f32.gmra.mxu0 %v1997
  %v2019 = vpop.f32.mrf.mxu0
  %v2020 = vadd.f32 0.0, %v2019
  %2021 = vdwg.mxu0
  %v2023 = vsel %vm1992, %v1962, 0
  %v2026 = vsel %vm1992, %v1963, 0
  %2028 = vmatpush.msra.mxu0 0.0
  %2029 = vmatpush.msra.mxu0 0.0
  %2030 = vmatpush.msra.mxu0 0.0
  %2031 = vmatpush.msra.mxu0 0.0
  %2032 = vmatpush.msra.mxu0 0.0
  %2033 = vmatpush.msra.mxu0 0.0
  %2034 = vmatpush.msra.mxu0 0.0
  %2035 = vmatpush.msra.mxu0 0.0
  %2036 = vmatpush.msra.mxu0 0.0
  %2037 = vmatpush.msra.mxu0 0.0
  %2038 = vmatpush.msra.mxu0 0.0
  %2039 = vmatpush.msra.mxu0 0.0
  %2040 = vmatpush.msra.mxu0 0.0
  %2041 = vmatpush.msra.mxu0 0.0
  %2042 = vmatpush.msra.mxu0 %v1960
  %2043 = vmatpush.msra.mxu0 %v1957
  %2044 = vmatmul.f32.gmra.mxu0 %v2023
  %v2045 = vpop.f32.mrf.mxu0
  %v2046 = vadd.f32 %v2017, %v2045
  %2047 = vmatmul.f32.gmra.mxu0 %v2026
  %v2048 = vpop.f32.mrf.mxu0
  %v2049 = vadd.f32 %v2020, %v2048
  %2050 = vdwg.mxu0
  %s2051 = scalar_lea.vmem %s13, 16
  %v2052 = vld [vmem:[%s2051] sm:$0xff]
  %2053 = vmatpush.msra.mxu0 0.0
  %2054 = vmatpush.msra.mxu0 0.0
  %2055 = vmatpush.msra.mxu0 0.0
  %2056 = vmatpush.msra.mxu0 0.0
  %2057 = vmatpush.msra.mxu0 0.0
  %2058 = vmatpush.msra.mxu0 0.0
  %2059 = vmatpush.msra.mxu0 0.0
  %2060 = vmatpush.msra.mxu0 0.0
  %2061 = vmatpush.msra.mxu0 0.0
  %2062 = vmatpush.msra.mxu0 0.0
  %2063 = vmatpush.msra.mxu0 0.0
  %2064 = vmatpush.msra.mxu0 0.0
  %2065 = vmatpush.msra.mxu0 0.0
  %2066 = vmatpush.msra.mxu0 0.0
  %2067 = vmatpush.msra.mxu0 0.0
  %2068 = vmatpush.msra.mxu0 %v2052
  %2069 = vmatmul.f32.gmra.mxu0 %v1934
  %v2070 = vpop.f32.mrf.mxu0
  %v2071 = vadd.f32 0.0, %v2070
  %2072 = vmatmul.f32.gmra.mxu0 %v1937
  %v2073 = vpop.f32.mrf.mxu0
  %v2074 = vadd.f32 0.0, %v2073
  %2075 = vdwg.mxu0
  %s2076 = scalar_lea.vmem %s14, 32
  %v2077 = vld [vmem:[%s2076] sm:$0xff]
  %v2078 = vld [vmem:[%s2076 + $0x8] sm:$0xff]
  %v2080 = vsel %vm1992, %v2077, 0
  %v2083 = vsel %vm1992, %v2078, 0
  %2085 = vmatpush.msra.mxu0 0.0
  %2086 = vmatpush.msra.mxu0 0.0
  %2087 = vmatpush.msra.mxu0 0.0
  %2088 = vmatpush.msra.mxu0 0.0
  %2089 = vmatpush.msra.mxu0 0.0
  %2090 = vmatpush.msra.mxu0 0.0
  %2091 = vmatpush.msra.mxu0 0.0
  %2092 = vmatpush.msra.mxu0 0.0
  %2093 = vmatpush.msra.mxu0 0.0
  %2094 = vmatpush.msra.mxu0 0.0
  %2095 = vmatpush.msra.mxu0 0.0
  %2096 = vmatpush.msra.mxu0 0.0
  %2097 = vmatpush.msra.mxu0 0.0
  %2098 = vmatpush.msra.mxu0 0.0
  %2099 = vmatpush.msra.mxu0 %v2074
  %2100 = vmatpush.msra.mxu0 %v2071
  %2101 = vmatmul.f32.gmra.mxu0 %v2080
  %v2102 = vpop.f32.mrf.mxu0
  %v2103 = vadd.f32 0.0, %v2102
  %2104 = vmatmul.f32.gmra.mxu0 %v2083
  %v2105 = vpop.f32.mrf.mxu0
  %v2106 = vadd.f32 0.0, %v2105
  %2107 = vdwg.mxu0
  %v2108 = vadd.f32 %v2046, %v2103
  %v2109 = vadd.f32 %v2049, %v2106
  %s2110 = scalar_lea.vmem %s13, 24
  %v2111 = vld [vmem:[%s2110] sm:$0xff]
  %2112 = vmatpush.msra.mxu0 0.0
  %2113 = vmatpush.msra.mxu0 0.0
  %2114 = vmatpush.msra.mxu0 0.0
  %2115 = vmatpush.msra.mxu0 0.0
  %2116 = vmatpush.msra.mxu0 0.0
  %2117 = vmatpush.msra.mxu0 0.0
  %2118 = vmatpush.msra.mxu0 0.0
  %2119 = vmatpush.msra.mxu0 0.0
  %2120 = vmatpush.msra.mxu0 0.0
  %2121 = vmatpush.msra.mxu0 0.0
  %2122 = vmatpush.msra.mxu0 0.0
  %2123 = vmatpush.msra.mxu0 0.0
  %2124 = vmatpush.msra.mxu0 0.0
  %2125 = vmatpush.msra.mxu0 0.0
  %2126 = vmatpush.msra.mxu0 0.0
  %2127 = vmatpush.msra.mxu0 %v2111
  %2128 = vmatmul.f32.gmra.mxu0 %v1934
  %v2129 = vpop.f32.mrf.mxu0
  %v2130 = vadd.f32 0.0, %v2129
  %2131 = vmatmul.f32.gmra.mxu0 %v1937
  %v2132 = vpop.f32.mrf.mxu0
  %v2133 = vadd.f32 0.0, %v2132
  %2134 = vdwg.mxu0
  %s2135 = scalar_lea.vmem %s14, 48
  %v2136 = vld [vmem:[%s2135] sm:$0xff]
  %v2137 = vld [vmem:[%s2135 + $0x8] sm:$0xff]
  %v2139 = vsel %vm1992, %v2136, 0
  %v2142 = vsel %vm1992, %v2137, 0
  %2144 = vmatpush.msra.mxu0 0.0
  %2145 = vmatpush.msra.mxu0 0.0
  %2146 = vmatpush.msra.mxu0 0.0
  %2147 = vmatpush.msra.mxu0 0.0
  %2148 = vmatpush.msra.mxu0 0.0
  %2149 = vmatpush.msra.mxu0 0.0
  %2150 = vmatpush.msra.mxu0 0.0
  %2151 = vmatpush.msra.mxu0 0.0
  %2152 = vmatpush.msra.mxu0 0.0
  %2153 = vmatpush.msra.mxu0 0.0
  %2154 = vmatpush.msra.mxu0 0.0
  %2155 = vmatpush.msra.mxu0 0.0
  %2156 = vmatpush.msra.mxu0 0.0
  %2157 = vmatpush.msra.mxu0 0.0
  %2158 = vmatpush.msra.mxu0 %v2133
  %2159 = vmatpush.msra.mxu0 %v2130
  %2160 = vmatmul.f32.gmra.mxu0 %v2139
  %v2161 = vpop.f32.mrf.mxu0
  %v2162 = vadd.f32 0.0, %v2161
  %2163 = vmatmul.f32.gmra.mxu0 %v2142
  %v2164 = vpop.f32.mrf.mxu0
  %v2165 = vadd.f32 0.0, %v2164
  %2166 = vdwg.mxu0
  %v2167 = vadd.f32 %v2108, %v2162
  %v2168 = vadd.f32 %v2109, %v2165
  %s2169 = scalar_lea.vmem %s13, 32
  %v2170 = vld [vmem:[%s2169] sm:$0xff]
  %2171 = vmatpush.msra.mxu0 0.0
  %2172 = vmatpush.msra.mxu0 0.0
  %2173 = vmatpush.msra.mxu0 0.0
  %2174 = vmatpush.msra.mxu0 0.0
  %2175 = vmatpush.msra.mxu0 0.0
  %2176 = vmatpush.msra.mxu0 0.0
  %2177 = vmatpush.msra.mxu0 0.0
  %2178 = vmatpush.msra.mxu0 0.0
  %2179 = vmatpush.msra.mxu0 0.0
  %2180 = vmatpush.msra.mxu0 0.0
  %2181 = vmatpush.msra.mxu0 0.0
  %2182 = vmatpush.msra.mxu0 0.0
  %2183 = vmatpush.msra.mxu0 0.0
  %2184 = vmatpush.msra.mxu0 0.0
  %2185 = vmatpush.msra.mxu0 0.0
  %2186 = vmatpush.msra.mxu0 %v2170
  %2187 = vmatmul.f32.gmra.mxu0 %v1934
  %v2188 = vpop.f32.mrf.mxu0
  %v2189 = vadd.f32 0.0, %v2188
  %2190 = vmatmul.f32.gmra.mxu0 %v1937
  %v2191 = vpop.f32.mrf.mxu0
  %v2192 = vadd.f32 0.0, %v2191
  %2193 = vdwg.mxu0
  %s2194 = scalar_lea.vmem %s14, 64
  %v2195 = vld [vmem:[%s2194] sm:$0xff]
  %v2196 = vld [vmem:[%s2194 + $0x8] sm:$0xff]
  %v2198 = vsel %vm1992, %v2195, 0
  %v2201 = vsel %vm1992, %v2196, 0
  %2203 = vmatpush.msra.mxu0 0.0
  %2204 = vmatpush.msra.mxu0 0.0
  %2205 = vmatpush.msra.mxu0 0.0
  %2206 = vmatpush.msra.mxu0 0.0
  %2207 = vmatpush.msra.mxu0 0.0
  %2208 = vmatpush.msra.mxu0 0.0
  %2209 = vmatpush.msra.mxu0 0.0
  %2210 = vmatpush.msra.mxu0 0.0
  %2211 = vmatpush.msra.mxu0 0.0
  %2212 = vmatpush.msra.mxu0 0.0
  %2213 = vmatpush.msra.mxu0 0.0
  %2214 = vmatpush.msra.mxu0 0.0
  %2215 = vmatpush.msra.mxu0 0.0
  %2216 = vmatpush.msra.mxu0 0.0
  %2217 = vmatpush.msra.mxu0 %v2192
  %2218 = vmatpush.msra.mxu0 %v2189
  %2219 = vmatmul.f32.gmra.mxu0 %v2198
  %v2220 = vpop.f32.mrf.mxu0
  %v2221 = vadd.f32 0.0, %v2220
  %2222 = vmatmul.f32.gmra.mxu0 %v2201
  %v2223 = vpop.f32.mrf.mxu0
  %v2224 = vadd.f32 0.0, %v2223
  %2225 = vdwg.mxu0
  %v2226 = vadd.f32 %v2167, %v2221
  %v2227 = vadd.f32 %v2168, %v2224
  %s2228 = scalar_lea.vmem %s13, 40
  %v2229 = vld [vmem:[%s2228] sm:$0xff]
  %2230 = vmatpush.msra.mxu0 0.0
  %2231 = vmatpush.msra.mxu0 0.0
  %2232 = vmatpush.msra.mxu0 0.0
  %2233 = vmatpush.msra.mxu0 0.0
  %2234 = vmatpush.msra.mxu0 0.0
  %2235 = vmatpush.msra.mxu0 0.0
  %2236 = vmatpush.msra.mxu0 0.0
  %2237 = vmatpush.msra.mxu0 0.0
  %2238 = vmatpush.msra.mxu0 0.0
  %2239 = vmatpush.msra.mxu0 0.0
  %2240 = vmatpush.msra.mxu0 0.0
  %2241 = vmatpush.msra.mxu0 0.0
  %2242 = vmatpush.msra.mxu0 0.0
  %2243 = vmatpush.msra.mxu0 0.0
  %2244 = vmatpush.msra.mxu0 0.0
  %2245 = vmatpush.msra.mxu0 %v2229
  %2246 = vmatmul.f32.gmra.mxu0 %v1934
  %v2247 = vpop.f32.mrf.mxu0
  %v2248 = vadd.f32 0.0, %v2247
  %2249 = vmatmul.f32.gmra.mxu0 %v1937
  %v2250 = vpop.f32.mrf.mxu0
  %v2251 = vadd.f32 0.0, %v2250
  %2252 = vdwg.mxu0
  %s2253 = scalar_lea.vmem %s14, 80
  %v2254 = vld [vmem:[%s2253] sm:$0xff]
  %v2255 = vld [vmem:[%s2253 + $0x8] sm:$0xff]
  %v2257 = vsel %vm1992, %v2254, 0
  %v2260 = vsel %vm1992, %v2255, 0
  %2262 = vmatpush.msra.mxu0 0.0
  %2263 = vmatpush.msra.mxu0 0.0
  %2264 = vmatpush.msra.mxu0 0.0
  %2265 = vmatpush.msra.mxu0 0.0
  %2266 = vmatpush.msra.mxu0 0.0
  %2267 = vmatpush.msra.mxu0 0.0
  %2268 = vmatpush.msra.mxu0 0.0
  %2269 = vmatpush.msra.mxu0 0.0
  %2270 = vmatpush.msra.mxu0 0.0
  %2271 = vmatpush.msra.mxu0 0.0
  %2272 = vmatpush.msra.mxu0 0.0
  %2273 = vmatpush.msra.mxu0 0.0
  %2274 = vmatpush.msra.mxu0 0.0
  %2275 = vmatpush.msra.mxu0 0.0
  %2276 = vmatpush.msra.mxu0 %v2251
  %2277 = vmatpush.msra.mxu0 %v2248
  %2278 = vmatmul.f32.gmra.mxu0 %v2257
  %v2279 = vpop.f32.mrf.mxu0
  %v2280 = vadd.f32 0.0, %v2279
  %2281 = vmatmul.f32.gmra.mxu0 %v2260
  %v2282 = vpop.f32.mrf.mxu0
  %v2283 = vadd.f32 0.0, %v2282
  %2284 = vdwg.mxu0
  %v2285 = vadd.f32 %v2226, %v2280
  %v2286 = vadd.f32 %v2227, %v2283
  %s2287 = scalar_lea.vmem %s13, 48
  %v2288 = vld [vmem:[%s2287] sm:$0xff]
  %2289 = vmatpush.msra.mxu0 0.0
  %2290 = vmatpush.msra.mxu0 0.0
  %2291 = vmatpush.msra.mxu0 0.0
  %2292 = vmatpush.msra.mxu0 0.0
  %2293 = vmatpush.msra.mxu0 0.0
  %2294 = vmatpush.msra.mxu0 0.0
  %2295 = vmatpush.msra.mxu0 0.0
  %2296 = vmatpush.msra.mxu0 0.0
  %2297 = vmatpush.msra.mxu0 0.0
  %2298 = vmatpush.msra.mxu0 0.0
  %2299 = vmatpush.msra.mxu0 0.0
  %2300 = vmatpush.msra.mxu0 0.0
  %2301 = vmatpush.msra.mxu0 0.0
  %2302 = vmatpush.msra.mxu0 0.0
  %2303 = vmatpush.msra.mxu0 0.0
  %2304 = vmatpush.msra.mxu0 %v2288
  %2305 = vmatmul.f32.gmra.mxu0 %v1934
  %v2306 = vpop.f32.mrf.mxu0
  %v2307 = vadd.f32 0.0, %v2306
  %2308 = vmatmul.f32.gmra.mxu0 %v1937
  %v2309 = vpop.f32.mrf.mxu0
  %v2310 = vadd.f32 0.0, %v2309
  %2311 = vdwg.mxu0
  %s2312 = scalar_lea.vmem %s14, 96
  %v2313 = vld [vmem:[%s2312] sm:$0xff]
  %v2314 = vld [vmem:[%s2312 + $0x8] sm:$0xff]
  %v2316 = vsel %vm1992, %v2313, 0
  %v2319 = vsel %vm1992, %v2314, 0
  %2321 = vmatpush.msra.mxu0 0.0
  %2322 = vmatpush.msra.mxu0 0.0
  %2323 = vmatpush.msra.mxu0 0.0
  %2324 = vmatpush.msra.mxu0 0.0
  %2325 = vmatpush.msra.mxu0 0.0
  %2326 = vmatpush.msra.mxu0 0.0
  %2327 = vmatpush.msra.mxu0 0.0
  %2328 = vmatpush.msra.mxu0 0.0
  %2329 = vmatpush.msra.mxu0 0.0
  %2330 = vmatpush.msra.mxu0 0.0
  %2331 = vmatpush.msra.mxu0 0.0
  %2332 = vmatpush.msra.mxu0 0.0
  %2333 = vmatpush.msra.mxu0 0.0
  %2334 = vmatpush.msra.mxu0 0.0
  %2335 = vmatpush.msra.mxu0 %v2310
  %2336 = vmatpush.msra.mxu0 %v2307
  %2337 = vmatmul.f32.gmra.mxu0 %v2316
  %v2338 = vpop.f32.mrf.mxu0
  %v2339 = vadd.f32 0.0, %v2338
  %2340 = vmatmul.f32.gmra.mxu0 %v2319
  %v2341 = vpop.f32.mrf.mxu0
  %v2342 = vadd.f32 0.0, %v2341
  %2343 = vdwg.mxu0
  %v2344 = vadd.f32 %v2285, %v2339
  %v2345 = vadd.f32 %v2286, %v2342
  %s2346 = scalar_lea.vmem %s13, 56
  %v2347 = vld [vmem:[%s2346] sm:$0xff]
  %2348 = vmatpush.msra.mxu0 0.0
  %2349 = vmatpush.msra.mxu0 0.0
  %2350 = vmatpush.msra.mxu0 0.0
  %2351 = vmatpush.msra.mxu0 0.0
  %2352 = vmatpush.msra.mxu0 0.0
  %2353 = vmatpush.msra.mxu0 0.0
  %2354 = vmatpush.msra.mxu0 0.0
  %2355 = vmatpush.msra.mxu0 0.0
  %2356 = vmatpush.msra.mxu0 0.0
  %2357 = vmatpush.msra.mxu0 0.0
  %2358 = vmatpush.msra.mxu0 0.0
  %2359 = vmatpush.msra.mxu0 0.0
  %2360 = vmatpush.msra.mxu0 0.0
  %2361 = vmatpush.msra.mxu0 0.0
  %2362 = vmatpush.msra.mxu0 0.0
  %2363 = vmatpush.msra.mxu0 %v2347
  %2364 = vmatmul.f32.gmra.mxu0 %v1934
  %v2365 = vpop.f32.mrf.mxu0
  %v2366 = vadd.f32 0.0, %v2365
  %2367 = vmatmul.f32.gmra.mxu0 %v1937
  %v2368 = vpop.f32.mrf.mxu0
  %v2369 = vadd.f32 0.0, %v2368
  %2370 = vdwg.mxu0
  %s2371 = scalar_lea.vmem %s14, 112
  %v2372 = vld [vmem:[%s2371] sm:$0xff]
  %v2373 = vld [vmem:[%s2371 + $0x8] sm:$0xff]
  %v2375 = vsel %vm1992, %v2372, 0
  %v2378 = vsel %vm1992, %v2373, 0
  %2380 = vmatpush.msra.mxu0 0.0
  %2381 = vmatpush.msra.mxu0 0.0
  %2382 = vmatpush.msra.mxu0 0.0
  %2383 = vmatpush.msra.mxu0 0.0
  %2384 = vmatpush.msra.mxu0 0.0
  %2385 = vmatpush.msra.mxu0 0.0
  %2386 = vmatpush.msra.mxu0 0.0
  %2387 = vmatpush.msra.mxu0 0.0
  %2388 = vmatpush.msra.mxu0 0.0
  %2389 = vmatpush.msra.mxu0 0.0
  %2390 = vmatpush.msra.mxu0 0.0
  %2391 = vmatpush.msra.mxu0 0.0
  %2392 = vmatpush.msra.mxu0 0.0
  %2393 = vmatpush.msra.mxu0 0.0
  %2394 = vmatpush.msra.mxu0 %v2369
  %2395 = vmatpush.msra.mxu0 %v2366
  %2396 = vmatmul.f32.gmra.mxu0 %v2375
  %v2397 = vpop.f32.mrf.mxu0
  %v2398 = vadd.f32 0.0, %v2397
  %2399 = vmatmul.f32.gmra.mxu0 %v2378
  %v2400 = vpop.f32.mrf.mxu0
  %v2401 = vadd.f32 0.0, %v2400
  %2402 = vdwg.mxu0
  %v2403 = vadd.f32 %v2344, %v2398
  %v2404 = vadd.f32 %v2345, %v2401
  %s2405 = scalar_lea.vmem %s13, 64
  %v2406 = vld [vmem:[%s2405] sm:$0xff]
  %2407 = vmatpush.msra.mxu0 0.0
  %2408 = vmatpush.msra.mxu0 0.0
  %2409 = vmatpush.msra.mxu0 0.0
  %2410 = vmatpush.msra.mxu0 0.0
  %2411 = vmatpush.msra.mxu0 0.0
  %2412 = vmatpush.msra.mxu0 0.0
  %2413 = vmatpush.msra.mxu0 0.0
  %2414 = vmatpush.msra.mxu0 0.0
  %2415 = vmatpush.msra.mxu0 0.0
  %2416 = vmatpush.msra.mxu0 0.0
  %2417 = vmatpush.msra.mxu0 0.0
  %2418 = vmatpush.msra.mxu0 0.0
  %2419 = vmatpush.msra.mxu0 0.0
  %2420 = vmatpush.msra.mxu0 0.0
  %2421 = vmatpush.msra.mxu0 0.0
  %2422 = vmatpush.msra.mxu0 %v2406
  %2423 = vmatmul.f32.gmra.mxu0 %v1934
  %v2424 = vpop.f32.mrf.mxu0
  %v2425 = vadd.f32 0.0, %v2424
  %2426 = vmatmul.f32.gmra.mxu0 %v1937
  %v2427 = vpop.f32.mrf.mxu0
  %v2428 = vadd.f32 0.0, %v2427
  %2429 = vdwg.mxu0
  %s2430 = scalar_lea.vmem %s14, 128
  %v2431 = vld [vmem:[%s2430] sm:$0xff]
  %v2432 = vld [vmem:[%s2430 + $0x8] sm:$0xff]
  %v2434 = vsel %vm1992, %v2431, 0
  %v2437 = vsel %vm1992, %v2432, 0
  %2439 = vmatpush.msra.mxu0 0.0
  %2440 = vmatpush.msra.mxu0 0.0
  %2441 = vmatpush.msra.mxu0 0.0
  %2442 = vmatpush.msra.mxu0 0.0
  %2443 = vmatpush.msra.mxu0 0.0
  %2444 = vmatpush.msra.mxu0 0.0
  %2445 = vmatpush.msra.mxu0 0.0
  %2446 = vmatpush.msra.mxu0 0.0
  %2447 = vmatpush.msra.mxu0 0.0
  %2448 = vmatpush.msra.mxu0 0.0
  %2449 = vmatpush.msra.mxu0 0.0
  %2450 = vmatpush.msra.mxu0 0.0
  %2451 = vmatpush.msra.mxu0 0.0
  %2452 = vmatpush.msra.mxu0 0.0
  %2453 = vmatpush.msra.mxu0 %v2428
  %2454 = vmatpush.msra.mxu0 %v2425
  %2455 = vmatmul.f32.gmra.mxu0 %v2434
  %v2456 = vpop.f32.mrf.mxu0
  %v2457 = vadd.f32 0.0, %v2456
  %2458 = vmatmul.f32.gmra.mxu0 %v2437
  %v2459 = vpop.f32.mrf.mxu0
  %v2460 = vadd.f32 0.0, %v2459
  %2461 = vdwg.mxu0
  %v2462 = vadd.f32 %v2403, %v2457
  %v2463 = vadd.f32 %v2404, %v2460
  %v2464 = vld [vmem:[%s15] sm:$0xff]
  %v2465 = vld [vmem:[%s15 + $0x8] sm:$0xff]
  %2467 = vset.pattern.permute.xlu0 0
  %2468 = vperm.xlu0 %2467, %v2464
  %v2469 = vpop.permute.xlu0 %2468
  %2472 = vset.pattern.permute.xlu0 0
  %2473 = vperm.xlu0 %2472, %v2465
  %v2474 = vpop.permute.xlu0 %2473
  %v2476 = vadd.f32 %v2462, %v2469
  %v2477 = vadd.f32 %v2463, %v2474
  %v2478 = vld [vmem:[%s17] sm:$0xff]
  %v2479 = vld [vmem:[%s17 + $0x8] sm:$0xff]
  %v2480 = vld [vmem:[%s16] sm:$0xff]
  %v2481 = vld [vmem:[%s16 + $0x8] sm:$0xff]
  %v2482 = vld [vmem:[%s16 + $0x10] sm:$0xff]
  %v2483 = vld [vmem:[%s16 + $0x18] sm:$0xff]
  %2484 = vmatpush.msra.mxu0 0.0
  %2485 = vmatpush.msra.mxu0 0.0
  %2486 = vmatpush.msra.mxu0 0.0
  %2487 = vmatpush.msra.mxu0 0.0
  %2488 = vmatpush.msra.mxu0 0.0
  %2489 = vmatpush.msra.mxu0 0.0
  %2490 = vmatpush.msra.mxu0 0.0
  %2491 = vmatpush.msra.mxu0 0.0
  %2492 = vmatpush.msra.mxu0 0.0
  %2493 = vmatpush.msra.mxu0 0.0
  %2494 = vmatpush.msra.mxu0 0.0
  %2495 = vmatpush.msra.mxu0 0.0
  %2496 = vmatpush.msra.mxu0 %v2483
  %2497 = vmatpush.msra.mxu0 %v2482
  %2498 = vmatpush.msra.mxu0 %v2481
  %2499 = vmatpush.msra.mxu0 %v2480
  %2500 = vmatmul.f32.gmra.mxu0 %v1393
  %v2501 = vpop.f32.mrf.mxu0
  %v2502 = vadd.f32 0.0, %v2501
  %2503 = vdwg.mxu0
  %v2504 = vld [vmem:[%s18] sm:$0xff]
  %v2505 = vld [vmem:[%s18 + $0x8] sm:$0xff]
  %2507 = vset.pattern.permute.xlu0 0
  %2508 = vperm.xlu0 %2507, %v2504
  %v2509 = vpop.permute.xlu0 %2508
  %2512 = vset.pattern.permute.xlu0 0
  %2513 = vperm.xlu0 %2512, %v2505
  %v2514 = vpop.permute.xlu0 %2513
  %v2517 = vsel %vm509, %v2478, 0
  %v2520 = vsel %vm509, %v2479, 0
  %2522 = vmatpush.msra.mxu0 0.0
  %2523 = vmatpush.msra.mxu0 0.0
  %2524 = vmatpush.msra.mxu0 0.0
  %2525 = vmatpush.msra.mxu0 0.0
  %2526 = vmatpush.msra.mxu0 0.0
  %2527 = vmatpush.msra.mxu0 0.0
  %2528 = vmatpush.msra.mxu0 0.0
  %2529 = vmatpush.msra.mxu0 0.0
  %2530 = vmatpush.msra.mxu0 0.0
  %2531 = vmatpush.msra.mxu0 0.0
  %2532 = vmatpush.msra.mxu0 0.0
  %2533 = vmatpush.msra.mxu0 0.0
  %2534 = vmatpush.msra.mxu0 0.0
  %2535 = vmatpush.msra.mxu0 0.0
  %2536 = vmatpush.msra.mxu0 0.0
  %2537 = vmatpush.msra.mxu0 %v2502
  %2538 = vmatmul.f32.gmra.mxu0 %v2517
  %v2539 = vpop.f32.mrf.mxu0
  %v2540 = vadd.f32 %v2509, %v2539
  %2541 = vmatmul.f32.gmra.mxu0 %v2520
  %v2542 = vpop.f32.mrf.mxu0
  %v2543 = vadd.f32 %v2514, %v2542
  %2544 = vdwg.mxu0
  %v2545 = vadd.f32 %v2476, %v2540
  %v2546 = vadd.f32 %v2477, %v2543
  %v2547 = vmax.f32 %v2545, 0.0
  %v2548 = vmax.f32 %v2546, 0.0
  %v2549 = vld [vmem:[%s19] sm:$0xff]
  %v2551 = vsel %vm509, %v2547, 0
  %v2554 = vsel %vm509, %v2548, 0
  %2556 = vmatpush.msra.mxu0 0.0
  %2557 = vmatpush.msra.mxu0 0.0
  %2558 = vmatpush.msra.mxu0 0.0
  %2559 = vmatpush.msra.mxu0 0.0
  %2560 = vmatpush.msra.mxu0 0.0
  %2561 = vmatpush.msra.mxu0 0.0
  %2562 = vmatpush.msra.mxu0 0.0
  %2563 = vmatpush.msra.mxu0 0.0
  %2564 = vmatpush.msra.mxu0 0.0
  %2565 = vmatpush.msra.mxu0 0.0
  %2566 = vmatpush.msra.mxu0 0.0
  %2567 = vmatpush.msra.mxu0 0.0
  %2568 = vmatpush.msra.mxu0 0.0
  %2569 = vmatpush.msra.mxu0 0.0
  %2570 = vmatpush.msra.mxu0 0.0
  %2571 = vmatpush.msra.mxu0 %v2549
  %2572 = vmatmul.f32.gmra.mxu0 %v2551
  %v2573 = vpop.f32.mrf.mxu0
  %v2574 = vadd.f32 0.0, %v2573
  %2575 = vmatmul.f32.gmra.mxu0 %v2554
  %v2576 = vpop.f32.mrf.mxu0
  %v2577 = vadd.f32 0.0, %v2576
  %2578 = vdwg.mxu0
  %vm2579 = vcmask 15360
  %2580 = vst.msk [vmem:[%s23] sm:$0xff] %vm2579, %v2574
  %2581 = vst.msk [vmem:[%s23 + $0x8] sm:$0xff] %vm2579, %v2577
  %v2582 = vld [vmem:[%s20] sm:$0xff]
  %v2583 = vld [vmem:[%s20 + $0x8] sm:$0x3]
  %v2584 = vld [vmem:[%s21] sm:$0xff]
  %v2585 = vld [vmem:[%s21 + $0x8] sm:$0x3]
  %2587 = vset.pattern.permute.xlu0 0
  %2588 = vperm.xlu0 %2587, %v2584
  %v2589 = vpop.permute.xlu0 %2588
  %2592 = vset.pattern.permute.xlu0 0
  %2593 = vperm.xlu0 %2592, %v2585
  %v2594 = vpop.permute.xlu0 %2593
  %v2597 = vsel %vm1992, %v2582, 0
  %v2600 = vsel %vm1992, %v2583, 0
  %2602 = vmatpush.msra.mxu0 0.0
  %2603 = vmatpush.msra.mxu0 0.0
  %2604 = vmatpush.msra.mxu0 0.0
  %2605 = vmatpush.msra.mxu0 0.0
  %2606 = vmatpush.msra.mxu0 0.0
  %2607 = vmatpush.msra.mxu0 0.0
  %2608 = vmatpush.msra.mxu0 0.0
  %2609 = vmatpush.msra.mxu0 0.0
  %2610 = vmatpush.msra.mxu0 0.0
  %2611 = vmatpush.msra.mxu0 0.0
  %2612 = vmatpush.msra.mxu0 0.0
  %2613 = vmatpush.msra.mxu0 0.0
  %2614 = vmatpush.msra.mxu0 0.0
  %2615 = vmatpush.msra.mxu0 0.0
  %2616 = vmatpush.msra.mxu0 %v2577
  %2617 = vmatpush.msra.mxu0 %v2574
  %2618 = vmatmul.f32.gmra.mxu0 %v2597
  %v2619 = vpop.f32.mrf.mxu0
  %v2620 = vadd.f32 %v2589, %v2619
  %2621 = vmatmul.f32.gmra.mxu0 %v2600
  %v2622 = vpop.f32.mrf.mxu0
  %v2623 = vadd.f32 %v2594, %v2622
  %2624 = vdwg.mxu0
  %2625 = vst.msk [vmem:[%s22] sm:$0xff] %vm2579, %v2620
  %vm2626 = vcmask 9216
  %2627 = vst.msk [vmem:[%s22 + $0x8] sm:$0x3] %vm2626, %v2623
  // Predicated region
  $region90: #{resnet_forward_pallas.1} parent=0 // pred_check
    _
  $region91: #{resnet_forward_pallas.1} parent=0 // pred_check_branch
    %2629 = sbr.rel (0) target = $region93
  $region92: #{resnet_forward_pallas.1} parent=0 // pred_region
    _
  $region93: #{resnet_forward_pallas.1} parent=0 // pred_fallthru
    _
  // Predicated region
  $region94: #{resnet_forward_pallas.1} parent=0 // pred_check
    _
  $region95: #{resnet_forward_pallas.1} parent=0 // pred_check_branch
    %2631 = sbr.rel (0) target = $region97
  $region96: #{resnet_forward_pallas.1} parent=0 // pred_region
    _
  $region97: #{resnet_forward_pallas.1} parent=0 // pred_fallthru
    _
  // Predicated region
  $region98: #{resnet_forward_pallas.1} parent=0 // pred_check
    _
  $region99: #{resnet_forward_pallas.1} parent=0 // pred_check_branch
    %2633 = sbr.rel (0) target = $region101
  $region100: #{resnet_forward_pallas.1} parent=0 // pred_region
    _
  $region101: #{resnet_forward_pallas.1} parent=0 // pred_fallthru
    _
  // Predicated region
  $region102: #{resnet_forward_pallas.1} parent=0 // pred_check
    _
  $region103: #{resnet_forward_pallas.1} parent=0 // pred_check_branch
    %2635 = sbr.rel (0) target = $region105
  $region104: #{resnet_forward_pallas.1} parent=0 // pred_region
    _
  $region105: #{resnet_forward_pallas.1} parent=0 // pred_fallthru
    _

</llo_original>
